<compile_context>
chip_gen: v5e
topology: v5e:2x2
jax: 0.10.0
libtpu: 0.0.40
codegen_flags: <defaults>
</compile_context>

<pallas_src>
import numpy as np

import jax
import jax.numpy as jnp
from jax.experimental import pallas as pl
from jax.experimental.pallas import tpu as pltpu

_DROP_P = 0.4
# keep an element iff (hash >> 1) >= round(p * 2^31)  =>  keep prob = 1 - p
_DROP_THRESH31 = np.int32(int(round(_DROP_P * (1 << 31))))   # numpy scalar -> literal

# Hash constants as numpy uint32 scalars (literals, never captured jax.Arrays).
_C1 = np.uint32(0x85EBCA6B)
_C2 = np.uint32(0xC2B2AE35)
_C3 = np.uint32(0x9E3779B9)
_M1 = np.uint32(0x7FEB352D)
_M2 = np.uint32(0x846CA68B)


def _mix32(v):
    """splitmix32-style finalizer; run only on the small (m,1)/(1,n) vectors."""
    v = v ^ (v >> 16)
    v = v * _M1
    v = v ^ (v >> 15)
    v = v * _M2
    v = v ^ (v >> 16)
    return v


def _keep_mask(shape, row_off_u32, seed_u32, salt):
    """Bernoulli(1-p) keep mask as a pure function of (seed, salt, global row, col).

    Heavy mixing happens on broadcast-shaped row/col hashes; the full-shape work
    is one xor + a single xorshift-multiply round + threshold compare, keeping
    the VALU (the binding slot) short."""
    m, n = shape
    rows = (jax.lax.broadcasted_iota(jnp.int32, (m, 1), 0).astype(jnp.uint32)
            + row_off_u32)
    cols = jax.lax.broadcasted_iota(jnp.int32, (1, n), 1).astype(jnp.uint32)
    key = seed_u32 * _C3 + np.uint32(salt)
    row_h = _mix32(rows * _C1 + key)          # (m, 1): cheap
    col_h = _mix32(cols * _C2 ^ key)          # (1, n): cheap
    v = row_h ^ col_h                         # broadcast to (m, n)
    v = v ^ (v >> 16)
    v = v * _M1
    v = v ^ (v >> 15)
    bits31 = (v >> 1).astype(jnp.int32)
    return bits31 >= _DROP_THRESH31           # integer threshold, no f32 convert


def _dropout_masked(h, row_off_u32, seed_u32, salt):
    """Dropout WITHOUT the 1/(1-p) scale (the scale is folded into w2/w3)."""
    return jnp.where(_keep_mask(h.shape, row_off_u32, seed_u32, salt), h, 0.0)


def _mlp_kernel(seed_ref, x_ref, w1_ref, b1_ref, w2_ref, b2_ref, w3_ref, b3_ref,
                o_ref):
    seed_u32 = seed_ref[0].astype(jnp.uint32)
    # Global row offset of this batch tile -> per-tile-distinct dropout masks.
    row_off = (pl.program_id(0) * x_ref.shape[0]).astype(jnp.uint32)

    mm_dtype = w1_ref.dtype                  # matmul dtype chosen by the wrapper

    # ---- lin1 + sigmoid + dropout ----  (keep-scale folded into w2)
    h = jnp.dot(x_ref[...].astype(mm_dtype), w1_ref[...],
                preferred_element_type=jnp.float32)
    h = jax.nn.sigmoid(h + b1_ref[...])      # exp on EUP; VALU stays free for dropout
    h = _dropout_masked(h, row_off, seed_u32, salt=1)

    # ---- lin2 + sigmoid + dropout ----  (keep-scale folded into w3)
    h = jnp.dot(h.astype(mm_dtype), w2_ref[...],
                preferred_element_type=jnp.float32)
    h = jax.nn.sigmoid(h + b2_ref[...])
    h = _dropout_masked(h, row_off, seed_u32, salt=2)

    # ---- lin3 + sigmoid ----  (N=1: negligible; stays f32)
    # TODO(synk): sigmoid could be rewritten as exp(-x) + pl.reciprocal(approx=True)
    # to move the divide onto the EUP slot if a bundle dump shows a VALU divide.
    h = jnp.dot(h, w3_ref[...], preferred_element_type=jnp.float32)
    o_ref[...] = jax.nn.sigmoid(h + b3_ref[...]).astype(o_ref.dtype)


def _round_up(v, m):
    return -(-v // m) * m


def _pick_batch_tile(batch, target=1024):
    """Largest reasonable tile (amortize per-step overhead) but always >= 2 grid
    steps for batch > 8, so ("parallel",) shards across v7x's two TensorCores."""
    if batch <= 8:
        return batch
    half = _round_up(-(-batch // 2), 8)      # ceil(B/2) rounded up to sublane
    return max(8, min(target, half))


def _default_bf16_matmul():
    """bf16 matmul (f32 accumulation) on v6e/v7x; f32 on v5e and older."""
    try:
        kind = jax.devices()[0].device_kind.lower()
    except Exception:
        return False
    return not any(t in kind for t in ("v2", "v3", "v4", "v5"))


def _prepare_params(params, matmul_dtype):
    """One-time param prep (runs in the wrapper, not per grid step):
      * fold the dropout 1/(1-p) keep-scale into w2 and w3,
      * zero-pad hidden widths to lane multiples of 128 (padded w2/w3 rows are
        zero so padded-column activations cannot leak into valid outputs),
      * pre-cast the big matmul weights to the matmul dtype."""
    w1, b1, w2, b2, w3, b3 = params
    scale = 1.0 / (1.0 - _DROP_P)
    d1, d2 = w1.shape[1], w2.shape[1]
    d1p, d2p = _round_up(d1, 128), _round_up(d2, 128)

    w1p = jnp.pad(w1, ((0, 0), (0, d1p - d1))).astype(matmul_dtype)
    b1p = jnp.pad(b1, ((0, 0), (0, d1p - d1)))
    w2p = jnp.pad(w2 * scale, ((0, d1p - d1), (0, d2p - d2))).astype(matmul_dtype)
    b2p = jnp.pad(b2, ((0, 0), (0, d2p - d2)))
    w3p = jnp.pad(w3 * scale, ((0, d2p - d2), (0, 0)))          # keep f32 (N=1)
    return w1p, b1p, w2p, b2p, w3p, b3


def pheno_model_classifier_forward(x, params, seed, *, block_b=None,
                                   use_bf16_matmul=None):
    """x: (B, input_size) f32 -> (B, 1) f32 (training-mode forward, dropout active)."""
    if use_bf16_matmul is None:
        use_bf16_matmul = _default_bf16_matmul()
    matmul_dtype = jnp.bfloat16 if use_bf16_matmul else jnp.float32

    w1, b1, w2, b2, w3, b3 = _prepare_params(params, matmul_dtype)
    B, D = x.shape
    d1p, d2p = w1.shape[1], w2.shape[1]

    if block_b is None:
        tb = _pick_batch_tile(B)
    else:
        tb = min(block_b, B)
        if tb != B:
            tb = max(8, (tb // 8) * 8)       # (8,128) rule on the batch tile
    grid = (pl.cdiv(B, tb),)

    seed_arr = jnp.asarray([seed], dtype=jnp.int32)
    x_map = lambda i, s: (i, 0)              # x / out: pipelined over batch tiles
    const = lambda i, s: (0, 0)              # weights/biases stay VMEM-resident

    grid_spec = pltpu.PrefetchScalarGridSpec(
        num_scalar_prefetch=1,               # seed scalar lands in SMEM
        grid=grid,
        in_specs=[
            pl.BlockSpec((tb, D), x_map),    # x
            pl.BlockSpec((D, d1p), const),   # w1 (pre-cast)
            pl.BlockSpec((1, d1p), const),   # b1
            pl.BlockSpec((d1p, d2p), const), # w2 (pre-cast, pre-scaled)
            pl.BlockSpec((1, d2p), const),   # b2
            pl.BlockSpec((d2p, 1), const),   # w3 (pre-scaled)
            pl.BlockSpec((1, 1), const),     # b3
        ],
        out_specs=pl.BlockSpec((tb, 1), x_map),
    )

    # Per-tile VMEM footprint (<= tb=1024): x tile ~1.5 MiB f32 (double-buffered),
    # padded weights < 0.5 MiB -> far below the scoped-VMEM default on v5e/v6e/v7x.
    return pl.pallas_call(
        _mlp_kernel,
        out_shape=jax.ShapeDtypeStruct((B, 1), jnp.float32),
        grid_spec=grid_spec,
        compiler_params=pltpu.CompilerParams(
            dimension_semantics=("parallel",)),   # batch tiles shard across v7x TCs
    )(seed_arr, x, w1, b1, w2, b2, w3, b3)


def reference_forward(x, params, seed):
    """Pure-JAX reference (unpadded, standard dropout-scale formulation) using the
    exact same hash-based keep masks as the kernel."""
    w1, b1, w2, b2, w3, b3 = params
    seed_u32 = jnp.asarray(seed, dtype=jnp.uint32)
    zero = np.uint32(0)
    scale = 1.0 / (1.0 - _DROP_P)
    h = jax.nn.sigmoid(jnp.dot(x, w1) + b1)
    h = jnp.where(_keep_mask(h.shape, zero, seed_u32, 1), h * scale, 0.0)
    h = jax.nn.sigmoid(jnp.dot(h, w2) + b2)
    h = jnp.where(_keep_mask(h.shape, zero, seed_u32, 2), h * scale, 0.0)
    return jax.nn.sigmoid(jnp.dot(h, w3) + b3)


def init_params(key, input_size):
    """Deterministic init matching nn.Linear's U(-1/sqrt(fan_in), 1/sqrt(fan_in))."""
    start_n = (input_size + 1) // 2          # lin1 out
    mid_n = start_n // 2                     # lin2 out
    dims = [(input_size, start_n), (start_n, mid_n), (mid_n, 1)]
    params = []
    for fan_in, fan_out in dims:
        key, kw, kb = jax.random.split(key, 3)
        bound = 1.0 / float(np.sqrt(fan_in))
        w = jax.random.uniform(kw, (fan_in, fan_out), jnp.float32, -bound, bound)
        b = jax.random.uniform(kb, (1, fan_out), jnp.float32, -bound, bound)
        params += [w, b]
    return tuple(params)


if __name__ == "__main__":
    # Module default input_size=365 -> hidden widths 183 and 91 (padded to 256/128
    # inside the wrapper).  batch=256 -> tile 128 -> 2 grid steps (v7x 2-TC rule).
    input_size = 365
    batch = 256

    key = jax.random.PRNGKey(0)
    kx, kp = jax.random.split(key)
    x = jax.random.normal(kx, (batch, input_size), dtype=jnp.float32)
    params = init_params(kp, input_size)

    ref = jax.block_until_ready(reference_forward(x, params, 1234))

    # f32-matmul path: tight tolerance against the f32 reference.
    out_f32 = jax.block_until_ready(
        pheno_model_classifier_forward(x, params, seed=1234, use_bf16_matmul=False))
    assert out_f32.shape == (batch, 1)
    assert bool(jnp.all((out_f32 >= 0.0) & (out_f32 <= 1.0)))     # sigmoid range
    assert bool(jnp.allclose(out_f32, ref, rtol=2e-3, atol=2e-3)), (
        float(jnp.max(jnp.abs(out_f32 - ref))))

    # bf16-matmul path (default on v6e/v7x): looser tolerance.
    out_bf16 = jax.block_until_ready(
        pheno_model_classifier_forward(x, params, seed=1234, use_bf16_matmul=True))
    assert bool(jnp.allclose(out_bf16, ref, rtol=2e-2, atol=2e-2)), (
        float(jnp.max(jnp.abs(out_bf16 - ref))))

    # TODO(synk): torch's exact F.dropout RNG stream is not reproducible; the
    # kernel uses an in-kernel counter-based hash with the same Bernoulli(0.6)
    # keep/scale semantics.
    print("KERNEL_OK")
</pallas_src>

<mosaic_0001>
module attributes {stable_mosaic.version = 11 : i64} {
  func.func @_mlp_kernel(%arg0: i32, %arg1: memref<1xi32, #tpu.memory_space<smem>>, %arg2: memref<128x365xf32, #tpu.memory_space<vmem>>, %arg3: memref<365x256xf32, #tpu.memory_space<vmem>>, %arg4: memref<1x256xf32, #tpu.memory_space<vmem>>, %arg5: memref<256x128xf32, #tpu.memory_space<vmem>>, %arg6: memref<1x128xf32, #tpu.memory_space<vmem>>, %arg7: memref<128x1xf32, #tpu.memory_space<vmem>>, %arg8: memref<1x1xf32, #tpu.memory_space<vmem>>, %arg9: memref<128x1xf32, #tpu.memory_space<vmem>>) attributes {dimension_semantics = [#tpu.dimension_semantics<parallel>], iteration_bounds = array<i64: 2>, scalar_prefetch = 1 : i64, scratch_operands = 0 : i64, tpu.core_type = #tpu.core_type<tc>, window_params = [{transform_indices = @transform_0, window_bounds = array<i64: 128, 365>}, {pipeline_mode = #tpu.pipeline_mode<synchronous>, transform_indices = @transform_1, window_bounds = array<i64: 365, 256>}, {pipeline_mode = #tpu.pipeline_mode<synchronous>, transform_indices = @transform_2, window_bounds = array<i64: 1, 256>}, {pipeline_mode = #tpu.pipeline_mode<synchronous>, transform_indices = @transform_3, window_bounds = array<i64: 256, 128>}, {pipeline_mode = #tpu.pipeline_mode<synchronous>, transform_indices = @transform_4, window_bounds = array<i64: 1, 128>}, {pipeline_mode = #tpu.pipeline_mode<synchronous>, transform_indices = @transform_5, window_bounds = array<i64: 128, 1>}, {pipeline_mode = #tpu.pipeline_mode<synchronous>, transform_indices = @transform_6, window_bounds = array<i64: 1, 1>}, {transform_indices = @transform_7, window_bounds = array<i64: 128, 1>}]} {
    %c0 = arith.constant 0 : index
    %0 = memref.load %arg1[%c0] : memref<1xi32, #tpu.memory_space<smem>>
    %c128_i32 = arith.constant 128 : i32
    %1 = arith.muli %arg0, %c128_i32 : i32
    %c0_0 = arith.constant 0 : index
    %c0_1 = arith.constant 0 : index
    %2 = vector.load %arg2[%c0_0, %c0_1] : memref<128x365xf32, #tpu.memory_space<vmem>>, vector<128x365xf32>
    %c0_2 = arith.constant 0 : index
    %c0_3 = arith.constant 0 : index
    %3 = vector.load %arg3[%c0_2, %c0_3] : memref<365x256xf32, #tpu.memory_space<vmem>>, vector<365x256xf32>
    %cst = arith.constant dense<0.000000e+00> : vector<128x256xf32>
    %4 = tpu.matmul %2, %3, %cst {dimension_numbers = #tpu.dot_dimension_numbers<[1], [0], [0], [1], [0, 0, 1, 1], [], []>} : vector<128x365xf32>, vector<365x256xf32>, vector<128x256xf32> -> vector<128x256xf32>
    %c0_4 = arith.constant 0 : index
    %c0_5 = arith.constant 0 : index
    %5 = vector.load %arg4[%c0_4, %c0_5] : memref<1x256xf32, #tpu.memory_space<vmem>>, vector<1x256xf32>
    %6 = vector.broadcast %5 : vector<1x256xf32> to vector<128x256xf32>
    %7 = arith.addf %4, %6 : vector<128x256xf32>
    %8 = arith.negf %7 : vector<128x256xf32>
    %9 = math.exp %8 : vector<128x256xf32>
    %cst_6 = arith.constant 1.000000e+00 : f32
    %10 = vector.broadcast %cst_6 : f32 to vector<128x256xf32>
    %11 = arith.addf %10, %9 : vector<128x256xf32>
    %12 = arith.divf %10, %11 : vector<128x256xf32>
    %13 = tpu.iota {dimensions = array<i32: 0>} : vector<128x1xi32>
    %14 = vector.broadcast %1 : i32 to vector<128x1xi32>
    %15 = arith.addi %13, %14 : vector<128x1xi32>
    %16 = tpu.iota {dimensions = array<i32: 1>} : vector<1x256xi32>
    %c-1640531527_i32 = arith.constant -1640531527 : i32
    %17 = arith.muli %0, %c-1640531527_i32 : i32
    %c1_i32 = arith.constant 1 : i32
    %18 = arith.addi %17, %c1_i32 : i32
    %c-2048144789_i32 = arith.constant -2048144789 : i32
    %19 = vector.broadcast %c-2048144789_i32 : i32 to vector<128x1xi32>
    %20 = arith.muli %15, %19 : vector<128x1xi32>
    %21 = vector.broadcast %18 : i32 to vector<128x1xi32>
    %22 = arith.addi %20, %21 : vector<128x1xi32>
    %c16_i32 = arith.constant 16 : i32
    %23 = vector.broadcast %c16_i32 : i32 to vector<128x1xi32>
    %24 = arith.shrui %22, %23 : vector<128x1xi32>
    %25 = arith.xori %22, %24 : vector<128x1xi32>
    %c2146121005_i32 = arith.constant 2146121005 : i32
    %26 = vector.broadcast %c2146121005_i32 : i32 to vector<128x1xi32>
    %27 = arith.muli %25, %26 : vector<128x1xi32>
    %c15_i32 = arith.constant 15 : i32
    %28 = vector.broadcast %c15_i32 : i32 to vector<128x1xi32>
    %29 = arith.shrui %27, %28 : vector<128x1xi32>
    %30 = arith.xori %27, %29 : vector<128x1xi32>
    %c-2073254261_i32 = arith.constant -2073254261 : i32
    %31 = vector.broadcast %c-2073254261_i32 : i32 to vector<128x1xi32>
    %32 = arith.muli %30, %31 : vector<128x1xi32>
    %c16_i32_7 = arith.constant 16 : i32
    %33 = vector.broadcast %c16_i32_7 : i32 to vector<128x1xi32>
    %34 = arith.shrui %32, %33 : vector<128x1xi32>
    %35 = arith.xori %32, %34 : vector<128x1xi32>
    %c-1028477387_i32 = arith.constant -1028477387 : i32
    %36 = vector.broadcast %c-1028477387_i32 : i32 to vector<1x256xi32>
    %37 = arith.muli %16, %36 : vector<1x256xi32>
    %38 = vector.broadcast %18 : i32 to vector<1x256xi32>
    %39 = arith.xori %37, %38 : vector<1x256xi32>
    %c16_i32_8 = arith.constant 16 : i32
    %40 = vector.broadcast %c16_i32_8 : i32 to vector<1x256xi32>
    %41 = arith.shrui %39, %40 : vector<1x256xi32>
    %42 = arith.xori %39, %41 : vector<1x256xi32>
    %c2146121005_i32_9 = arith.constant 2146121005 : i32
    %43 = vector.broadcast %c2146121005_i32_9 : i32 to vector<1x256xi32>
    %44 = arith.muli %42, %43 : vector<1x256xi32>
    %c15_i32_10 = arith.constant 15 : i32
    %45 = vector.broadcast %c15_i32_10 : i32 to vector<1x256xi32>
    %46 = arith.shrui %44, %45 : vector<1x256xi32>
    %47 = arith.xori %44, %46 : vector<1x256xi32>
    %c-2073254261_i32_11 = arith.constant -2073254261 : i32
    %48 = vector.broadcast %c-2073254261_i32_11 : i32 to vector<1x256xi32>
    %49 = arith.muli %47, %48 : vector<1x256xi32>
    %c16_i32_12 = arith.constant 16 : i32
    %50 = vector.broadcast %c16_i32_12 : i32 to vector<1x256xi32>
    %51 = arith.shrui %49, %50 : vector<1x256xi32>
    %52 = arith.xori %49, %51 : vector<1x256xi32>
    %53 = vector.broadcast %35 : vector<128x1xi32> to vector<128x256xi32>
    %54 = vector.broadcast %52 : vector<1x256xi32> to vector<128x256xi32>
    %55 = arith.xori %53, %54 : vector<128x256xi32>
    %c16_i32_13 = arith.constant 16 : i32
    %56 = vector.broadcast %c16_i32_13 : i32 to vector<128x256xi32>
    %57 = arith.shrui %55, %56 : vector<128x256xi32>
    %58 = arith.xori %55, %57 : vector<128x256xi32>
    %c2146121005_i32_14 = arith.constant 2146121005 : i32
    %59 = vector.broadcast %c2146121005_i32_14 : i32 to vector<128x256xi32>
    %60 = arith.muli %58, %59 : vector<128x256xi32>
    %c15_i32_15 = arith.constant 15 : i32
    %61 = vector.broadcast %c15_i32_15 : i32 to vector<128x256xi32>
    %62 = arith.shrui %60, %61 : vector<128x256xi32>
    %63 = arith.xori %60, %62 : vector<128x256xi32>
    %c1_i32_16 = arith.constant 1 : i32
    %64 = vector.broadcast %c1_i32_16 : i32 to vector<128x256xi32>
    %65 = arith.shrui %63, %64 : vector<128x256xi32>
    %c858993459_i32 = arith.constant 858993459 : i32
    %66 = vector.broadcast %c858993459_i32 : i32 to vector<128x256xi32>
    %67 = arith.cmpi sge, %65, %66 : vector<128x256xi32>
    %cst_17 = arith.constant 0.000000e+00 : f32
    %68 = vector.broadcast %cst_17 : f32 to vector<128x256xf32>
    %69 = arith.select %67, %12, %68 : vector<128x256xi1>, vector<128x256xf32>
    %c0_18 = arith.constant 0 : index
    %c0_19 = arith.constant 0 : index
    %70 = vector.load %arg5[%c0_18, %c0_19] : memref<256x128xf32, #tpu.memory_space<vmem>>, vector<256x128xf32>
    %cst_20 = arith.constant dense<0.000000e+00> : vector<128x128xf32>
    %71 = tpu.matmul %69, %70, %cst_20 {dimension_numbers = #tpu.dot_dimension_numbers<[1], [0], [0], [1], [0, 0, 1, 1], [], []>} : vector<128x256xf32>, vector<256x128xf32>, vector<128x128xf32> -> vector<128x128xf32>
    %c0_21 = arith.constant 0 : index
    %c0_22 = arith.constant 0 : index
    %72 = vector.load %arg6[%c0_21, %c0_22] : memref<1x128xf32, #tpu.memory_space<vmem>>, vector<1x128xf32>
    %73 = vector.broadcast %72 : vector<1x128xf32> to vector<128x128xf32>
    %74 = arith.addf %71, %73 : vector<128x128xf32>
    %75 = arith.negf %74 : vector<128x128xf32>
    %76 = math.exp %75 : vector<128x128xf32>
    %cst_23 = arith.constant 1.000000e+00 : f32
    %77 = vector.broadcast %cst_23 : f32 to vector<128x128xf32>
    %78 = arith.addf %77, %76 : vector<128x128xf32>
    %79 = arith.divf %77, %78 : vector<128x128xf32>
    %80 = tpu.iota {dimensions = array<i32: 0>} : vector<128x1xi32>
    %81 = vector.broadcast %1 : i32 to vector<128x1xi32>
    %82 = arith.addi %80, %81 : vector<128x1xi32>
    %83 = tpu.iota {dimensions = array<i32: 1>} : vector<1x128xi32>
    %c-1640531527_i32_24 = arith.constant -1640531527 : i32
    %84 = arith.muli %0, %c-1640531527_i32_24 : i32
    %c2_i32 = arith.constant 2 : i32
    %85 = arith.addi %84, %c2_i32 : i32
    %c-2048144789_i32_25 = arith.constant -2048144789 : i32
    %86 = vector.broadcast %c-2048144789_i32_25 : i32 to vector<128x1xi32>
    %87 = arith.muli %82, %86 : vector<128x1xi32>
    %88 = vector.broadcast %85 : i32 to vector<128x1xi32>
    %89 = arith.addi %87, %88 : vector<128x1xi32>
    %c16_i32_26 = arith.constant 16 : i32
    %90 = vector.broadcast %c16_i32_26 : i32 to vector<128x1xi32>
    %91 = arith.shrui %89, %90 : vector<128x1xi32>
    %92 = arith.xori %89, %91 : vector<128x1xi32>
    %c2146121005_i32_27 = arith.constant 2146121005 : i32
    %93 = vector.broadcast %c2146121005_i32_27 : i32 to vector<128x1xi32>
    %94 = arith.muli %92, %93 : vector<128x1xi32>
    %c15_i32_28 = arith.constant 15 : i32
    %95 = vector.broadcast %c15_i32_28 : i32 to vector<128x1xi32>
    %96 = arith.shrui %94, %95 : vector<128x1xi32>
    %97 = arith.xori %94, %96 : vector<128x1xi32>
    %c-2073254261_i32_29 = arith.constant -2073254261 : i32
    %98 = vector.broadcast %c-2073254261_i32_29 : i32 to vector<128x1xi32>
    %99 = arith.muli %97, %98 : vector<128x1xi32>
    %c16_i32_30 = arith.constant 16 : i32
    %100 = vector.broadcast %c16_i32_30 : i32 to vector<128x1xi32>
    %101 = arith.shrui %99, %100 : vector<128x1xi32>
    %102 = arith.xori %99, %101 : vector<128x1xi32>
    %c-1028477387_i32_31 = arith.constant -1028477387 : i32
    %103 = vector.broadcast %c-1028477387_i32_31 : i32 to vector<1x128xi32>
    %104 = arith.muli %83, %103 : vector<1x128xi32>
    %105 = vector.broadcast %85 : i32 to vector<1x128xi32>
    %106 = arith.xori %104, %105 : vector<1x128xi32>
    %c16_i32_32 = arith.constant 16 : i32
    %107 = vector.broadcast %c16_i32_32 : i32 to vector<1x128xi32>
    %108 = arith.shrui %106, %107 : vector<1x128xi32>
    %109 = arith.xori %106, %108 : vector<1x128xi32>
    %c2146121005_i32_33 = arith.constant 2146121005 : i32
    %110 = vector.broadcast %c2146121005_i32_33 : i32 to vector<1x128xi32>
    %111 = arith.muli %109, %110 : vector<1x128xi32>
    %c15_i32_34 = arith.constant 15 : i32
    %112 = vector.broadcast %c15_i32_34 : i32 to vector<1x128xi32>
    %113 = arith.shrui %111, %112 : vector<1x128xi32>
    %114 = arith.xori %111, %113 : vector<1x128xi32>
    %c-2073254261_i32_35 = arith.constant -2073254261 : i32
    %115 = vector.broadcast %c-2073254261_i32_35 : i32 to vector<1x128xi32>
    %116 = arith.muli %114, %115 : vector<1x128xi32>
    %c16_i32_36 = arith.constant 16 : i32
    %117 = vector.broadcast %c16_i32_36 : i32 to vector<1x128xi32>
    %118 = arith.shrui %116, %117 : vector<1x128xi32>
    %119 = arith.xori %116, %118 : vector<1x128xi32>
    %120 = vector.broadcast %102 : vector<128x1xi32> to vector<128x128xi32>
    %121 = vector.broadcast %119 : vector<1x128xi32> to vector<128x128xi32>
    %122 = arith.xori %120, %121 : vector<128x128xi32>
    %c16_i32_37 = arith.constant 16 : i32
    %123 = vector.broadcast %c16_i32_37 : i32 to vector<128x128xi32>
    %124 = arith.shrui %122, %123 : vector<128x128xi32>
    %125 = arith.xori %122, %124 : vector<128x128xi32>
    %c2146121005_i32_38 = arith.constant 2146121005 : i32
    %126 = vector.broadcast %c2146121005_i32_38 : i32 to vector<128x128xi32>
    %127 = arith.muli %125, %126 : vector<128x128xi32>
    %c15_i32_39 = arith.constant 15 : i32
    %128 = vector.broadcast %c15_i32_39 : i32 to vector<128x128xi32>
    %129 = arith.shrui %127, %128 : vector<128x128xi32>
    %130 = arith.xori %127, %129 : vector<128x128xi32>
    %c1_i32_40 = arith.constant 1 : i32
    %131 = vector.broadcast %c1_i32_40 : i32 to vector<128x128xi32>
    %132 = arith.shrui %130, %131 : vector<128x128xi32>
    %c858993459_i32_41 = arith.constant 858993459 : i32
    %133 = vector.broadcast %c858993459_i32_41 : i32 to vector<128x128xi32>
    %134 = arith.cmpi sge, %132, %133 : vector<128x128xi32>
    %cst_42 = arith.constant 0.000000e+00 : f32
    %135 = vector.broadcast %cst_42 : f32 to vector<128x128xf32>
    %136 = arith.select %134, %79, %135 : vector<128x128xi1>, vector<128x128xf32>
    %c0_43 = arith.constant 0 : index
    %c0_44 = arith.constant 0 : index
    %137 = vector.load %arg7[%c0_43, %c0_44] : memref<128x1xf32, #tpu.memory_space<vmem>>, vector<128x1xf32>
    %cst_45 = arith.constant dense<0.000000e+00> : vector<128x1xf32>
    %138 = tpu.matmul %136, %137, %cst_45 {dimension_numbers = #tpu.dot_dimension_numbers<[1], [0], [0], [1], [0, 0, 1, 1], [], []>} : vector<128x128xf32>, vector<128x1xf32>, vector<128x1xf32> -> vector<128x1xf32>
    %c0_46 = arith.constant 0 : index
    %c0_47 = arith.constant 0 : index
    %139 = vector.load %arg8[%c0_46, %c0_47] : memref<1x1xf32, #tpu.memory_space<vmem>>, vector<1x1xf32>
    %140 = vector.broadcast %139 : vector<1x1xf32> to vector<128x1xf32>
    %141 = arith.addf %138, %140 : vector<128x1xf32>
    %142 = arith.negf %141 : vector<128x1xf32>
    %143 = math.exp %142 : vector<128x1xf32>
    %cst_48 = arith.constant 1.000000e+00 : f32
    %144 = vector.broadcast %cst_48 : f32 to vector<128x1xf32>
    %145 = arith.addf %144, %143 : vector<128x1xf32>
    %146 = arith.divf %144, %145 : vector<128x1xf32>
    %c0_49 = arith.constant 0 : index
    %c0_50 = arith.constant 0 : index
    %147 = vector.load %arg9[%c0_49, %c0_50] : memref<128x1xf32, #tpu.memory_space<vmem>>, vector<128x1xf32>
    tpu.vector_store %arg9[%c0_49, %c0_50], %146 {strides = array<i32>} : memref<128x1xf32, #tpu.memory_space<vmem>>, vector<128x1xf32>,
    return
  }
  func.func @transform_0(%arg0: i32, %arg1: memref<1xi32, #tpu.memory_space<smem>>) -> (i32, i32) {
    %c0_i32 = arith.constant 0 : i32
    %c0_i32_0 = arith.constant 0 : i32
    return %arg0, %c0_i32 : i32, i32
  }
  func.func @transform_1(%arg0: i32, %arg1: memref<1xi32, #tpu.memory_space<smem>>) -> (i32, i32) {
    %c0_i32 = arith.constant 0 : i32
    %c0_i32_0 = arith.constant 0 : i32
    %c0_i32_1 = arith.constant 0 : i32
    return %c0_i32, %c0_i32_0 : i32, i32
  }
  func.func @transform_2(%arg0: i32, %arg1: memref<1xi32, #tpu.memory_space<smem>>) -> (i32, i32) {
    %c0_i32 = arith.constant 0 : i32
    %c0_i32_0 = arith.constant 0 : i32
    %c0_i32_1 = arith.constant 0 : i32
    return %c0_i32, %c0_i32_0 : i32, i32
  }
  func.func @transform_3(%arg0: i32, %arg1: memref<1xi32, #tpu.memory_space<smem>>) -> (i32, i32) {
    %c0_i32 = arith.constant 0 : i32
    %c0_i32_0 = arith.constant 0 : i32
    %c0_i32_1 = arith.constant 0 : i32
    return %c0_i32, %c0_i32_0 : i32, i32
  }
  func.func @transform_4(%arg0: i32, %arg1: memref<1xi32, #tpu.memory_space<smem>>) -> (i32, i32) {
    %c0_i32 = arith.constant 0 : i32
    %c0_i32_0 = arith.constant 0 : i32
    %c0_i32_1 = arith.constant 0 : i32
    return %c0_i32, %c0_i32_0 : i32, i32
  }
  func.func @transform_5(%arg0: i32, %arg1: memref<1xi32, #tpu.memory_space<smem>>) -> (i32, i32) {
    %c0_i32 = arith.constant 0 : i32
    %c0_i32_0 = arith.constant 0 : i32
    %c0_i32_1 = arith.constant 0 : i32
    return %c0_i32, %c0_i32_0 : i32, i32
  }
  func.func @transform_6(%arg0: i32, %arg1: memref<1xi32, #tpu.memory_space<smem>>) -> (i32, i32) {
    %c0_i32 = arith.constant 0 : i32
    %c0_i32_0 = arith.constant 0 : i32
    %c0_i32_1 = arith.constant 0 : i32
    return %c0_i32, %c0_i32_0 : i32, i32
  }
  func.func @transform_7(%arg0: i32, %arg1: memref<1xi32, #tpu.memory_space<smem>>) -> (i32, i32) {
    %c0_i32 = arith.constant 0 : i32
    %c0_i32_0 = arith.constant 0 : i32
    return %arg0, %c0_i32 : i32, i32
  }
}

</mosaic_0001>

<llo_original>
// kernel: tpu_custom_call.1
$region0: #{tpu_custom_call.1}
  #allocation0 [shape = 'u32[]', space=smem, size = 0x4, offset = 0x4, fixed_abs, tag = 'smem constant byte address 0x4 - core index']
  #allocation1 [shape = 'u32[72,128]{1,0:T(1,128)}', space=vmem, size = 0x9000, scoped, tag = 'internal scratch']
  #allocation2 [shape = 's32[1]{0}', space=sflag, size = 0x4, scoped, tag = 'scoped memory for tpu_custom_call.1']
  #allocation3 [shape = 's32[1]{0:T(128)S(6)}', space=smem, size = 0x200, scoped, tag = 'prefetched SMEM operand 0']
  #allocation4 [shape = 'f32[1,1]{1,0:T(1,128)S(1)}', space=vmem, size = 0x200, scoped, tag = 'scoped memory for tpu_custom_call.1']
  %s0 = inlined_call_operand.<no memory space> [shape: s32[1], index: 0, kind: input, shape index: {}]
  %s1 = inlined_call_operand.vmem [shape: f32[256,365], index: 1, kind: input, shape index: {}]
  %s2 = inlined_call_operand.vmem [shape: f32[365,256], index: 2, kind: input, shape index: {}]
  %s3 = inlined_call_operand.vmem [shape: f32[1,256], index: 3, kind: input, shape index: {}]
  %s4 = inlined_call_operand.vmem [shape: f32[256,128], index: 4, kind: input, shape index: {}]
  %s5 = inlined_call_operand.vmem [shape: f32[1,128], index: 5, kind: input, shape index: {}]
  %s6 = inlined_call_operand.vmem [shape: f32[128,1], index: 6, kind: input, shape index: {}]
  %s7 = inlined_call_operand.<no memory space> [shape: f32[1,1], index: 7, kind: input, shape index: {}]
  %s8 = inlined_call_operand.vmem [shape: f32[256,1], index: 8, kind: output, shape index: {}]
  %s9 = sld [smem:[#allocation0]]
  $region61: #{tpu_custom_call.1} parent=0
    _
  %s11 = ssub.s32 1, %s9
  %s12 = scalar_select 0, %s11, %s9
  %13 = sst [smem:[#allocation3]] %s0
  %v14 = vstv %s7
  %15 = vst [vmem:[#allocation4] sm:$0x1] %v14
  loop: start=0, step=1, limit=4
  $region2: #{tpu_custom_call.1} parent=0 // loop_pre_header
    _
  $region3: #{tpu_custom_call.1} parent=0 // loop_header
    %s17 = sphi 0, %s21
    %p18 = scmp.ge.s32.totalorder %s17, 4
    %s27 = sphi 0, %s29
    %s30 = sphi 0, %s27
    %s31 = sphi 0, %s30
    %s47 = sphi 0, %s31
    %s51 = sphi 0, %s51
    %s53 = sphi 0, %s51
    %s54 = sphi 0, %s53
    %s68 = sphi 0, %s54
    %s72 = sphi 0, %s72
    %s74 = sphi 0, %s72
    %s75 = sphi 0, %s74
    %s89 = sphi 0, %s75
    %s93 = sphi 0, %s93
    %s95 = sphi 0, %s93
    %s96 = sphi 0, %s95
    %s110 = sphi 0, %s96
    %s114 = sphi 0, %s114
    %s116 = sphi 0, %s114
    %s117 = sphi 0, %s116
    %s131 = sphi 0, %s117
    %s135 = sphi 0, %s135
    %s137 = sphi 0, %s135
    %s138 = sphi 0, %s137
    %s152 = sphi 0, %s138
    %s156 = sphi 0, %s156
    %s158 = sphi 0, %s156
    %s159 = sphi 0, %s158
    %s173 = sphi 0, %s159
    %s179 = sphi 0, %s181
    %s182 = sphi 0, %s179
    %s183 = sphi 0, %s182
    %s199 = sphi 0, %s183
  $region4: #{tpu_custom_call.1} parent=0 // loop_header_branch
    %20 = sbr.rel (%p18) target = $region8
  $region5: #{tpu_custom_call.1} parent=0 // loop_body
    %s22 = ssub.s32 %s17, 1
    %s23 = ssub.s32 %s17, 2
    %s24 = sadd.s32 %s17, 1
    %s25 = ssub.s32 %s17, %s24
    %p26 = scmp.eq.s32.totalorder %s25, 0
    %s28 = sadd.s32 %s27, 1
    %s29 = scalar_select %p26, %s27, %s28
    %p32 = pneg %p26
    %p33 = scmp.eq.s32.totalorder %s17, 1
    %p34 = por %p32, %p33
    %p35 = scmp.ne.s32.totalorder %s27, %s30
    %p36 = scmp.eq.s32.totalorder %s17, 0
    %p37 = por %p35, %p36
    %p38 = scmp.ne.s32.totalorder %s27, %s30
    %p39 = scmp.eq.s32.totalorder %s22, 1
    %p40 = por %p38, %p39
    %p41 = scmp.ne.s32.totalorder %s30, %s31
    %p42 = scmp.eq.s32.totalorder %s22, 0
    %p43 = por %p41, %p42
    %p44 = scmp.ne.s32.totalorder %s30, %s31
    %p45 = scmp.eq.s32.totalorder %s23, 1
    %p46 = por %p44, %p45
    %p48 = scmp.ne.s32.totalorder %s31, %s47
    %p49 = scmp.eq.s32.totalorder %s23, 0
    %p50 = por %p48, %p49
    %s52 = sadd.s32 %s51, 1
    %p55 = scmp.eq.s32.totalorder %s17, 1
    %p56 = scmp.ne.s32.totalorder %s51, %s53
    %p57 = scmp.eq.s32.totalorder %s17, 0
    %p58 = por %p56, %p57
    %p59 = scmp.ne.s32.totalorder %s51, %s53
    %p60 = scmp.eq.s32.totalorder %s22, 1
    %p61 = por %p59, %p60
    %p62 = scmp.ne.s32.totalorder %s53, %s54
    %p63 = scmp.eq.s32.totalorder %s22, 0
    %p64 = por %p62, %p63
    %p65 = scmp.ne.s32.totalorder %s53, %s54
    %p66 = scmp.eq.s32.totalorder %s23, 1
    %p67 = por %p65, %p66
    %p69 = scmp.ne.s32.totalorder %s54, %s68
    %p70 = scmp.eq.s32.totalorder %s23, 0
    %p71 = por %p69, %p70
    %s73 = sadd.s32 %s72, 1
    %p76 = scmp.eq.s32.totalorder %s17, 1
    %p77 = scmp.ne.s32.totalorder %s72, %s74
    %p78 = scmp.eq.s32.totalorder %s17, 0
    %p79 = por %p77, %p78
    %p80 = scmp.ne.s32.totalorder %s72, %s74
    %p81 = scmp.eq.s32.totalorder %s22, 1
    %p82 = por %p80, %p81
    %p83 = scmp.ne.s32.totalorder %s74, %s75
    %p84 = scmp.eq.s32.totalorder %s22, 0
    %p85 = por %p83, %p84
    %p86 = scmp.ne.s32.totalorder %s74, %s75
    %p87 = scmp.eq.s32.totalorder %s23, 1
    %p88 = por %p86, %p87
    %p90 = scmp.ne.s32.totalorder %s75, %s89
    %p91 = scmp.eq.s32.totalorder %s23, 0
    %p92 = por %p90, %p91
    %s94 = sadd.s32 %s93, 1
    %p97 = scmp.eq.s32.totalorder %s17, 1
    %p98 = scmp.ne.s32.totalorder %s93, %s95
    %p99 = scmp.eq.s32.totalorder %s17, 0
    %p100 = por %p98, %p99
    %p101 = scmp.ne.s32.totalorder %s93, %s95
    %p102 = scmp.eq.s32.totalorder %s22, 1
    %p103 = por %p101, %p102
    %p104 = scmp.ne.s32.totalorder %s95, %s96
    %p105 = scmp.eq.s32.totalorder %s22, 0
    %p106 = por %p104, %p105
    %p107 = scmp.ne.s32.totalorder %s95, %s96
    %p108 = scmp.eq.s32.totalorder %s23, 1
    %p109 = por %p107, %p108
    %p111 = scmp.ne.s32.totalorder %s96, %s110
    %p112 = scmp.eq.s32.totalorder %s23, 0
    %p113 = por %p111, %p112
    %s115 = sadd.s32 %s114, 1
    %p118 = scmp.eq.s32.totalorder %s17, 1
    %p119 = scmp.ne.s32.totalorder %s114, %s116
    %p120 = scmp.eq.s32.totalorder %s17, 0
    %p121 = por %p119, %p120
    %p122 = scmp.ne.s32.totalorder %s114, %s116
    %p123 = scmp.eq.s32.totalorder %s22, 1
    %p124 = por %p122, %p123
    %p125 = scmp.ne.s32.totalorder %s116, %s117
    %p126 = scmp.eq.s32.totalorder %s22, 0
    %p127 = por %p125, %p126
    %p128 = scmp.ne.s32.totalorder %s116, %s117
    %p129 = scmp.eq.s32.totalorder %s23, 1
    %p130 = por %p128, %p129
    %p132 = scmp.ne.s32.totalorder %s117, %s131
    %p133 = scmp.eq.s32.totalorder %s23, 0
    %p134 = por %p132, %p133
    %s136 = sadd.s32 %s135, 1
    %p139 = scmp.eq.s32.totalorder %s17, 1
    %p140 = scmp.ne.s32.totalorder %s135, %s137
    %p141 = scmp.eq.s32.totalorder %s17, 0
    %p142 = por %p140, %p141
    %p143 = scmp.ne.s32.totalorder %s135, %s137
    %p144 = scmp.eq.s32.totalorder %s22, 1
    %p145 = por %p143, %p144
    %p146 = scmp.ne.s32.totalorder %s137, %s138
    %p147 = scmp.eq.s32.totalorder %s22, 0
    %p148 = por %p146, %p147
    %p149 = scmp.ne.s32.totalorder %s137, %s138
    %p150 = scmp.eq.s32.totalorder %s23, 1
    %p151 = por %p149, %p150
    %p153 = scmp.ne.s32.totalorder %s138, %s152
    %p154 = scmp.eq.s32.totalorder %s23, 0
    %p155 = por %p153, %p154
    %s157 = sadd.s32 %s156, 1
    %p160 = scmp.eq.s32.totalorder %s17, 1
    %p161 = scmp.ne.s32.totalorder %s156, %s158
    %p162 = scmp.eq.s32.totalorder %s17, 0
    %p163 = por %p161, %p162
    %p164 = scmp.ne.s32.totalorder %s156, %s158
    %p165 = scmp.eq.s32.totalorder %s22, 1
    %p166 = por %p164, %p165
    %p167 = scmp.ne.s32.totalorder %s158, %s159
    %p168 = scmp.eq.s32.totalorder %s22, 0
    %p169 = por %p167, %p168
    %p170 = scmp.ne.s32.totalorder %s158, %s159
    %p171 = scmp.eq.s32.totalorder %s23, 1
    %p172 = por %p170, %p171
    %p174 = scmp.ne.s32.totalorder %s159, %s173
    %p175 = scmp.eq.s32.totalorder %s23, 0
    %p176 = por %p174, %p175
    %s177 = ssub.s32 %s17, %s24
    %p178 = scmp.eq.s32.totalorder %s177, 0
    %s180 = sadd.s32 %s179, 1
    %s181 = scalar_select %p178, %s179, %s180
    %p184 = pneg %p178
    %p185 = scmp.eq.s32.totalorder %s17, 1
    %p186 = por %p184, %p185
    %p187 = scmp.ne.s32.totalorder %s179, %s182
    %p188 = scmp.eq.s32.totalorder %s17, 0
    %p189 = por %p187, %p188
    %p190 = scmp.ne.s32.totalorder %s179, %s182
    %p191 = scmp.eq.s32.totalorder %s22, 1
    %p192 = por %p190, %p191
    %p193 = scmp.ne.s32.totalorder %s182, %s183
    %p194 = scmp.eq.s32.totalorder %s22, 0
    %p195 = por %p193, %p194
    %p196 = scmp.ne.s32.totalorder %s182, %s183
    %p197 = scmp.eq.s32.totalorder %s23, 1
    %p198 = por %p196, %p197
    %p200 = scmp.ne.s32.totalorder %s183, %s199
    %p201 = scmp.eq.s32.totalorder %s23, 0
    %p202 = por %p200, %p201
    %p203 = scmp.le.s32.totalorder 1, %s17
    %p204 = scmp.lt.s32.totalorder %s17, 3
    %p205 = pnand %p203, %p204
    %p206 = pneg %p205
    // Predicated region
    $region9: #{tpu_custom_call.1} parent=5 // pred_check
      _
    $region10: #{tpu_custom_call.1} parent=5 // pred_check_branch
      %208 = sbr.rel (%p205) target = $region12
    $region11: #{tpu_custom_call.1} parent=5 // pred_region
      %s209 = ssub.s32 %s17, 1
      // Predicated region
      $region13: #{tpu_custom_call.1} parent=11 // pred_check
        %p210 = pneg %p64
      $region14: #{tpu_custom_call.1} parent=11 // pred_check_branch
        %212 = sbr.rel (%p210) target = $region16
      $region15: #{tpu_custom_call.1} parent=11 // pred_region
        _
      $region16: #{tpu_custom_call.1} parent=11 // pred_fallthru
        _
      // Predicated region
      $region17: #{tpu_custom_call.1} parent=11 // pred_check
        %p213 = pneg %p85
      $region18: #{tpu_custom_call.1} parent=11 // pred_check_branch
        %215 = sbr.rel (%p213) target = $region20
      $region19: #{tpu_custom_call.1} parent=11 // pred_region
        _
      $region20: #{tpu_custom_call.1} parent=11 // pred_fallthru
        _
      // Predicated region
      $region21: #{tpu_custom_call.1} parent=11 // pred_check
        %p216 = pneg %p106
      $region22: #{tpu_custom_call.1} parent=11 // pred_check_branch
        %218 = sbr.rel (%p216) target = $region24
      $region23: #{tpu_custom_call.1} parent=11 // pred_region
        _
      $region24: #{tpu_custom_call.1} parent=11 // pred_fallthru
        _
      // Predicated region
      $region25: #{tpu_custom_call.1} parent=11 // pred_check
        %p219 = pneg %p127
      $region26: #{tpu_custom_call.1} parent=11 // pred_check_branch
        %221 = sbr.rel (%p219) target = $region28
      $region27: #{tpu_custom_call.1} parent=11 // pred_region
        _
      $region28: #{tpu_custom_call.1} parent=11 // pred_fallthru
        _
      // Predicated region
      $region29: #{tpu_custom_call.1} parent=11 // pred_check
        %p222 = pneg %p148
      $region30: #{tpu_custom_call.1} parent=11 // pred_check_branch
        %224 = sbr.rel (%p222) target = $region32
      $region31: #{tpu_custom_call.1} parent=11 // pred_region
        _
      $region32: #{tpu_custom_call.1} parent=11 // pred_fallthru
        _
      // Predicated region
      $region33: #{tpu_custom_call.1} parent=11 // pred_check
        %p225 = pneg %p169
      $region34: #{tpu_custom_call.1} parent=11 // pred_check_branch
        %227 = sbr.rel (%p225) target = $region36
      $region35: #{tpu_custom_call.1} parent=11 // pred_region
        _
      $region36: #{tpu_custom_call.1} parent=11 // pred_fallthru
        _
    $region12: #{tpu_custom_call.1} parent=5 // pred_fallthru
      _
    %p228 = scmp.lt.s32.totalorder %s17, 2
    // Predicated region
    $region37: #{tpu_custom_call.1} parent=5 // pred_check
      %p229 = pneg %p228
    $region38: #{tpu_custom_call.1} parent=5 // pred_check_branch
      %231 = sbr.rel (%p229) target = $region40
    $region39: #{tpu_custom_call.1} parent=5 // pred_region
      // Predicated region
      $region41: #{tpu_custom_call.1} parent=39 // pred_check
        %p232 = pneg %p37
      $region42: #{tpu_custom_call.1} parent=39 // pred_check_branch
        %234 = sbr.rel (%p232) target = $region44
      $region43: #{tpu_custom_call.1} parent=39 // pred_region
        %s235 = smul.u32 16, %s17
        %p236 = scmp.lt.s32.totalorder %s235, 31
        %s237 = scalar_select %p236, %s235, 31
        %s238 = smul.addr %s237, 3
        %s239 = smul.addr %s238, 8
        %s240 = scalar_lea.vmem %s1, %s239
        %s241 = smul.u32 16, %s17
      $region44: #{tpu_custom_call.1} parent=39 // pred_fallthru
        _
    $region40: #{tpu_custom_call.1} parent=5 // pred_fallthru
      _
    %p242 = scmp.le.s32.totalorder 1, %s17
    %p243 = scmp.lt.s32.totalorder %s17, 3
    %p244 = pnand %p242, %p243
    %p245 = pneg %p244
    // Predicated region
    $region45: #{tpu_custom_call.1} parent=5 // pred_check
      _
    $region46: #{tpu_custom_call.1} parent=5 // pred_check_branch
      %247 = sbr.rel (%p244) target = $region48
    $region47: #{tpu_custom_call.1} parent=5 // pred_region
      %s248 = ssub.s32 %s17, 1
      %s249 = smul.u32 16, %s22
      %p250 = scmp.lt.s32.totalorder %s249, 31
      %s251 = scalar_select %p250, %s249, 31
      %s252 = smul.addr %s251, 3
      %s253 = smul.addr %s252, 8
      %s254 = scalar_lea.vmem %s1, %s253
      %p255 = pneg %p43
      %p256 = pneg %p40
      %p257 = pneg %p64
      %p258 = pneg %p61
      %p259 = pneg %p85
      %p260 = pneg %p82
      %p261 = pneg %p106
      %p262 = pneg %p103
      %p263 = pneg %p127
      %p264 = pneg %p124
      %p265 = pneg %p148
      %p266 = pneg %p145
      %p267 = pneg %p169
      %p268 = pneg %p166
      %p269 = pneg %p195
      %p270 = pneg %p192
      %s271 = smul.u32 16, %s22
      %p272 = scmp.lt.s32.totalorder %s271, 31
      %s273 = scalar_select %p272, %s271, 31
      %s274 = smul.addr %s273, 8
      %s275 = scalar_lea.vmem %s8, %s274
      %s276 = smul.u32 16, %s22
      %p277 = scmp.lt.s32.totalorder %s276, 31
      %s278 = scalar_select %p277, %s276, 31
      %s279 = smul.addr %s278, 3
      %s280 = smul.addr %s279, 8
      %s281 = scalar_lea.vmem %s1, %s280
      %s282 = smul.u32 16, %s22
      %s283 = smul.u32 16, %s22
      %p284 = scmp.lt.s32.totalorder %s283, 31
      %s285 = scalar_select %p284, %s283, 31
      %s286 = smul.addr %s285, 8
      %s287 = scalar_lea.vmem %s8, %s286
      %s288 = smul.u32 16, %s22
      %s289 = sld [smem:[#allocation3]]
      %s290 = smul.u32 %s22, 128
      %v291 = vld [vmem:[%s281] sm:$0xff]
      %v292 = vld [vmem:[%s281 + $0x8] sm:$0xff]
      %v293 = vld [vmem:[%s281 + $0x10] sm:$0xff]
      %v294 = vld [vmem:[%s281 + $0x18] sm:$0xff]
      %v295 = vld [vmem:[%s281 + $0x20] sm:$0xff]
      %v296 = vld [vmem:[%s281 + $0x28] sm:$0xff]
      %v297 = vld [vmem:[%s281 + $0x30] sm:$0xff]
      %v298 = vld [vmem:[%s281 + $0x38] sm:$0xff]
      %v299 = vld [vmem:[%s281 + $0x40] sm:$0xff]
      %v300 = vld [vmem:[%s281 + $0x48] sm:$0xff]
      %v301 = vld [vmem:[%s281 + $0x50] sm:$0xff]
      %v302 = vld [vmem:[%s281 + $0x58] sm:$0xff]
      %v303 = vld [vmem:[%s281 + $0x60] sm:$0xff]
      %v304 = vld [vmem:[%s281 + $0x68] sm:$0xff]
      %v305 = vld [vmem:[%s281 + $0x70] sm:$0xff]
      %v306 = vld [vmem:[%s281 + $0x78] sm:$0xff]
      %v307 = vld [vmem:[%s281 + $0x80] sm:$0xff]
      %v308 = vld [vmem:[%s281 + $0x88] sm:$0xff]
      %v309 = vld [vmem:[%s281 + $0x90] sm:$0xff]
      %v310 = vld [vmem:[%s281 + $0x98] sm:$0xff]
      %v311 = vld [vmem:[%s281 + $0xa0] sm:$0xff]
      %v312 = vld [vmem:[%s281 + $0xa8] sm:$0xff]
      %v313 = vld [vmem:[%s281 + $0xb0] sm:$0xff]
      %v314 = vld [vmem:[%s281 + $0xb8] sm:$0xff]
      %v315 = vld [vmem:[%s281 + $0xc0] sm:$0xff]
      %v316 = vld [vmem:[%s281 + $0xc8] sm:$0xff]
      %v317 = vld [vmem:[%s281 + $0xd0] sm:$0xff]
      %v318 = vld [vmem:[%s281 + $0xd8] sm:$0xff]
      %v319 = vld [vmem:[%s281 + $0xe0] sm:$0xff]
      %v320 = vld [vmem:[%s281 + $0xe8] sm:$0xff]
      %v321 = vld [vmem:[%s281 + $0xf0] sm:$0xff]
      %v322 = vld [vmem:[%s281 + $0xf8] sm:$0xff]
      %v323 = vld [vmem:[%s281 + $0x100] sm:$0xff]
      %v324 = vld [vmem:[%s281 + $0x108] sm:$0xff]
      %v325 = vld [vmem:[%s281 + $0x110] sm:$0xff]
      %v326 = vld [vmem:[%s281 + $0x118] sm:$0xff]
      %v327 = vld [vmem:[%s281 + $0x120] sm:$0xff]
      %v328 = vld [vmem:[%s281 + $0x128] sm:$0xff]
      %v329 = vld [vmem:[%s281 + $0x130] sm:$0xff]
      %v330 = vld [vmem:[%s281 + $0x138] sm:$0xff]
      %v331 = vld [vmem:[%s281 + $0x140] sm:$0xff]
      %v332 = vld [vmem:[%s281 + $0x148] sm:$0xff]
      %v333 = vld [vmem:[%s281 + $0x150] sm:$0xff]
      %v334 = vld [vmem:[%s281 + $0x158] sm:$0xff]
      %v335 = vld [vmem:[%s281 + $0x160] sm:$0xff]
      %v336 = vld [vmem:[%s281 + $0x168] sm:$0xff]
      %v337 = vld [vmem:[%s281 + $0x170] sm:$0xff]
      %v338 = vld [vmem:[%s281 + $0x178] sm:$0xff]
      %v339 = vld [vmem:[%s2] sm:$0xff]
      %v340 = vld [vmem:[%s2 + $0x8] sm:$0xff]
      %v341 = vld [vmem:[%s2 + $0x10] sm:$0xff]
      %v342 = vld [vmem:[%s2 + $0x18] sm:$0xff]
      %v343 = vld [vmem:[%s2 + $0x20] sm:$0xff]
      %v344 = vld [vmem:[%s2 + $0x28] sm:$0xff]
      %v345 = vld [vmem:[%s2 + $0x30] sm:$0xff]
      %v346 = vld [vmem:[%s2 + $0x38] sm:$0xff]
      %v347 = vld [vmem:[%s2 + $0x40] sm:$0xff]
      %v348 = vld [vmem:[%s2 + $0x48] sm:$0xff]
      %v349 = vld [vmem:[%s2 + $0x50] sm:$0xff]
      %v350 = vld [vmem:[%s2 + $0x58] sm:$0xff]
      %v351 = vld [vmem:[%s2 + $0x60] sm:$0xff]
      %v352 = vld [vmem:[%s2 + $0x68] sm:$0xff]
      %v353 = vld [vmem:[%s2 + $0x70] sm:$0xff]
      %v354 = vld [vmem:[%s2 + $0x78] sm:$0xff]
      %v355 = vld [vmem:[%s2 + $0x80] sm:$0xff]
      %v356 = vld [vmem:[%s2 + $0x88] sm:$0xff]
      %v357 = vld [vmem:[%s2 + $0x90] sm:$0xff]
      %v358 = vld [vmem:[%s2 + $0x98] sm:$0xff]
      %v359 = vld [vmem:[%s2 + $0xa0] sm:$0xff]
      %v360 = vld [vmem:[%s2 + $0xa8] sm:$0xff]
      %v361 = vld [vmem:[%s2 + $0xb0] sm:$0xff]
      %v362 = vld [vmem:[%s2 + $0xb8] sm:$0xff]
      %v363 = vld [vmem:[%s2 + $0xc0] sm:$0xff]
      %v364 = vld [vmem:[%s2 + $0xc8] sm:$0xff]
      %v365 = vld [vmem:[%s2 + $0xd0] sm:$0xff]
      %v366 = vld [vmem:[%s2 + $0xd8] sm:$0xff]
      %v367 = vld [vmem:[%s2 + $0xe0] sm:$0xff]
      %v368 = vld [vmem:[%s2 + $0xe8] sm:$0xff]
      %v369 = vld [vmem:[%s2 + $0xf0] sm:$0xff]
      %v370 = vld [vmem:[%s2 + $0xf8] sm:$0xff]
      %v371 = vld [vmem:[%s2 + $0x100] sm:$0xff]
      %v372 = vld [vmem:[%s2 + $0x108] sm:$0xff]
      %v373 = vld [vmem:[%s2 + $0x110] sm:$0xff]
      %v374 = vld [vmem:[%s2 + $0x118] sm:$0xff]
      %v375 = vld [vmem:[%s2 + $0x120] sm:$0xff]
      %v376 = vld [vmem:[%s2 + $0x128] sm:$0xff]
      %v377 = vld [vmem:[%s2 + $0x130] sm:$0xff]
      %v378 = vld [vmem:[%s2 + $0x138] sm:$0xff]
      %v379 = vld [vmem:[%s2 + $0x140] sm:$0xff]
      %v380 = vld [vmem:[%s2 + $0x148] sm:$0xff]
      %v381 = vld [vmem:[%s2 + $0x150] sm:$0xff]
      %v382 = vld [vmem:[%s2 + $0x158] sm:$0xff]
      %v383 = vld [vmem:[%s2 + $0x160] sm:$0xff]
      %v384 = vld [vmem:[%s2 + $0x168] sm:$0xff]
      %v385 = vld [vmem:[%s2 + $0x170] sm:$0xff]
      %v386 = vld [vmem:[%s2 + $0x178] sm:$0xff]
      %v387 = vld [vmem:[%s2 + $0x180] sm:$0xff]
      %v388 = vld [vmem:[%s2 + $0x188] sm:$0xff]
      %v389 = vld [vmem:[%s2 + $0x190] sm:$0xff]
      %v390 = vld [vmem:[%s2 + $0x198] sm:$0xff]
      %v391 = vld [vmem:[%s2 + $0x1a0] sm:$0xff]
      %v392 = vld [vmem:[%s2 + $0x1a8] sm:$0xff]
      %v393 = vld [vmem:[%s2 + $0x1b0] sm:$0xff]
      %v394 = vld [vmem:[%s2 + $0x1b8] sm:$0xff]
      %v395 = vld [vmem:[%s2 + $0x1c0] sm:$0xff]
      %v396 = vld [vmem:[%s2 + $0x1c8] sm:$0xff]
      %v397 = vld [vmem:[%s2 + $0x1d0] sm:$0xff]
      %v398 = vld [vmem:[%s2 + $0x1d8] sm:$0xff]
      %v399 = vld [vmem:[%s2 + $0x1e0] sm:$0xff]
      %v400 = vld [vmem:[%s2 + $0x1e8] sm:$0xff]
      %v401 = vld [vmem:[%s2 + $0x1f0] sm:$0xff]
      %v402 = vld [vmem:[%s2 + $0x1f8] sm:$0xff]
      %v403 = vld [vmem:[%s2 + $0x200] sm:$0xff]
      %v404 = vld [vmem:[%s2 + $0x208] sm:$0xff]
      %v405 = vld [vmem:[%s2 + $0x210] sm:$0xff]
      %v406 = vld [vmem:[%s2 + $0x218] sm:$0xff]
      %v407 = vld [vmem:[%s2 + $0x220] sm:$0xff]
      %v408 = vld [vmem:[%s2 + $0x228] sm:$0xff]
      %v409 = vld [vmem:[%s2 + $0x230] sm:$0xff]
      %v410 = vld [vmem:[%s2 + $0x238] sm:$0xff]
      %v411 = vld [vmem:[%s2 + $0x240] sm:$0xff]
      %v412 = vld [vmem:[%s2 + $0x248] sm:$0xff]
      %v413 = vld [vmem:[%s2 + $0x250] sm:$0xff]
      %v414 = vld [vmem:[%s2 + $0x258] sm:$0xff]
      %v415 = vld [vmem:[%s2 + $0x260] sm:$0xff]
      %v416 = vld [vmem:[%s2 + $0x268] sm:$0xff]
      %v417 = vld [vmem:[%s2 + $0x270] sm:$0xff]
      %v418 = vld [vmem:[%s2 + $0x278] sm:$0xff]
      %v419 = vld [vmem:[%s2 + $0x280] sm:$0xff]
      %v420 = vld [vmem:[%s2 + $0x288] sm:$0xff]
      %v421 = vld [vmem:[%s2 + $0x290] sm:$0xff]
      %v422 = vld [vmem:[%s2 + $0x298] sm:$0xff]
      %v423 = vld [vmem:[%s2 + $0x2a0] sm:$0xff]
      %v424 = vld [vmem:[%s2 + $0x2a8] sm:$0xff]
      %v425 = vld [vmem:[%s2 + $0x2b0] sm:$0xff]
      %v426 = vld [vmem:[%s2 + $0x2b8] sm:$0xff]
      %v427 = vld [vmem:[%s2 + $0x2c0] sm:$0xff]
      %v428 = vld [vmem:[%s2 + $0x2c8] sm:$0xff]
      %v429 = vld [vmem:[%s2 + $0x2d0] sm:$0x1f]
      %v430 = vld [vmem:[%s2 + $0x2d8] sm:$0x1f]
      %v431 = vld [vmem:[%s3] sm:$0x3]
      %v433 = vperm.slane %v431, 0
      %v434 = vperm.slane %v431, 1
      %vm437 = vcmask 891904
      %v439 = vsel %vm437, %v293, 0
      %v442 = vsel %vm437, %v296, 0
      %v445 = vsel %vm437, %v299, 0
      %v448 = vsel %vm437, %v302, 0
      %v451 = vsel %vm437, %v305, 0
      %v454 = vsel %vm437, %v308, 0
      %v457 = vsel %vm437, %v311, 0
      %v460 = vsel %vm437, %v314, 0
      %v463 = vsel %vm437, %v317, 0
      %v466 = vsel %vm437, %v320, 0
      %v469 = vsel %vm437, %v323, 0
      %v472 = vsel %vm437, %v326, 0
      %v475 = vsel %vm437, %v329, 0
      %v478 = vsel %vm437, %v332, 0
      %v481 = vsel %vm437, %v335, 0
      %v484 = vsel %vm437, %v338, 0
      %vm486 = vcmask 1044480
      %v488 = vsel %vm486, %v429, 0
      %v491 = vsel %vm486, %v430, 0
      %493 = vmatpush.msra.mxu0 %v369
      %494 = vmatpush.msra.mxu0 %v367
      %495 = vmatpush.msra.mxu0 %v365
      %496 = vmatpush.msra.mxu0 %v363
      %497 = vmatpush.msra.mxu0 %v361
      %498 = vmatpush.msra.mxu0 %v359
      %499 = vmatpush.msra.mxu0 %v357
      %500 = vmatpush.msra.mxu0 %v355
      %501 = vmatpush.msra.mxu0 %v353
      %502 = vmatpush.msra.mxu0 %v351
      %503 = vmatpush.msra.mxu0 %v349
      %504 = vmatpush.msra.mxu0 %v347
      %505 = vmatpush.msra.mxu0 %v345
      %506 = vmatpush.msra.mxu0 %v343
      %507 = vmatpush.msra.mxu0 %v341
      %508 = vmatpush.msra.mxu0 %v339
      %509 = vmatmul.f32.gmra.mxu0 %v291
      %v510 = vpop.f32.mrf.mxu0
      %v511 = vadd.f32 %v433, %v510
      %512 = vmatmul.f32.gmra.mxu0 %v294
      %v513 = vpop.f32.mrf.mxu0
      %v514 = vadd.f32 %v433, %v513
      %515 = vmatmul.f32.gmra.mxu0 %v297
      %v516 = vpop.f32.mrf.mxu0
      %v517 = vadd.f32 %v433, %v516
      %518 = vmatmul.f32.gmra.mxu0 %v300
      %v519 = vpop.f32.mrf.mxu0
      %v520 = vadd.f32 %v433, %v519
      %521 = vmatmul.f32.gmra.mxu0 %v303
      %v522 = vpop.f32.mrf.mxu0
      %v523 = vadd.f32 %v433, %v522
      %524 = vmatmul.f32.gmra.mxu0 %v306
      %v525 = vpop.f32.mrf.mxu0
      %v526 = vadd.f32 %v433, %v525
      %527 = vmatmul.f32.gmra.mxu0 %v309
      %v528 = vpop.f32.mrf.mxu0
      %v529 = vadd.f32 %v433, %v528
      %530 = vmatmul.f32.gmra.mxu0 %v312
      %v531 = vpop.f32.mrf.mxu0
      %v532 = vadd.f32 %v433, %v531
      %533 = vmatmul.f32.gmra.mxu0 %v315
      %v534 = vpop.f32.mrf.mxu0
      %v535 = vadd.f32 %v433, %v534
      %536 = vmatmul.f32.gmra.mxu0 %v318
      %v537 = vpop.f32.mrf.mxu0
      %v538 = vadd.f32 %v433, %v537
      %539 = vmatmul.f32.gmra.mxu0 %v321
      %v540 = vpop.f32.mrf.mxu0
      %v541 = vadd.f32 %v433, %v540
      %542 = vmatmul.f32.gmra.mxu0 %v324
      %v543 = vpop.f32.mrf.mxu0
      %v544 = vadd.f32 %v433, %v543
      %545 = vmatmul.f32.gmra.mxu0 %v327
      %v546 = vpop.f32.mrf.mxu0
      %v547 = vadd.f32 %v433, %v546
      %548 = vmatmul.f32.gmra.mxu0 %v330
      %v549 = vpop.f32.mrf.mxu0
      %v550 = vadd.f32 %v433, %v549
      %551 = vmatmul.f32.gmra.mxu0 %v333
      %v552 = vpop.f32.mrf.mxu0
      %v553 = vadd.f32 %v433, %v552
      %554 = vmatmul.f32.gmra.mxu0 %v336
      %v555 = vpop.f32.mrf.mxu0
      %v556 = vadd.f32 %v433, %v555
      %557 = vdwg.mxu0
      %558 = vmatpush.msra.mxu0 %v401
      %559 = vmatpush.msra.mxu0 %v399
      %560 = vmatpush.msra.mxu0 %v397
      %561 = vmatpush.msra.mxu0 %v395
      %562 = vmatpush.msra.mxu0 %v393
      %563 = vmatpush.msra.mxu0 %v391
      %564 = vmatpush.msra.mxu0 %v389
      %565 = vmatpush.msra.mxu0 %v387
      %566 = vmatpush.msra.mxu0 %v385
      %567 = vmatpush.msra.mxu0 %v383
      %568 = vmatpush.msra.mxu0 %v381
      %569 = vmatpush.msra.mxu0 %v379
      %570 = vmatpush.msra.mxu0 %v377
      %571 = vmatpush.msra.mxu0 %v375
      %572 = vmatpush.msra.mxu0 %v373
      %573 = vmatpush.msra.mxu0 %v371
      %574 = vmatmul.f32.gmra.mxu0 %v292
      %v575 = vpop.f32.mrf.mxu0
      %v576 = vadd.f32 %v511, %v575
      %577 = vmatmul.f32.gmra.mxu0 %v295
      %v578 = vpop.f32.mrf.mxu0
      %v579 = vadd.f32 %v514, %v578
      %580 = vmatmul.f32.gmra.mxu0 %v298
      %v581 = vpop.f32.mrf.mxu0
      %v582 = vadd.f32 %v517, %v581
      %583 = vmatmul.f32.gmra.mxu0 %v301
      %v584 = vpop.f32.mrf.mxu0
      %v585 = vadd.f32 %v520, %v584
      %586 = vmatmul.f32.gmra.mxu0 %v304
      %v587 = vpop.f32.mrf.mxu0
      %v588 = vadd.f32 %v523, %v587
      %589 = vmatmul.f32.gmra.mxu0 %v307
      %v590 = vpop.f32.mrf.mxu0
      %v591 = vadd.f32 %v526, %v590
      %592 = vmatmul.f32.gmra.mxu0 %v310
      %v593 = vpop.f32.mrf.mxu0
      %v594 = vadd.f32 %v529, %v593
      %595 = vmatmul.f32.gmra.mxu0 %v313
      %v596 = vpop.f32.mrf.mxu0
      %v597 = vadd.f32 %v532, %v596
      %598 = vmatmul.f32.gmra.mxu0 %v316
      %v599 = vpop.f32.mrf.mxu0
      %v600 = vadd.f32 %v535, %v599
      %601 = vmatmul.f32.gmra.mxu0 %v319
      %v602 = vpop.f32.mrf.mxu0
      %v603 = vadd.f32 %v538, %v602
      %604 = vmatmul.f32.gmra.mxu0 %v322
      %v605 = vpop.f32.mrf.mxu0
      %v606 = vadd.f32 %v541, %v605
      %607 = vmatmul.f32.gmra.mxu0 %v325
      %v608 = vpop.f32.mrf.mxu0
      %v609 = vadd.f32 %v544, %v608
      %610 = vmatmul.f32.gmra.mxu0 %v328
      %v611 = vpop.f32.mrf.mxu0
      %v612 = vadd.f32 %v547, %v611
      %613 = vmatmul.f32.gmra.mxu0 %v331
      %v614 = vpop.f32.mrf.mxu0
      %v615 = vadd.f32 %v550, %v614
      %616 = vmatmul.f32.gmra.mxu0 %v334
      %v617 = vpop.f32.mrf.mxu0
      %v618 = vadd.f32 %v553, %v617
      %619 = vmatmul.f32.gmra.mxu0 %v337
      %v620 = vpop.f32.mrf.mxu0
      %v621 = vadd.f32 %v556, %v620
      %622 = vdwg.mxu0
      %623 = vmatpush.msra.mxu0 0.0
      %624 = vmatpush.msra.mxu0 0.0
      %625 = vmatpush.msra.mxu0 %v488
      %626 = vmatpush.msra.mxu0 %v427
      %627 = vmatpush.msra.mxu0 %v425
      %628 = vmatpush.msra.mxu0 %v423
      %629 = vmatpush.msra.mxu0 %v421
      %630 = vmatpush.msra.mxu0 %v419
      %631 = vmatpush.msra.mxu0 %v417
      %632 = vmatpush.msra.mxu0 %v415
      %633 = vmatpush.msra.mxu0 %v413
      %634 = vmatpush.msra.mxu0 %v411
      %635 = vmatpush.msra.mxu0 %v409
      %636 = vmatpush.msra.mxu0 %v407
      %637 = vmatpush.msra.mxu0 %v405
      %638 = vmatpush.msra.mxu0 %v403
      %639 = vmatmul.f32.gmra.mxu0 %v439
      %v640 = vpop.f32.mrf.mxu0
      %v641 = vadd.f32 %v576, %v640
      %642 = vmatmul.f32.gmra.mxu0 %v442
      %v643 = vpop.f32.mrf.mxu0
      %v644 = vadd.f32 %v579, %v643
      %645 = vmatmul.f32.gmra.mxu0 %v445
      %v646 = vpop.f32.mrf.mxu0
      %v647 = vadd.f32 %v582, %v646
      %648 = vmatmul.f32.gmra.mxu0 %v448
      %v649 = vpop.f32.mrf.mxu0
      %v650 = vadd.f32 %v585, %v649
      %651 = vmatmul.f32.gmra.mxu0 %v451
      %v652 = vpop.f32.mrf.mxu0
      %v653 = vadd.f32 %v588, %v652
      %654 = vmatmul.f32.gmra.mxu0 %v454
      %v655 = vpop.f32.mrf.mxu0
      %v656 = vadd.f32 %v591, %v655
      %657 = vmatmul.f32.gmra.mxu0 %v457
      %v658 = vpop.f32.mrf.mxu0
      %v659 = vadd.f32 %v594, %v658
      %660 = vmatmul.f32.gmra.mxu0 %v460
      %v661 = vpop.f32.mrf.mxu0
      %v662 = vadd.f32 %v597, %v661
      %663 = vmatmul.f32.gmra.mxu0 %v463
      %v664 = vpop.f32.mrf.mxu0
      %v665 = vadd.f32 %v600, %v664
      %666 = vmatmul.f32.gmra.mxu0 %v466
      %v667 = vpop.f32.mrf.mxu0
      %v668 = vadd.f32 %v603, %v667
      %669 = vmatmul.f32.gmra.mxu0 %v469
      %v670 = vpop.f32.mrf.mxu0
      %v671 = vadd.f32 %v606, %v670
      %672 = vmatmul.f32.gmra.mxu0 %v472
      %v673 = vpop.f32.mrf.mxu0
      %v674 = vadd.f32 %v609, %v673
      %675 = vmatmul.f32.gmra.mxu0 %v475
      %v676 = vpop.f32.mrf.mxu0
      %v677 = vadd.f32 %v612, %v676
      %678 = vmatmul.f32.gmra.mxu0 %v478
      %v679 = vpop.f32.mrf.mxu0
      %v680 = vadd.f32 %v615, %v679
      %681 = vmatmul.f32.gmra.mxu0 %v481
      %v682 = vpop.f32.mrf.mxu0
      %v683 = vadd.f32 %v618, %v682
      %684 = vmatmul.f32.gmra.mxu0 %v484
      %v685 = vpop.f32.mrf.mxu0
      %v686 = vadd.f32 %v621, %v685
      %687 = vdwg.mxu0
      %688 = vmatpush.msra.mxu0 %v370
      %689 = vmatpush.msra.mxu0 %v368
      %690 = vmatpush.msra.mxu0 %v366
      %691 = vmatpush.msra.mxu0 %v364
      %692 = vmatpush.msra.mxu0 %v362
      %693 = vmatpush.msra.mxu0 %v360
      %694 = vmatpush.msra.mxu0 %v358
      %695 = vmatpush.msra.mxu0 %v356
      %696 = vmatpush.msra.mxu0 %v354
      %697 = vmatpush.msra.mxu0 %v352
      %698 = vmatpush.msra.mxu0 %v350
      %699 = vmatpush.msra.mxu0 %v348
      %700 = vmatpush.msra.mxu0 %v346
      %701 = vmatpush.msra.mxu0 %v344
      %702 = vmatpush.msra.mxu0 %v342
      %703 = vmatpush.msra.mxu0 %v340
      %704 = vmatmul.f32.gmra.mxu0 %v291
      %v705 = vpop.f32.mrf.mxu0
      %v706 = vadd.f32 %v434, %v705
      %707 = vmatmul.f32.gmra.mxu0 %v294
      %v708 = vpop.f32.mrf.mxu0
      %v709 = vadd.f32 %v434, %v708
      %710 = vmatmul.f32.gmra.mxu0 %v297
      %v711 = vpop.f32.mrf.mxu0
      %v712 = vadd.f32 %v434, %v711
      %713 = vmatmul.f32.gmra.mxu0 %v300
      %v714 = vpop.f32.mrf.mxu0
      %v715 = vadd.f32 %v434, %v714
      %716 = vmatmul.f32.gmra.mxu0 %v303
      %v717 = vpop.f32.mrf.mxu0
      %v718 = vadd.f32 %v434, %v717
      %719 = vmatmul.f32.gmra.mxu0 %v306
      %v720 = vpop.f32.mrf.mxu0
      %v721 = vadd.f32 %v434, %v720
      %722 = vmatmul.f32.gmra.mxu0 %v309
      %v723 = vpop.f32.mrf.mxu0
      %v724 = vadd.f32 %v434, %v723
      %725 = vmatmul.f32.gmra.mxu0 %v312
      %v726 = vpop.f32.mrf.mxu0
      %v727 = vadd.f32 %v434, %v726
      %728 = vmatmul.f32.gmra.mxu0 %v315
      %v729 = vpop.f32.mrf.mxu0
      %v730 = vadd.f32 %v434, %v729
      %731 = vmatmul.f32.gmra.mxu0 %v318
      %v732 = vpop.f32.mrf.mxu0
      %v733 = vadd.f32 %v434, %v732
      %734 = vmatmul.f32.gmra.mxu0 %v321
      %v735 = vpop.f32.mrf.mxu0
      %v736 = vadd.f32 %v434, %v735
      %737 = vmatmul.f32.gmra.mxu0 %v324
      %v738 = vpop.f32.mrf.mxu0
      %v739 = vadd.f32 %v434, %v738
      %740 = vmatmul.f32.gmra.mxu0 %v327
      %v741 = vpop.f32.mrf.mxu0
      %v742 = vadd.f32 %v434, %v741
      %743 = vmatmul.f32.gmra.mxu0 %v330
      %v744 = vpop.f32.mrf.mxu0
      %v745 = vadd.f32 %v434, %v744
      %746 = vmatmul.f32.gmra.mxu0 %v333
      %v747 = vpop.f32.mrf.mxu0
      %v748 = vadd.f32 %v434, %v747
      %749 = vmatmul.f32.gmra.mxu0 %v336
      %v750 = vpop.f32.mrf.mxu0
      %v751 = vadd.f32 %v434, %v750
      %752 = vdwg.mxu0
      %753 = vmatpush.msra.mxu0 %v402
      %754 = vmatpush.msra.mxu0 %v400
      %755 = vmatpush.msra.mxu0 %v398
      %756 = vmatpush.msra.mxu0 %v396
      %757 = vmatpush.msra.mxu0 %v394
      %758 = vmatpush.msra.mxu0 %v392
      %759 = vmatpush.msra.mxu0 %v390
      %760 = vmatpush.msra.mxu0 %v388
      %761 = vmatpush.msra.mxu0 %v386
      %762 = vmatpush.msra.mxu0 %v384
      %763 = vmatpush.msra.mxu0 %v382
      %764 = vmatpush.msra.mxu0 %v380
      %765 = vmatpush.msra.mxu0 %v378
      %766 = vmatpush.msra.mxu0 %v376
      %767 = vmatpush.msra.mxu0 %v374
      %768 = vmatpush.msra.mxu0 %v372
      %769 = vmatmul.f32.gmra.mxu0 %v292
      %v770 = vpop.f32.mrf.mxu0
      %v771 = vadd.f32 %v706, %v770
      %772 = vmatmul.f32.gmra.mxu0 %v295
      %v773 = vpop.f32.mrf.mxu0
      %v774 = vadd.f32 %v709, %v773
      %775 = vmatmul.f32.gmra.mxu0 %v298
      %v776 = vpop.f32.mrf.mxu0
      %v777 = vadd.f32 %v712, %v776
      %778 = vmatmul.f32.gmra.mxu0 %v301
      %v779 = vpop.f32.mrf.mxu0
      %v780 = vadd.f32 %v715, %v779
      %781 = vmatmul.f32.gmra.mxu0 %v304
      %v782 = vpop.f32.mrf.mxu0
      %v783 = vadd.f32 %v718, %v782
      %784 = vmatmul.f32.gmra.mxu0 %v307
      %v785 = vpop.f32.mrf.mxu0
      %v786 = vadd.f32 %v721, %v785
      %787 = vmatmul.f32.gmra.mxu0 %v310
      %v788 = vpop.f32.mrf.mxu0
      %v789 = vadd.f32 %v724, %v788
      %790 = vmatmul.f32.gmra.mxu0 %v313
      %v791 = vpop.f32.mrf.mxu0
      %v792 = vadd.f32 %v727, %v791
      %793 = vmatmul.f32.gmra.mxu0 %v316
      %v794 = vpop.f32.mrf.mxu0
      %v795 = vadd.f32 %v730, %v794
      %796 = vmatmul.f32.gmra.mxu0 %v319
      %v797 = vpop.f32.mrf.mxu0
      %v798 = vadd.f32 %v733, %v797
      %799 = vmatmul.f32.gmra.mxu0 %v322
      %v800 = vpop.f32.mrf.mxu0
      %v801 = vadd.f32 %v736, %v800
      %802 = vmatmul.f32.gmra.mxu0 %v325
      %v803 = vpop.f32.mrf.mxu0
      %v804 = vadd.f32 %v739, %v803
      %805 = vmatmul.f32.gmra.mxu0 %v328
      %v806 = vpop.f32.mrf.mxu0
      %v807 = vadd.f32 %v742, %v806
      %808 = vmatmul.f32.gmra.mxu0 %v331
      %v809 = vpop.f32.mrf.mxu0
      %v810 = vadd.f32 %v745, %v809
      %811 = vmatmul.f32.gmra.mxu0 %v334
      %v812 = vpop.f32.mrf.mxu0
      %v813 = vadd.f32 %v748, %v812
      %814 = vmatmul.f32.gmra.mxu0 %v337
      %v815 = vpop.f32.mrf.mxu0
      %v816 = vadd.f32 %v751, %v815
      %817 = vdwg.mxu0
      %818 = vmatpush.msra.mxu0 0.0
      %819 = vmatpush.msra.mxu0 0.0
      %820 = vmatpush.msra.mxu0 %v491
      %821 = vmatpush.msra.mxu0 %v428
      %822 = vmatpush.msra.mxu0 %v426
      %823 = vmatpush.msra.mxu0 %v424
      %824 = vmatpush.msra.mxu0 %v422
      %825 = vmatpush.msra.mxu0 %v420
      %826 = vmatpush.msra.mxu0 %v418
      %827 = vmatpush.msra.mxu0 %v416
      %828 = vmatpush.msra.mxu0 %v414
      %829 = vmatpush.msra.mxu0 %v412
      %830 = vmatpush.msra.mxu0 %v410
      %831 = vmatpush.msra.mxu0 %v408
      %832 = vmatpush.msra.mxu0 %v406
      %833 = vmatpush.msra.mxu0 %v404
      %834 = vmatmul.f32.gmra.mxu0 %v439
      %v835 = vpop.f32.mrf.mxu0
      %v836 = vadd.f32 %v771, %v835
      %837 = vmatmul.f32.gmra.mxu0 %v442
      %v838 = vpop.f32.mrf.mxu0
      %v839 = vadd.f32 %v774, %v838
      %840 = vmatmul.f32.gmra.mxu0 %v445
      %v841 = vpop.f32.mrf.mxu0
      %v842 = vadd.f32 %v777, %v841
      %843 = vmatmul.f32.gmra.mxu0 %v448
      %v844 = vpop.f32.mrf.mxu0
      %v845 = vadd.f32 %v780, %v844
      %846 = vmatmul.f32.gmra.mxu0 %v451
      %v847 = vpop.f32.mrf.mxu0
      %v848 = vadd.f32 %v783, %v847
      %849 = vmatmul.f32.gmra.mxu0 %v454
      %v850 = vpop.f32.mrf.mxu0
      %v851 = vadd.f32 %v786, %v850
      %852 = vmatmul.f32.gmra.mxu0 %v457
      %v853 = vpop.f32.mrf.mxu0
      %v854 = vadd.f32 %v789, %v853
      %855 = vmatmul.f32.gmra.mxu0 %v460
      %v856 = vpop.f32.mrf.mxu0
      %v857 = vadd.f32 %v792, %v856
      %858 = vmatmul.f32.gmra.mxu0 %v463
      %v859 = vpop.f32.mrf.mxu0
      %v860 = vadd.f32 %v795, %v859
      %861 = vmatmul.f32.gmra.mxu0 %v466
      %v862 = vpop.f32.mrf.mxu0
      %v863 = vadd.f32 %v798, %v862
      %864 = vmatmul.f32.gmra.mxu0 %v469
      %v865 = vpop.f32.mrf.mxu0
      %v866 = vadd.f32 %v801, %v865
      %867 = vmatmul.f32.gmra.mxu0 %v472
      %v868 = vpop.f32.mrf.mxu0
      %v869 = vadd.f32 %v804, %v868
      %870 = vmatmul.f32.gmra.mxu0 %v475
      %v871 = vpop.f32.mrf.mxu0
      %v872 = vadd.f32 %v807, %v871
      %873 = vmatmul.f32.gmra.mxu0 %v478
      %v874 = vpop.f32.mrf.mxu0
      %v875 = vadd.f32 %v810, %v874
      %876 = vmatmul.f32.gmra.mxu0 %v481
      %v877 = vpop.f32.mrf.mxu0
      %v878 = vadd.f32 %v813, %v877
      %879 = vmatmul.f32.gmra.mxu0 %v484
      %v880 = vpop.f32.mrf.mxu0
      %v881 = vadd.f32 %v816, %v880
      %882 = vdwg.mxu0
      %v883 = vxor.u32 %v641, 2147483648
      %v884 = vxor.u32 %v836, 2147483648
      %v885 = vxor.u32 %v644, 2147483648
      %v886 = vxor.u32 %v839, 2147483648
      %v887 = vxor.u32 %v647, 2147483648
      %v888 = vxor.u32 %v842, 2147483648
      %v889 = vxor.u32 %v650, 2147483648
      %v890 = vxor.u32 %v845, 2147483648
      %v891 = vxor.u32 %v653, 2147483648
      %v892 = vxor.u32 %v848, 2147483648
      %v893 = vxor.u32 %v656, 2147483648
      %v894 = vxor.u32 %v851, 2147483648
      %v895 = vxor.u32 %v659, 2147483648
      %v896 = vxor.u32 %v854, 2147483648
      %v897 = vxor.u32 %v662, 2147483648
      %v898 = vxor.u32 %v857, 2147483648
      %v899 = vxor.u32 %v665, 2147483648
      %v900 = vxor.u32 %v860, 2147483648
      %v901 = vxor.u32 %v668, 2147483648
      %v902 = vxor.u32 %v863, 2147483648
      %v903 = vxor.u32 %v671, 2147483648
      %v904 = vxor.u32 %v866, 2147483648
      %v905 = vxor.u32 %v674, 2147483648
      %v906 = vxor.u32 %v869, 2147483648
      %v907 = vxor.u32 %v677, 2147483648
      %v908 = vxor.u32 %v872, 2147483648
      %v909 = vxor.u32 %v680, 2147483648
      %v910 = vxor.u32 %v875, 2147483648
      %v911 = vxor.u32 %v683, 2147483648
      %v912 = vxor.u32 %v878, 2147483648
      %v913 = vxor.u32 %v686, 2147483648
      %v914 = vxor.u32 %v881, 2147483648
      %v915 = vmul.f32 %v883, 1.442695
      %v916 = vpow.pop %v915
      %v917 = vmul.f32 %v884, 1.442695
      %v918 = vpow.pop %v917
      %v919 = vmul.f32 %v885, 1.442695
      %v920 = vpow.pop %v919
      %v921 = vmul.f32 %v886, 1.442695
      %v922 = vpow.pop %v921
      %v923 = vmul.f32 %v887, 1.442695
      %v924 = vpow.pop %v923
      %v925 = vmul.f32 %v888, 1.442695
      %v926 = vpow.pop %v925
      %v927 = vmul.f32 %v889, 1.442695
      %v928 = vpow.pop %v927
      %v929 = vmul.f32 %v890, 1.442695
      %v930 = vpow.pop %v929
      %v931 = vmul.f32 %v891, 1.442695
      %v932 = vpow.pop %v931
      %v933 = vmul.f32 %v892, 1.442695
      %v934 = vpow.pop %v933
      %v935 = vmul.f32 %v893, 1.442695
      %v936 = vpow.pop %v935
      %v937 = vmul.f32 %v894, 1.442695
      %v938 = vpow.pop %v937
      %v939 = vmul.f32 %v895, 1.442695
      %v940 = vpow.pop %v939
      %v941 = vmul.f32 %v896, 1.442695
      %v942 = vpow.pop %v941
      %v943 = vmul.f32 %v897, 1.442695
      %v944 = vpow.pop %v943
      %v945 = vmul.f32 %v898, 1.442695
      %v946 = vpow.pop %v945
      %v947 = vmul.f32 %v899, 1.442695
      %v948 = vpow.pop %v947
      %v949 = vmul.f32 %v900, 1.442695
      %v950 = vpow.pop %v949
      %v951 = vmul.f32 %v901, 1.442695
      %v952 = vpow.pop %v951
      %v953 = vmul.f32 %v902, 1.442695
      %v954 = vpow.pop %v953
      %v955 = vmul.f32 %v903, 1.442695
      %v956 = vpow.pop %v955
      %v957 = vmul.f32 %v904, 1.442695
      %v958 = vpow.pop %v957
      %v959 = vmul.f32 %v905, 1.442695
      %v960 = vpow.pop %v959
      %v961 = vmul.f32 %v906, 1.442695
      %v962 = vpow.pop %v961
      %v963 = vmul.f32 %v907, 1.442695
      %v964 = vpow.pop %v963
      %v965 = vmul.f32 %v908, 1.442695
      %v966 = vpow.pop %v965
      %v967 = vmul.f32 %v909, 1.442695
      %v968 = vpow.pop %v967
      %v969 = vmul.f32 %v910, 1.442695
      %v970 = vpow.pop %v969
      %v971 = vmul.f32 %v911, 1.442695
      %v972 = vpow.pop %v971
      %v973 = vmul.f32 %v912, 1.442695
      %v974 = vpow.pop %v973
      %v975 = vmul.f32 %v913, 1.442695
      %v976 = vpow.pop %v975
      %v977 = vmul.f32 %v914, 1.442695
      %v978 = vpow.pop %v977
      %v979 = vadd.f32 %v916, 1.0
      %v980 = vadd.f32 %v918, 1.0
      %v981 = vadd.f32 %v920, 1.0
      %v982 = vadd.f32 %v922, 1.0
      %v983 = vadd.f32 %v924, 1.0
      %v984 = vadd.f32 %v926, 1.0
      %v985 = vadd.f32 %v928, 1.0
      %v986 = vadd.f32 %v930, 1.0
      %v987 = vadd.f32 %v932, 1.0
      %v988 = vadd.f32 %v934, 1.0
      %v989 = vadd.f32 %v936, 1.0
      %v990 = vadd.f32 %v938, 1.0
      %v991 = vadd.f32 %v940, 1.0
      %v992 = vadd.f32 %v942, 1.0
      %v993 = vadd.f32 %v944, 1.0
      %v994 = vadd.f32 %v946, 1.0
      %v995 = vadd.f32 %v948, 1.0
      %v996 = vadd.f32 %v950, 1.0
      %v997 = vadd.f32 %v952, 1.0
      %v998 = vadd.f32 %v954, 1.0
      %v999 = vadd.f32 %v956, 1.0
      %v1000 = vadd.f32 %v958, 1.0
      %v1001 = vadd.f32 %v960, 1.0
      %v1002 = vadd.f32 %v962, 1.0
      %v1003 = vadd.f32 %v964, 1.0
      %v1004 = vadd.f32 %v966, 1.0
      %v1005 = vadd.f32 %v968, 1.0
      %v1006 = vadd.f32 %v970, 1.0
      %v1007 = vadd.f32 %v972, 1.0
      %v1008 = vadd.f32 %v974, 1.0
      %v1009 = vadd.f32 %v976, 1.0
      %v1010 = vadd.f32 %v978, 1.0
      %v1011 = vrcp.pop %v979
      %v1012 = vmul.f32 %v979, %v1011
      %v1013 = vsub.f32 1.0, %v1012
      %v1014 = vmul.f32 %v1011, %v1013
      %v1015 = vadd.f32 %v1011, %v1014
      %vm1016 = vweird.f32 %v979
      %vm1017 = vweird.f32 %v1011
      %vm1018 = vmor %vm1016, %vm1017
      %v1019 = vsel %vm1018, %v1011, %v1015
      %v1020 = vand.u32 2147483647, %v979
      %vm1021 = vcmp.eq.f32.partialorder %v1020, 8.507059e+37
      %v1022 = vand.u32 %v979, 2147483648
      %v1023 = vor.u32 1.1754944e-38, %v1022
      %v1024 = vsel %vm1021, %v1023, %v1019
      %v1025 = vmul.f32 1.0, %v1024
      %v1026 = vrcp.pop %v980
      %v1027 = vmul.f32 %v980, %v1026
      %v1028 = vsub.f32 1.0, %v1027
      %v1029 = vmul.f32 %v1026, %v1028
      %v1030 = vadd.f32 %v1026, %v1029
      %vm1031 = vweird.f32 %v980
      %vm1032 = vweird.f32 %v1026
      %vm1033 = vmor %vm1031, %vm1032
      %v1034 = vsel %vm1033, %v1026, %v1030
      %v1035 = vand.u32 2147483647, %v980
      %vm1036 = vcmp.eq.f32.partialorder %v1035, 8.507059e+37
      %v1037 = vand.u32 %v980, 2147483648
      %v1038 = vor.u32 1.1754944e-38, %v1037
      %v1039 = vsel %vm1036, %v1038, %v1034
      %v1040 = vmul.f32 1.0, %v1039
      %v1041 = vrcp.pop %v981
      %v1042 = vmul.f32 %v981, %v1041
      %v1043 = vsub.f32 1.0, %v1042
      %v1044 = vmul.f32 %v1041, %v1043
      %v1045 = vadd.f32 %v1041, %v1044
      %vm1046 = vweird.f32 %v981
      %vm1047 = vweird.f32 %v1041
      %vm1048 = vmor %vm1046, %vm1047
      %v1049 = vsel %vm1048, %v1041, %v1045
      %v1050 = vand.u32 2147483647, %v981
      %vm1051 = vcmp.eq.f32.partialorder %v1050, 8.507059e+37
      %v1052 = vand.u32 %v981, 2147483648
      %v1053 = vor.u32 1.1754944e-38, %v1052
      %v1054 = vsel %vm1051, %v1053, %v1049
      %v1055 = vmul.f32 1.0, %v1054
      %v1056 = vrcp.pop %v982
      %v1057 = vmul.f32 %v982, %v1056
      %v1058 = vsub.f32 1.0, %v1057
      %v1059 = vmul.f32 %v1056, %v1058
      %v1060 = vadd.f32 %v1056, %v1059
      %vm1061 = vweird.f32 %v982
      %vm1062 = vweird.f32 %v1056
      %vm1063 = vmor %vm1061, %vm1062
      %v1064 = vsel %vm1063, %v1056, %v1060
      %v1065 = vand.u32 2147483647, %v982
      %vm1066 = vcmp.eq.f32.partialorder %v1065, 8.507059e+37
      %v1067 = vand.u32 %v982, 2147483648
      %v1068 = vor.u32 1.1754944e-38, %v1067
      %v1069 = vsel %vm1066, %v1068, %v1064
      %v1070 = vmul.f32 1.0, %v1069
      %v1071 = vrcp.pop %v983
      %v1072 = vmul.f32 %v983, %v1071
      %v1073 = vsub.f32 1.0, %v1072
      %v1074 = vmul.f32 %v1071, %v1073
      %v1075 = vadd.f32 %v1071, %v1074
      %vm1076 = vweird.f32 %v983
      %vm1077 = vweird.f32 %v1071
      %vm1078 = vmor %vm1076, %vm1077
      %v1079 = vsel %vm1078, %v1071, %v1075
      %v1080 = vand.u32 2147483647, %v983
      %vm1081 = vcmp.eq.f32.partialorder %v1080, 8.507059e+37
      %v1082 = vand.u32 %v983, 2147483648
      %v1083 = vor.u32 1.1754944e-38, %v1082
      %v1084 = vsel %vm1081, %v1083, %v1079
      %v1085 = vmul.f32 1.0, %v1084
      %v1086 = vrcp.pop %v984
      %v1087 = vmul.f32 %v984, %v1086
      %v1088 = vsub.f32 1.0, %v1087
      %v1089 = vmul.f32 %v1086, %v1088
      %v1090 = vadd.f32 %v1086, %v1089
      %vm1091 = vweird.f32 %v984
      %vm1092 = vweird.f32 %v1086
      %vm1093 = vmor %vm1091, %vm1092
      %v1094 = vsel %vm1093, %v1086, %v1090
      %v1095 = vand.u32 2147483647, %v984
      %vm1096 = vcmp.eq.f32.partialorder %v1095, 8.507059e+37
      %v1097 = vand.u32 %v984, 2147483648
      %v1098 = vor.u32 1.1754944e-38, %v1097
      %v1099 = vsel %vm1096, %v1098, %v1094
      %v1100 = vmul.f32 1.0, %v1099
      %v1101 = vrcp.pop %v985
      %v1102 = vmul.f32 %v985, %v1101
      %v1103 = vsub.f32 1.0, %v1102
      %v1104 = vmul.f32 %v1101, %v1103
      %v1105 = vadd.f32 %v1101, %v1104
      %vm1106 = vweird.f32 %v985
      %vm1107 = vweird.f32 %v1101
      %vm1108 = vmor %vm1106, %vm1107
      %v1109 = vsel %vm1108, %v1101, %v1105
      %v1110 = vand.u32 2147483647, %v985
      %vm1111 = vcmp.eq.f32.partialorder %v1110, 8.507059e+37
      %v1112 = vand.u32 %v985, 2147483648
      %v1113 = vor.u32 1.1754944e-38, %v1112
      %v1114 = vsel %vm1111, %v1113, %v1109
      %v1115 = vmul.f32 1.0, %v1114
      %v1116 = vrcp.pop %v986
      %v1117 = vmul.f32 %v986, %v1116
      %v1118 = vsub.f32 1.0, %v1117
      %v1119 = vmul.f32 %v1116, %v1118
      %v1120 = vadd.f32 %v1116, %v1119
      %vm1121 = vweird.f32 %v986
      %vm1122 = vweird.f32 %v1116
      %vm1123 = vmor %vm1121, %vm1122
      %v1124 = vsel %vm1123, %v1116, %v1120
      %v1125 = vand.u32 2147483647, %v986
      %vm1126 = vcmp.eq.f32.partialorder %v1125, 8.507059e+37
      %v1127 = vand.u32 %v986, 2147483648
      %v1128 = vor.u32 1.1754944e-38, %v1127
      %v1129 = vsel %vm1126, %v1128, %v1124
      %v1130 = vmul.f32 1.0, %v1129
      %v1131 = vrcp.pop %v987
      %v1132 = vmul.f32 %v987, %v1131
      %v1133 = vsub.f32 1.0, %v1132
      %v1134 = vmul.f32 %v1131, %v1133
      %v1135 = vadd.f32 %v1131, %v1134
      %vm1136 = vweird.f32 %v987
      %vm1137 = vweird.f32 %v1131
      %vm1138 = vmor %vm1136, %vm1137
      %v1139 = vsel %vm1138, %v1131, %v1135
      %v1140 = vand.u32 2147483647, %v987
      %vm1141 = vcmp.eq.f32.partialorder %v1140, 8.507059e+37
      %v1142 = vand.u32 %v987, 2147483648
      %v1143 = vor.u32 1.1754944e-38, %v1142
      %v1144 = vsel %vm1141, %v1143, %v1139
      %v1145 = vmul.f32 1.0, %v1144
      %v1146 = vrcp.pop %v988
      %v1147 = vmul.f32 %v988, %v1146
      %v1148 = vsub.f32 1.0, %v1147
      %v1149 = vmul.f32 %v1146, %v1148
      %v1150 = vadd.f32 %v1146, %v1149
      %vm1151 = vweird.f32 %v988
      %vm1152 = vweird.f32 %v1146
      %vm1153 = vmor %vm1151, %vm1152
      %v1154 = vsel %vm1153, %v1146, %v1150
      %v1155 = vand.u32 2147483647, %v988
      %vm1156 = vcmp.eq.f32.partialorder %v1155, 8.507059e+37
      %v1157 = vand.u32 %v988, 2147483648
      %v1158 = vor.u32 1.1754944e-38, %v1157
      %v1159 = vsel %vm1156, %v1158, %v1154
      %v1160 = vmul.f32 1.0, %v1159
      %v1161 = vrcp.pop %v989
      %v1162 = vmul.f32 %v989, %v1161
      %v1163 = vsub.f32 1.0, %v1162
      %v1164 = vmul.f32 %v1161, %v1163
      %v1165 = vadd.f32 %v1161, %v1164
      %vm1166 = vweird.f32 %v989
      %vm1167 = vweird.f32 %v1161
      %vm1168 = vmor %vm1166, %vm1167
      %v1169 = vsel %vm1168, %v1161, %v1165
      %v1170 = vand.u32 2147483647, %v989
      %vm1171 = vcmp.eq.f32.partialorder %v1170, 8.507059e+37
      %v1172 = vand.u32 %v989, 2147483648
      %v1173 = vor.u32 1.1754944e-38, %v1172
      %v1174 = vsel %vm1171, %v1173, %v1169
      %v1175 = vmul.f32 1.0, %v1174
      %v1176 = vrcp.pop %v990
      %v1177 = vmul.f32 %v990, %v1176
      %v1178 = vsub.f32 1.0, %v1177
      %v1179 = vmul.f32 %v1176, %v1178
      %v1180 = vadd.f32 %v1176, %v1179
      %vm1181 = vweird.f32 %v990
      %vm1182 = vweird.f32 %v1176
      %vm1183 = vmor %vm1181, %vm1182
      %v1184 = vsel %vm1183, %v1176, %v1180
      %v1185 = vand.u32 2147483647, %v990
      %vm1186 = vcmp.eq.f32.partialorder %v1185, 8.507059e+37
      %v1187 = vand.u32 %v990, 2147483648
      %v1188 = vor.u32 1.1754944e-38, %v1187
      %v1189 = vsel %vm1186, %v1188, %v1184
      %v1190 = vmul.f32 1.0, %v1189
      %v1191 = vrcp.pop %v991
      %v1192 = vmul.f32 %v991, %v1191
      %v1193 = vsub.f32 1.0, %v1192
      %v1194 = vmul.f32 %v1191, %v1193
      %v1195 = vadd.f32 %v1191, %v1194
      %vm1196 = vweird.f32 %v991
      %vm1197 = vweird.f32 %v1191
      %vm1198 = vmor %vm1196, %vm1197
      %v1199 = vsel %vm1198, %v1191, %v1195
      %v1200 = vand.u32 2147483647, %v991
      %vm1201 = vcmp.eq.f32.partialorder %v1200, 8.507059e+37
      %v1202 = vand.u32 %v991, 2147483648
      %v1203 = vor.u32 1.1754944e-38, %v1202
      %v1204 = vsel %vm1201, %v1203, %v1199
      %v1205 = vmul.f32 1.0, %v1204
      %v1206 = vrcp.pop %v992
      %v1207 = vmul.f32 %v992, %v1206
      %v1208 = vsub.f32 1.0, %v1207
      %v1209 = vmul.f32 %v1206, %v1208
      %v1210 = vadd.f32 %v1206, %v1209
      %vm1211 = vweird.f32 %v992
      %vm1212 = vweird.f32 %v1206
      %vm1213 = vmor %vm1211, %vm1212
      %v1214 = vsel %vm1213, %v1206, %v1210
      %v1215 = vand.u32 2147483647, %v992
      %vm1216 = vcmp.eq.f32.partialorder %v1215, 8.507059e+37
      %v1217 = vand.u32 %v992, 2147483648
      %v1218 = vor.u32 1.1754944e-38, %v1217
      %v1219 = vsel %vm1216, %v1218, %v1214
      %v1220 = vmul.f32 1.0, %v1219
      %v1221 = vrcp.pop %v993
      %v1222 = vmul.f32 %v993, %v1221
      %v1223 = vsub.f32 1.0, %v1222
      %v1224 = vmul.f32 %v1221, %v1223
      %v1225 = vadd.f32 %v1221, %v1224
      %vm1226 = vweird.f32 %v993
      %vm1227 = vweird.f32 %v1221
      %vm1228 = vmor %vm1226, %vm1227
      %v1229 = vsel %vm1228, %v1221, %v1225
      %v1230 = vand.u32 2147483647, %v993
      %vm1231 = vcmp.eq.f32.partialorder %v1230, 8.507059e+37
      %v1232 = vand.u32 %v993, 2147483648
      %v1233 = vor.u32 1.1754944e-38, %v1232
      %v1234 = vsel %vm1231, %v1233, %v1229
      %v1235 = vmul.f32 1.0, %v1234
      %v1236 = vrcp.pop %v994
      %v1237 = vmul.f32 %v994, %v1236
      %v1238 = vsub.f32 1.0, %v1237
      %v1239 = vmul.f32 %v1236, %v1238
      %v1240 = vadd.f32 %v1236, %v1239
      %vm1241 = vweird.f32 %v994
      %vm1242 = vweird.f32 %v1236
      %vm1243 = vmor %vm1241, %vm1242
      %v1244 = vsel %vm1243, %v1236, %v1240
      %v1245 = vand.u32 2147483647, %v994
      %vm1246 = vcmp.eq.f32.partialorder %v1245, 8.507059e+37
      %v1247 = vand.u32 %v994, 2147483648
      %v1248 = vor.u32 1.1754944e-38, %v1247
      %v1249 = vsel %vm1246, %v1248, %v1244
      %v1250 = vmul.f32 1.0, %v1249
      %v1251 = vrcp.pop %v995
      %v1252 = vmul.f32 %v995, %v1251
      %v1253 = vsub.f32 1.0, %v1252
      %v1254 = vmul.f32 %v1251, %v1253
      %v1255 = vadd.f32 %v1251, %v1254
      %vm1256 = vweird.f32 %v995
      %vm1257 = vweird.f32 %v1251
      %vm1258 = vmor %vm1256, %vm1257
      %v1259 = vsel %vm1258, %v1251, %v1255
      %v1260 = vand.u32 2147483647, %v995
      %vm1261 = vcmp.eq.f32.partialorder %v1260, 8.507059e+37
      %v1262 = vand.u32 %v995, 2147483648
      %v1263 = vor.u32 1.1754944e-38, %v1262
      %v1264 = vsel %vm1261, %v1263, %v1259
      %v1265 = vmul.f32 1.0, %v1264
      %v1266 = vrcp.pop %v996
      %v1267 = vmul.f32 %v996, %v1266
      %v1268 = vsub.f32 1.0, %v1267
      %v1269 = vmul.f32 %v1266, %v1268
      %v1270 = vadd.f32 %v1266, %v1269
      %vm1271 = vweird.f32 %v996
      %vm1272 = vweird.f32 %v1266
      %vm1273 = vmor %vm1271, %vm1272
      %v1274 = vsel %vm1273, %v1266, %v1270
      %v1275 = vand.u32 2147483647, %v996
      %vm1276 = vcmp.eq.f32.partialorder %v1275, 8.507059e+37
      %v1277 = vand.u32 %v996, 2147483648
      %v1278 = vor.u32 1.1754944e-38, %v1277
      %v1279 = vsel %vm1276, %v1278, %v1274
      %v1280 = vmul.f32 1.0, %v1279
      %v1281 = vrcp.pop %v997
      %v1282 = vmul.f32 %v997, %v1281
      %v1283 = vsub.f32 1.0, %v1282
      %v1284 = vmul.f32 %v1281, %v1283
      %v1285 = vadd.f32 %v1281, %v1284
      %vm1286 = vweird.f32 %v997
      %vm1287 = vweird.f32 %v1281
      %vm1288 = vmor %vm1286, %vm1287
      %v1289 = vsel %vm1288, %v1281, %v1285
      %v1290 = vand.u32 2147483647, %v997
      %vm1291 = vcmp.eq.f32.partialorder %v1290, 8.507059e+37
      %v1292 = vand.u32 %v997, 2147483648
      %v1293 = vor.u32 1.1754944e-38, %v1292
      %v1294 = vsel %vm1291, %v1293, %v1289
      %v1295 = vmul.f32 1.0, %v1294
      %v1296 = vrcp.pop %v998
      %v1297 = vmul.f32 %v998, %v1296
      %v1298 = vsub.f32 1.0, %v1297
      %v1299 = vmul.f32 %v1296, %v1298
      %v1300 = vadd.f32 %v1296, %v1299
      %vm1301 = vweird.f32 %v998
      %vm1302 = vweird.f32 %v1296
      %vm1303 = vmor %vm1301, %vm1302
      %v1304 = vsel %vm1303, %v1296, %v1300
      %v1305 = vand.u32 2147483647, %v998
      %vm1306 = vcmp.eq.f32.partialorder %v1305, 8.507059e+37
      %v1307 = vand.u32 %v998, 2147483648
      %v1308 = vor.u32 1.1754944e-38, %v1307
      %v1309 = vsel %vm1306, %v1308, %v1304
      %v1310 = vmul.f32 1.0, %v1309
      %v1311 = vrcp.pop %v999
      %v1312 = vmul.f32 %v999, %v1311
      %v1313 = vsub.f32 1.0, %v1312
      %v1314 = vmul.f32 %v1311, %v1313
      %v1315 = vadd.f32 %v1311, %v1314
      %vm1316 = vweird.f32 %v999
      %vm1317 = vweird.f32 %v1311
      %vm1318 = vmor %vm1316, %vm1317
      %v1319 = vsel %vm1318, %v1311, %v1315
      %v1320 = vand.u32 2147483647, %v999
      %vm1321 = vcmp.eq.f32.partialorder %v1320, 8.507059e+37
      %v1322 = vand.u32 %v999, 2147483648
      %v1323 = vor.u32 1.1754944e-38, %v1322
      %v1324 = vsel %vm1321, %v1323, %v1319
      %v1325 = vmul.f32 1.0, %v1324
      %v1326 = vrcp.pop %v1000
      %v1327 = vmul.f32 %v1000, %v1326
      %v1328 = vsub.f32 1.0, %v1327
      %v1329 = vmul.f32 %v1326, %v1328
      %v1330 = vadd.f32 %v1326, %v1329
      %vm1331 = vweird.f32 %v1000
      %vm1332 = vweird.f32 %v1326
      %vm1333 = vmor %vm1331, %vm1332
      %v1334 = vsel %vm1333, %v1326, %v1330
      %v1335 = vand.u32 2147483647, %v1000
      %vm1336 = vcmp.eq.f32.partialorder %v1335, 8.507059e+37
      %v1337 = vand.u32 %v1000, 2147483648
      %v1338 = vor.u32 1.1754944e-38, %v1337
      %v1339 = vsel %vm1336, %v1338, %v1334
      %v1340 = vmul.f32 1.0, %v1339
      %v1341 = vrcp.pop %v1001
      %v1342 = vmul.f32 %v1001, %v1341
      %v1343 = vsub.f32 1.0, %v1342
      %v1344 = vmul.f32 %v1341, %v1343
      %v1345 = vadd.f32 %v1341, %v1344
      %vm1346 = vweird.f32 %v1001
      %vm1347 = vweird.f32 %v1341
      %vm1348 = vmor %vm1346, %vm1347
      %v1349 = vsel %vm1348, %v1341, %v1345
      %v1350 = vand.u32 2147483647, %v1001
      %vm1351 = vcmp.eq.f32.partialorder %v1350, 8.507059e+37
      %v1352 = vand.u32 %v1001, 2147483648
      %v1353 = vor.u32 1.1754944e-38, %v1352
      %v1354 = vsel %vm1351, %v1353, %v1349
      %v1355 = vmul.f32 1.0, %v1354
      %v1356 = vrcp.pop %v1002
      %v1357 = vmul.f32 %v1002, %v1356
      %v1358 = vsub.f32 1.0, %v1357
      %v1359 = vmul.f32 %v1356, %v1358
      %v1360 = vadd.f32 %v1356, %v1359
      %vm1361 = vweird.f32 %v1002
      %vm1362 = vweird.f32 %v1356
      %vm1363 = vmor %vm1361, %vm1362
      %v1364 = vsel %vm1363, %v1356, %v1360
      %v1365 = vand.u32 2147483647, %v1002
      %vm1366 = vcmp.eq.f32.partialorder %v1365, 8.507059e+37
      %v1367 = vand.u32 %v1002, 2147483648
      %v1368 = vor.u32 1.1754944e-38, %v1367
      %v1369 = vsel %vm1366, %v1368, %v1364
      %v1370 = vmul.f32 1.0, %v1369
      %v1371 = vrcp.pop %v1003
      %v1372 = vmul.f32 %v1003, %v1371
      %v1373 = vsub.f32 1.0, %v1372
      %v1374 = vmul.f32 %v1371, %v1373
      %v1375 = vadd.f32 %v1371, %v1374
      %vm1376 = vweird.f32 %v1003
      %vm1377 = vweird.f32 %v1371
      %vm1378 = vmor %vm1376, %vm1377
      %v1379 = vsel %vm1378, %v1371, %v1375
      %v1380 = vand.u32 2147483647, %v1003
      %vm1381 = vcmp.eq.f32.partialorder %v1380, 8.507059e+37
      %v1382 = vand.u32 %v1003, 2147483648
      %v1383 = vor.u32 1.1754944e-38, %v1382
      %v1384 = vsel %vm1381, %v1383, %v1379
      %v1385 = vmul.f32 1.0, %v1384
      %v1386 = vrcp.pop %v1004
      %v1387 = vmul.f32 %v1004, %v1386
      %v1388 = vsub.f32 1.0, %v1387
      %v1389 = vmul.f32 %v1386, %v1388
      %v1390 = vadd.f32 %v1386, %v1389
      %vm1391 = vweird.f32 %v1004
      %vm1392 = vweird.f32 %v1386
      %vm1393 = vmor %vm1391, %vm1392
      %v1394 = vsel %vm1393, %v1386, %v1390
      %v1395 = vand.u32 2147483647, %v1004
      %vm1396 = vcmp.eq.f32.partialorder %v1395, 8.507059e+37
      %v1397 = vand.u32 %v1004, 2147483648
      %v1398 = vor.u32 1.1754944e-38, %v1397
      %v1399 = vsel %vm1396, %v1398, %v1394
      %v1400 = vmul.f32 1.0, %v1399
      %v1401 = vrcp.pop %v1005
      %v1402 = vmul.f32 %v1005, %v1401
      %v1403 = vsub.f32 1.0, %v1402
      %v1404 = vmul.f32 %v1401, %v1403
      %v1405 = vadd.f32 %v1401, %v1404
      %vm1406 = vweird.f32 %v1005
      %vm1407 = vweird.f32 %v1401
      %vm1408 = vmor %vm1406, %vm1407
      %v1409 = vsel %vm1408, %v1401, %v1405
      %v1410 = vand.u32 2147483647, %v1005
      %vm1411 = vcmp.eq.f32.partialorder %v1410, 8.507059e+37
      %v1412 = vand.u32 %v1005, 2147483648
      %v1413 = vor.u32 1.1754944e-38, %v1412
      %v1414 = vsel %vm1411, %v1413, %v1409
      %v1415 = vmul.f32 1.0, %v1414
      %v1416 = vrcp.pop %v1006
      %v1417 = vmul.f32 %v1006, %v1416
      %v1418 = vsub.f32 1.0, %v1417
      %v1419 = vmul.f32 %v1416, %v1418
      %v1420 = vadd.f32 %v1416, %v1419
      %vm1421 = vweird.f32 %v1006
      %vm1422 = vweird.f32 %v1416
      %vm1423 = vmor %vm1421, %vm1422
      %v1424 = vsel %vm1423, %v1416, %v1420
      %v1425 = vand.u32 2147483647, %v1006
      %vm1426 = vcmp.eq.f32.partialorder %v1425, 8.507059e+37
      %v1427 = vand.u32 %v1006, 2147483648
      %v1428 = vor.u32 1.1754944e-38, %v1427
      %v1429 = vsel %vm1426, %v1428, %v1424
      %v1430 = vmul.f32 1.0, %v1429
      %v1431 = vrcp.pop %v1007
      %v1432 = vmul.f32 %v1007, %v1431
      %v1433 = vsub.f32 1.0, %v1432
      %v1434 = vmul.f32 %v1431, %v1433
      %v1435 = vadd.f32 %v1431, %v1434
      %vm1436 = vweird.f32 %v1007
      %vm1437 = vweird.f32 %v1431
      %vm1438 = vmor %vm1436, %vm1437
      %v1439 = vsel %vm1438, %v1431, %v1435
      %v1440 = vand.u32 2147483647, %v1007
      %vm1441 = vcmp.eq.f32.partialorder %v1440, 8.507059e+37
      %v1442 = vand.u32 %v1007, 2147483648
      %v1443 = vor.u32 1.1754944e-38, %v1442
      %v1444 = vsel %vm1441, %v1443, %v1439
      %v1445 = vmul.f32 1.0, %v1444
      %v1446 = vrcp.pop %v1008
      %v1447 = vmul.f32 %v1008, %v1446
      %v1448 = vsub.f32 1.0, %v1447
      %v1449 = vmul.f32 %v1446, %v1448
      %v1450 = vadd.f32 %v1446, %v1449
      %vm1451 = vweird.f32 %v1008
      %vm1452 = vweird.f32 %v1446
      %vm1453 = vmor %vm1451, %vm1452
      %v1454 = vsel %vm1453, %v1446, %v1450
      %v1455 = vand.u32 2147483647, %v1008
      %vm1456 = vcmp.eq.f32.partialorder %v1455, 8.507059e+37
      %v1457 = vand.u32 %v1008, 2147483648
      %v1458 = vor.u32 1.1754944e-38, %v1457
      %v1459 = vsel %vm1456, %v1458, %v1454
      %v1460 = vmul.f32 1.0, %v1459
      %v1461 = vrcp.pop %v1009
      %v1462 = vmul.f32 %v1009, %v1461
      %v1463 = vsub.f32 1.0, %v1462
      %v1464 = vmul.f32 %v1461, %v1463
      %v1465 = vadd.f32 %v1461, %v1464
      %vm1466 = vweird.f32 %v1009
      %vm1467 = vweird.f32 %v1461
      %vm1468 = vmor %vm1466, %vm1467
      %v1469 = vsel %vm1468, %v1461, %v1465
      %v1470 = vand.u32 2147483647, %v1009
      %vm1471 = vcmp.eq.f32.partialorder %v1470, 8.507059e+37
      %v1472 = vand.u32 %v1009, 2147483648
      %v1473 = vor.u32 1.1754944e-38, %v1472
      %v1474 = vsel %vm1471, %v1473, %v1469
      %v1475 = vmul.f32 1.0, %v1474
      %v1476 = vrcp.pop %v1010
      %v1477 = vmul.f32 %v1010, %v1476
      %v1478 = vsub.f32 1.0, %v1477
      %v1479 = vmul.f32 %v1476, %v1478
      %v1480 = vadd.f32 %v1476, %v1479
      %vm1481 = vweird.f32 %v1010
      %vm1482 = vweird.f32 %v1476
      %vm1483 = vmor %vm1481, %vm1482
      %v1484 = vsel %vm1483, %v1476, %v1480
      %v1485 = vand.u32 2147483647, %v1010
      %vm1486 = vcmp.eq.f32.partialorder %v1485, 8.507059e+37
      %v1487 = vand.u32 %v1010, 2147483648
      %v1488 = vor.u32 1.1754944e-38, %v1487
      %v1489 = vsel %vm1486, %v1488, %v1484
      %v1490 = vmul.f32 1.0, %v1489
      %v1491 = vlaneseq
      %v1492 = vshrl.u32 %v1491, 7
      %v1493 = vadd.s32 %v1492, 8
      %v1494 = vadd.s32 %v1492, 16
      %v1495 = vadd.s32 %v1492, 24
      %v1496 = vadd.s32 %v1492, 32
      %v1497 = vadd.s32 %v1492, 40
      %v1498 = vadd.s32 %v1492, 48
      %v1499 = vadd.s32 %v1492, 56
      %v1500 = vadd.s32 %v1492, 64
      %v1501 = vadd.s32 %v1492, 72
      %v1502 = vadd.s32 %v1492, 80
      %v1503 = vadd.s32 %v1492, 88
      %v1504 = vadd.s32 %v1492, 96
      %v1505 = vadd.s32 %v1492, 104
      %v1506 = vadd.s32 %v1492, 112
      %v1507 = vadd.s32 %v1492, 120
      %v1508 = vstv %s290
      %v1509 = vadd.s32 %v1492, %v1508
      %v1510 = vadd.s32 %v1493, %v1508
      %v1511 = vadd.s32 %v1494, %v1508
      %v1512 = vadd.s32 %v1495, %v1508
      %v1513 = vadd.s32 %v1496, %v1508
      %v1514 = vadd.s32 %v1497, %v1508
      %v1515 = vadd.s32 %v1498, %v1508
      %v1516 = vadd.s32 %v1499, %v1508
      %v1517 = vadd.s32 %v1500, %v1508
      %v1518 = vadd.s32 %v1501, %v1508
      %v1519 = vadd.s32 %v1502, %v1508
      %v1520 = vadd.s32 %v1503, %v1508
      %v1521 = vadd.s32 %v1504, %v1508
      %v1522 = vadd.s32 %v1505, %v1508
      %v1523 = vadd.s32 %v1506, %v1508
      %v1524 = vadd.s32 %v1507, %v1508
      %v1525 = vlaneseq
      %v1526 = vand.u32 %v1525, 127
      %v1527 = vadd.s32 %v1526, 128
      %s1528 = smul.u32 %s289, 2654435769
      %s1529 = sadd.s32 %s1528, 1
      %v1530 = vmul.u32 %v1509, 2246822507
      %v1531 = vmul.u32 %v1510, 2246822507
      %v1532 = vmul.u32 %v1511, 2246822507
      %v1533 = vmul.u32 %v1512, 2246822507
      %v1534 = vmul.u32 %v1513, 2246822507
      %v1535 = vmul.u32 %v1514, 2246822507
      %v1536 = vmul.u32 %v1515, 2246822507
      %v1537 = vmul.u32 %v1516, 2246822507
      %v1538 = vmul.u32 %v1517, 2246822507
      %v1539 = vmul.u32 %v1518, 2246822507
      %v1540 = vmul.u32 %v1519, 2246822507
      %v1541 = vmul.u32 %v1520, 2246822507
      %v1542 = vmul.u32 %v1521, 2246822507
      %v1543 = vmul.u32 %v1522, 2246822507
      %v1544 = vmul.u32 %v1523, 2246822507
      %v1545 = vmul.u32 %v1524, 2246822507
      %v1546 = vstv %s1529
      %v1547 = vadd.s32 %v1530, %v1546
      %v1548 = vadd.s32 %v1531, %v1546
      %v1549 = vadd.s32 %v1532, %v1546
      %v1550 = vadd.s32 %v1533, %v1546
      %v1551 = vadd.s32 %v1534, %v1546
      %v1552 = vadd.s32 %v1535, %v1546
      %v1553 = vadd.s32 %v1536, %v1546
      %v1554 = vadd.s32 %v1537, %v1546
      %v1555 = vadd.s32 %v1538, %v1546
      %v1556 = vadd.s32 %v1539, %v1546
      %v1557 = vadd.s32 %v1540, %v1546
      %v1558 = vadd.s32 %v1541, %v1546
      %v1559 = vadd.s32 %v1542, %v1546
      %v1560 = vadd.s32 %v1543, %v1546
      %v1561 = vadd.s32 %v1544, %v1546
      %v1562 = vadd.s32 %v1545, %v1546
      %v1563 = vshrl.u32 %v1547, 16
      %v1564 = vshrl.u32 %v1548, 16
      %v1565 = vshrl.u32 %v1549, 16
      %v1566 = vshrl.u32 %v1550, 16
      %v1567 = vshrl.u32 %v1551, 16
      %v1568 = vshrl.u32 %v1552, 16
      %v1569 = vshrl.u32 %v1553, 16
      %v1570 = vshrl.u32 %v1554, 16
      %v1571 = vshrl.u32 %v1555, 16
      %v1572 = vshrl.u32 %v1556, 16
      %v1573 = vshrl.u32 %v1557, 16
      %v1574 = vshrl.u32 %v1558, 16
      %v1575 = vshrl.u32 %v1559, 16
      %v1576 = vshrl.u32 %v1560, 16
      %v1577 = vshrl.u32 %v1561, 16
      %v1578 = vshrl.u32 %v1562, 16
      %v1579 = vxor.u32 %v1547, %v1563
      %v1580 = vxor.u32 %v1548, %v1564
      %v1581 = vxor.u32 %v1549, %v1565
      %v1582 = vxor.u32 %v1550, %v1566
      %v1583 = vxor.u32 %v1551, %v1567
      %v1584 = vxor.u32 %v1552, %v1568
      %v1585 = vxor.u32 %v1553, %v1569
      %v1586 = vxor.u32 %v1554, %v1570
      %v1587 = vxor.u32 %v1555, %v1571
      %v1588 = vxor.u32 %v1556, %v1572
      %v1589 = vxor.u32 %v1557, %v1573
      %v1590 = vxor.u32 %v1558, %v1574
      %v1591 = vxor.u32 %v1559, %v1575
      %v1592 = vxor.u32 %v1560, %v1576
      %v1593 = vxor.u32 %v1561, %v1577
      %v1594 = vxor.u32 %v1562, %v1578
      %v1595 = vmul.u32 %v1579, 2146121005
      %v1596 = vmul.u32 %v1580, 2146121005
      %v1597 = vmul.u32 %v1581, 2146121005
      %v1598 = vmul.u32 %v1582, 2146121005
      %v1599 = vmul.u32 %v1583, 2146121005
      %v1600 = vmul.u32 %v1584, 2146121005
      %v1601 = vmul.u32 %v1585, 2146121005
      %v1602 = vmul.u32 %v1586, 2146121005
      %v1603 = vmul.u32 %v1587, 2146121005
      %v1604 = vmul.u32 %v1588, 2146121005
      %v1605 = vmul.u32 %v1589, 2146121005
      %v1606 = vmul.u32 %v1590, 2146121005
      %v1607 = vmul.u32 %v1591, 2146121005
      %v1608 = vmul.u32 %v1592, 2146121005
      %v1609 = vmul.u32 %v1593, 2146121005
      %v1610 = vmul.u32 %v1594, 2146121005
      %v1611 = vshrl.u32 %v1595, 15
      %v1612 = vshrl.u32 %v1596, 15
      %v1613 = vshrl.u32 %v1597, 15
      %v1614 = vshrl.u32 %v1598, 15
      %v1615 = vshrl.u32 %v1599, 15
      %v1616 = vshrl.u32 %v1600, 15
      %v1617 = vshrl.u32 %v1601, 15
      %v1618 = vshrl.u32 %v1602, 15
      %v1619 = vshrl.u32 %v1603, 15
      %v1620 = vshrl.u32 %v1604, 15
      %v1621 = vshrl.u32 %v1605, 15
      %v1622 = vshrl.u32 %v1606, 15
      %v1623 = vshrl.u32 %v1607, 15
      %v1624 = vshrl.u32 %v1608, 15
      %v1625 = vshrl.u32 %v1609, 15
      %v1626 = vshrl.u32 %v1610, 15
      %v1627 = vxor.u32 %v1595, %v1611
      %v1628 = vxor.u32 %v1596, %v1612
      %v1629 = vxor.u32 %v1597, %v1613
      %v1630 = vxor.u32 %v1598, %v1614
      %v1631 = vxor.u32 %v1599, %v1615
      %v1632 = vxor.u32 %v1600, %v1616
      %v1633 = vxor.u32 %v1601, %v1617
      %v1634 = vxor.u32 %v1602, %v1618
      %v1635 = vxor.u32 %v1603, %v1619
      %v1636 = vxor.u32 %v1604, %v1620
      %v1637 = vxor.u32 %v1605, %v1621
      %v1638 = vxor.u32 %v1606, %v1622
      %v1639 = vxor.u32 %v1607, %v1623
      %v1640 = vxor.u32 %v1608, %v1624
      %v1641 = vxor.u32 %v1609, %v1625
      %v1642 = vxor.u32 %v1610, %v1626
      %v1643 = vmul.u32 %v1627, 2221713035
      %v1644 = vmul.u32 %v1628, 2221713035
      %v1645 = vmul.u32 %v1629, 2221713035
      %v1646 = vmul.u32 %v1630, 2221713035
      %v1647 = vmul.u32 %v1631, 2221713035
      %v1648 = vmul.u32 %v1632, 2221713035
      %v1649 = vmul.u32 %v1633, 2221713035
      %v1650 = vmul.u32 %v1634, 2221713035
      %v1651 = vmul.u32 %v1635, 2221713035
      %v1652 = vmul.u32 %v1636, 2221713035
      %v1653 = vmul.u32 %v1637, 2221713035
      %v1654 = vmul.u32 %v1638, 2221713035
      %v1655 = vmul.u32 %v1639, 2221713035
      %v1656 = vmul.u32 %v1640, 2221713035
      %v1657 = vmul.u32 %v1641, 2221713035
      %v1658 = vmul.u32 %v1642, 2221713035
      %v1659 = vshrl.u32 %v1643, 16
      %v1660 = vshrl.u32 %v1644, 16
      %v1661 = vshrl.u32 %v1645, 16
      %v1662 = vshrl.u32 %v1646, 16
      %v1663 = vshrl.u32 %v1647, 16
      %v1664 = vshrl.u32 %v1648, 16
      %v1665 = vshrl.u32 %v1649, 16
      %v1666 = vshrl.u32 %v1650, 16
      %v1667 = vshrl.u32 %v1651, 16
      %v1668 = vshrl.u32 %v1652, 16
      %v1669 = vshrl.u32 %v1653, 16
      %v1670 = vshrl.u32 %v1654, 16
      %v1671 = vshrl.u32 %v1655, 16
      %v1672 = vshrl.u32 %v1656, 16
      %v1673 = vshrl.u32 %v1657, 16
      %v1674 = vshrl.u32 %v1658, 16
      %v1675 = vxor.u32 %v1643, %v1659
      %v1676 = vxor.u32 %v1644, %v1660
      %v1677 = vxor.u32 %v1645, %v1661
      %v1678 = vxor.u32 %v1646, %v1662
      %v1679 = vxor.u32 %v1647, %v1663
      %v1680 = vxor.u32 %v1648, %v1664
      %v1681 = vxor.u32 %v1649, %v1665
      %v1682 = vxor.u32 %v1650, %v1666
      %v1683 = vxor.u32 %v1651, %v1667
      %v1684 = vxor.u32 %v1652, %v1668
      %v1685 = vxor.u32 %v1653, %v1669
      %v1686 = vxor.u32 %v1654, %v1670
      %v1687 = vxor.u32 %v1655, %v1671
      %v1688 = vxor.u32 %v1656, %v1672
      %v1689 = vxor.u32 %v1657, %v1673
      %v1690 = vxor.u32 %v1658, %v1674
      %v1691 = vmul.u32 %v1526, 3266489909
      %v1692 = vmul.u32 %v1527, 3266489909
      %v1693 = vxor.u32 %v1691, %v1546
      %v1694 = vxor.u32 %v1692, %v1546
      %v1695 = vshrl.u32 %v1693, 16
      %v1696 = vshrl.u32 %v1694, 16
      %v1697 = vxor.u32 %v1693, %v1695
      %v1698 = vxor.u32 %v1694, %v1696
      %v1699 = vmul.u32 %v1697, 2146121005
      %v1700 = vmul.u32 %v1698, 2146121005
      %v1701 = vshrl.u32 %v1699, 15
      %v1702 = vshrl.u32 %v1700, 15
      %v1703 = vxor.u32 %v1699, %v1701
      %v1704 = vxor.u32 %v1700, %v1702
      %v1705 = vmul.u32 %v1703, 2221713035
      %v1706 = vmul.u32 %v1704, 2221713035
      %v1707 = vshrl.u32 %v1705, 16
      %v1708 = vshrl.u32 %v1706, 16
      %v1709 = vxor.u32 %v1705, %v1707
      %v1710 = vxor.u32 %v1706, %v1708
      %v1711 = vxor.u32 %v1675, %v1709
      %v1712 = vxor.u32 %v1675, %v1710
      %v1713 = vxor.u32 %v1676, %v1709
      %v1714 = vxor.u32 %v1676, %v1710
      %v1715 = vxor.u32 %v1677, %v1709
      %v1716 = vxor.u32 %v1677, %v1710
      %v1717 = vxor.u32 %v1678, %v1709
      %v1718 = vxor.u32 %v1678, %v1710
      %v1719 = vxor.u32 %v1679, %v1709
      %v1720 = vxor.u32 %v1679, %v1710
      %v1721 = vxor.u32 %v1680, %v1709
      %v1722 = vxor.u32 %v1680, %v1710
      %v1723 = vxor.u32 %v1681, %v1709
      %v1724 = vxor.u32 %v1681, %v1710
      %v1725 = vxor.u32 %v1682, %v1709
      %v1726 = vxor.u32 %v1682, %v1710
      %v1727 = vxor.u32 %v1683, %v1709
      %v1728 = vxor.u32 %v1683, %v1710
      %v1729 = vxor.u32 %v1684, %v1709
      %v1730 = vxor.u32 %v1684, %v1710
      %v1731 = vxor.u32 %v1685, %v1709
      %v1732 = vxor.u32 %v1685, %v1710
      %v1733 = vxor.u32 %v1686, %v1709
      %v1734 = vxor.u32 %v1686, %v1710
      %v1735 = vxor.u32 %v1687, %v1709
      %v1736 = vxor.u32 %v1687, %v1710
      %v1737 = vxor.u32 %v1688, %v1709
      %v1738 = vxor.u32 %v1688, %v1710
      %v1739 = vxor.u32 %v1689, %v1709
      %v1740 = vxor.u32 %v1689, %v1710
      %v1741 = vxor.u32 %v1690, %v1709
      %v1742 = vxor.u32 %v1690, %v1710
      %v1743 = vshrl.u32 %v1711, 16
      %v1744 = vshrl.u32 %v1712, 16
      %v1745 = vshrl.u32 %v1713, 16
      %v1746 = vshrl.u32 %v1714, 16
      %v1747 = vshrl.u32 %v1715, 16
      %v1748 = vshrl.u32 %v1716, 16
      %v1749 = vshrl.u32 %v1717, 16
      %v1750 = vshrl.u32 %v1718, 16
      %v1751 = vshrl.u32 %v1719, 16
      %v1752 = vshrl.u32 %v1720, 16
      %v1753 = vshrl.u32 %v1721, 16
      %v1754 = vshrl.u32 %v1722, 16
      %v1755 = vshrl.u32 %v1723, 16
      %v1756 = vshrl.u32 %v1724, 16
      %v1757 = vshrl.u32 %v1725, 16
      %v1758 = vshrl.u32 %v1726, 16
      %v1759 = vshrl.u32 %v1727, 16
      %v1760 = vshrl.u32 %v1728, 16
      %v1761 = vshrl.u32 %v1729, 16
      %v1762 = vshrl.u32 %v1730, 16
      %v1763 = vshrl.u32 %v1731, 16
      %v1764 = vshrl.u32 %v1732, 16
      %v1765 = vshrl.u32 %v1733, 16
      %v1766 = vshrl.u32 %v1734, 16
      %v1767 = vshrl.u32 %v1735, 16
      %v1768 = vshrl.u32 %v1736, 16
      %v1769 = vshrl.u32 %v1737, 16
      %v1770 = vshrl.u32 %v1738, 16
      %v1771 = vshrl.u32 %v1739, 16
      %v1772 = vshrl.u32 %v1740, 16
      %v1773 = vshrl.u32 %v1741, 16
      %v1774 = vshrl.u32 %v1742, 16
      %v1775 = vxor.u32 %v1711, %v1743
      %v1776 = vxor.u32 %v1712, %v1744
      %v1777 = vxor.u32 %v1713, %v1745
      %v1778 = vxor.u32 %v1714, %v1746
      %v1779 = vxor.u32 %v1715, %v1747
      %v1780 = vxor.u32 %v1716, %v1748
      %v1781 = vxor.u32 %v1717, %v1749
      %v1782 = vxor.u32 %v1718, %v1750
      %v1783 = vxor.u32 %v1719, %v1751
      %v1784 = vxor.u32 %v1720, %v1752
      %v1785 = vxor.u32 %v1721, %v1753
      %v1786 = vxor.u32 %v1722, %v1754
      %v1787 = vxor.u32 %v1723, %v1755
      %v1788 = vxor.u32 %v1724, %v1756
      %v1789 = vxor.u32 %v1725, %v1757
      %v1790 = vxor.u32 %v1726, %v1758
      %v1791 = vxor.u32 %v1727, %v1759
      %v1792 = vxor.u32 %v1728, %v1760
      %v1793 = vxor.u32 %v1729, %v1761
      %v1794 = vxor.u32 %v1730, %v1762
      %v1795 = vxor.u32 %v1731, %v1763
      %v1796 = vxor.u32 %v1732, %v1764
      %v1797 = vxor.u32 %v1733, %v1765
      %v1798 = vxor.u32 %v1734, %v1766
      %v1799 = vxor.u32 %v1735, %v1767
      %v1800 = vxor.u32 %v1736, %v1768
      %v1801 = vxor.u32 %v1737, %v1769
      %v1802 = vxor.u32 %v1738, %v1770
      %v1803 = vxor.u32 %v1739, %v1771
      %v1804 = vxor.u32 %v1740, %v1772
      %v1805 = vxor.u32 %v1741, %v1773
      %v1806 = vxor.u32 %v1742, %v1774
      %v1807 = vmul.u32 %v1775, 2146121005
      %v1808 = vmul.u32 %v1776, 2146121005
      %v1809 = vmul.u32 %v1777, 2146121005
      %v1810 = vmul.u32 %v1778, 2146121005
      %v1811 = vmul.u32 %v1779, 2146121005
      %v1812 = vmul.u32 %v1780, 2146121005
      %v1813 = vmul.u32 %v1781, 2146121005
      %v1814 = vmul.u32 %v1782, 2146121005
      %v1815 = vmul.u32 %v1783, 2146121005
      %v1816 = vmul.u32 %v1784, 2146121005
      %v1817 = vmul.u32 %v1785, 2146121005
      %v1818 = vmul.u32 %v1786, 2146121005
      %v1819 = vmul.u32 %v1787, 2146121005
      %v1820 = vmul.u32 %v1788, 2146121005
      %v1821 = vmul.u32 %v1789, 2146121005
      %v1822 = vmul.u32 %v1790, 2146121005
      %v1823 = vmul.u32 %v1791, 2146121005
      %v1824 = vmul.u32 %v1792, 2146121005
      %v1825 = vmul.u32 %v1793, 2146121005
      %v1826 = vmul.u32 %v1794, 2146121005
      %v1827 = vmul.u32 %v1795, 2146121005
      %v1828 = vmul.u32 %v1796, 2146121005
      %v1829 = vmul.u32 %v1797, 2146121005
      %v1830 = vmul.u32 %v1798, 2146121005
      %v1831 = vmul.u32 %v1799, 2146121005
      %v1832 = vmul.u32 %v1800, 2146121005
      %v1833 = vmul.u32 %v1801, 2146121005
      %v1834 = vmul.u32 %v1802, 2146121005
      %v1835 = vmul.u32 %v1803, 2146121005
      %v1836 = vmul.u32 %v1804, 2146121005
      %v1837 = vmul.u32 %v1805, 2146121005
      %v1838 = vmul.u32 %v1806, 2146121005
      %v1839 = vshrl.u32 %v1807, 15
      %v1840 = vshrl.u32 %v1808, 15
      %v1841 = vshrl.u32 %v1809, 15
      %v1842 = vshrl.u32 %v1810, 15
      %v1843 = vshrl.u32 %v1811, 15
      %v1844 = vshrl.u32 %v1812, 15
      %v1845 = vshrl.u32 %v1813, 15
      %v1846 = vshrl.u32 %v1814, 15
      %v1847 = vshrl.u32 %v1815, 15
      %v1848 = vshrl.u32 %v1816, 15
      %v1849 = vshrl.u32 %v1817, 15
      %v1850 = vshrl.u32 %v1818, 15
      %v1851 = vshrl.u32 %v1819, 15
      %v1852 = vshrl.u32 %v1820, 15
      %v1853 = vshrl.u32 %v1821, 15
      %v1854 = vshrl.u32 %v1822, 15
      %v1855 = vshrl.u32 %v1823, 15
      %v1856 = vshrl.u32 %v1824, 15
      %v1857 = vshrl.u32 %v1825, 15
      %v1858 = vshrl.u32 %v1826, 15
      %v1859 = vshrl.u32 %v1827, 15
      %v1860 = vshrl.u32 %v1828, 15
      %v1861 = vshrl.u32 %v1829, 15
      %v1862 = vshrl.u32 %v1830, 15
      %v1863 = vshrl.u32 %v1831, 15
      %v1864 = vshrl.u32 %v1832, 15
      %v1865 = vshrl.u32 %v1833, 15
      %v1866 = vshrl.u32 %v1834, 15
      %v1867 = vshrl.u32 %v1835, 15
      %v1868 = vshrl.u32 %v1836, 15
      %v1869 = vshrl.u32 %v1837, 15
      %v1870 = vshrl.u32 %v1838, 15
      %v1871 = vxor.u32 %v1807, %v1839
      %v1872 = vxor.u32 %v1808, %v1840
      %v1873 = vxor.u32 %v1809, %v1841
      %v1874 = vxor.u32 %v1810, %v1842
      %v1875 = vxor.u32 %v1811, %v1843
      %v1876 = vxor.u32 %v1812, %v1844
      %v1877 = vxor.u32 %v1813, %v1845
      %v1878 = vxor.u32 %v1814, %v1846
      %v1879 = vxor.u32 %v1815, %v1847
      %v1880 = vxor.u32 %v1816, %v1848
      %v1881 = vxor.u32 %v1817, %v1849
      %v1882 = vxor.u32 %v1818, %v1850
      %v1883 = vxor.u32 %v1819, %v1851
      %v1884 = vxor.u32 %v1820, %v1852
      %v1885 = vxor.u32 %v1821, %v1853
      %v1886 = vxor.u32 %v1822, %v1854
      %v1887 = vxor.u32 %v1823, %v1855
      %v1888 = vxor.u32 %v1824, %v1856
      %v1889 = vxor.u32 %v1825, %v1857
      %v1890 = vxor.u32 %v1826, %v1858
      %v1891 = vxor.u32 %v1827, %v1859
      %v1892 = vxor.u32 %v1828, %v1860
      %v1893 = vxor.u32 %v1829, %v1861
      %v1894 = vxor.u32 %v1830, %v1862
      %v1895 = vxor.u32 %v1831, %v1863
      %v1896 = vxor.u32 %v1832, %v1864
      %v1897 = vxor.u32 %v1833, %v1865
      %v1898 = vxor.u32 %v1834, %v1866
      %v1899 = vxor.u32 %v1835, %v1867
      %v1900 = vxor.u32 %v1836, %v1868
      %v1901 = vxor.u32 %v1837, %v1869
      %v1902 = vxor.u32 %v1838, %v1870
      %v1903 = vshrl.u32 %v1871, 1
      %v1904 = vshrl.u32 %v1872, 1
      %v1905 = vshrl.u32 %v1873, 1
      %v1906 = vshrl.u32 %v1874, 1
      %v1907 = vshrl.u32 %v1875, 1
      %v1908 = vshrl.u32 %v1876, 1
      %v1909 = vshrl.u32 %v1877, 1
      %v1910 = vshrl.u32 %v1878, 1
      %v1911 = vshrl.u32 %v1879, 1
      %v1912 = vshrl.u32 %v1880, 1
      %v1913 = vshrl.u32 %v1881, 1
      %v1914 = vshrl.u32 %v1882, 1
      %v1915 = vshrl.u32 %v1883, 1
      %v1916 = vshrl.u32 %v1884, 1
      %v1917 = vshrl.u32 %v1885, 1
      %v1918 = vshrl.u32 %v1886, 1
      %v1919 = vshrl.u32 %v1887, 1
      %v1920 = vshrl.u32 %v1888, 1
      %v1921 = vshrl.u32 %v1889, 1
      %v1922 = vshrl.u32 %v1890, 1
      %v1923 = vshrl.u32 %v1891, 1
      %v1924 = vshrl.u32 %v1892, 1
      %v1925 = vshrl.u32 %v1893, 1
      %v1926 = vshrl.u32 %v1894, 1
      %v1927 = vshrl.u32 %v1895, 1
      %v1928 = vshrl.u32 %v1896, 1
      %v1929 = vshrl.u32 %v1897, 1
      %v1930 = vshrl.u32 %v1898, 1
      %v1931 = vshrl.u32 %v1899, 1
      %v1932 = vshrl.u32 %v1900, 1
      %v1933 = vshrl.u32 %v1901, 1
      %v1934 = vshrl.u32 %v1902, 1
      %vm1935 = vcmp.ge.s32.totalorder %v1903, 858993459
      %vm1936 = vcmp.ge.s32.totalorder %v1904, 858993459
      %vm1937 = vcmp.ge.s32.totalorder %v1905, 858993459
      %vm1938 = vcmp.ge.s32.totalorder %v1906, 858993459
      %vm1939 = vcmp.ge.s32.totalorder %v1907, 858993459
      %vm1940 = vcmp.ge.s32.totalorder %v1908, 858993459
      %vm1941 = vcmp.ge.s32.totalorder %v1909, 858993459
      %vm1942 = vcmp.ge.s32.totalorder %v1910, 858993459
      %vm1943 = vcmp.ge.s32.totalorder %v1911, 858993459
      %vm1944 = vcmp.ge.s32.totalorder %v1912, 858993459
      %vm1945 = vcmp.ge.s32.totalorder %v1913, 858993459
      %vm1946 = vcmp.ge.s32.totalorder %v1914, 858993459
      %vm1947 = vcmp.ge.s32.totalorder %v1915, 858993459
      %vm1948 = vcmp.ge.s32.totalorder %v1916, 858993459
      %vm1949 = vcmp.ge.s32.totalorder %v1917, 858993459
      %vm1950 = vcmp.ge.s32.totalorder %v1918, 858993459
      %vm1951 = vcmp.ge.s32.totalorder %v1919, 858993459
      %vm1952 = vcmp.ge.s32.totalorder %v1920, 858993459
      %vm1953 = vcmp.ge.s32.totalorder %v1921, 858993459
      %vm1954 = vcmp.ge.s32.totalorder %v1922, 858993459
      %vm1955 = vcmp.ge.s32.totalorder %v1923, 858993459
      %vm1956 = vcmp.ge.s32.totalorder %v1924, 858993459
      %vm1957 = vcmp.ge.s32.totalorder %v1925, 858993459
      %vm1958 = vcmp.ge.s32.totalorder %v1926, 858993459
      %vm1959 = vcmp.ge.s32.totalorder %v1927, 858993459
      %vm1960 = vcmp.ge.s32.totalorder %v1928, 858993459
      %vm1961 = vcmp.ge.s32.totalorder %v1929, 858993459
      %vm1962 = vcmp.ge.s32.totalorder %v1930, 858993459
      %vm1963 = vcmp.ge.s32.totalorder %v1931, 858993459
      %vm1964 = vcmp.ge.s32.totalorder %v1932, 858993459
      %vm1965 = vcmp.ge.s32.totalorder %v1933, 858993459
      %vm1966 = vcmp.ge.s32.totalorder %v1934, 858993459
      %v1967 = vsel %vm1935, %v1025, 0.0
      %v1968 = vsel %vm1936, %v1040, 0.0
      %v1969 = vsel %vm1937, %v1055, 0.0
      %v1970 = vsel %vm1938, %v1070, 0.0
      %v1971 = vsel %vm1939, %v1085, 0.0
      %v1972 = vsel %vm1940, %v1100, 0.0
      %v1973 = vsel %vm1941, %v1115, 0.0
      %v1974 = vsel %vm1942, %v1130, 0.0
      %v1975 = vsel %vm1943, %v1145, 0.0
      %v1976 = vsel %vm1944, %v1160, 0.0
      %v1977 = vsel %vm1945, %v1175, 0.0
      %v1978 = vsel %vm1946, %v1190, 0.0
      %v1979 = vsel %vm1947, %v1205, 0.0
      %v1980 = vsel %vm1948, %v1220, 0.0
      %v1981 = vsel %vm1949, %v1235, 0.0
      %v1982 = vsel %vm1950, %v1250, 0.0
      %v1983 = vsel %vm1951, %v1265, 0.0
      %v1984 = vsel %vm1952, %v1280, 0.0
      %v1985 = vsel %vm1953, %v1295, 0.0
      %v1986 = vsel %vm1954, %v1310, 0.0
      %v1987 = vsel %vm1955, %v1325, 0.0
      %v1988 = vsel %vm1956, %v1340, 0.0
      %v1989 = vsel %vm1957, %v1355, 0.0
      %v1990 = vsel %vm1958, %v1370, 0.0
      %v1991 = vsel %vm1959, %v1385, 0.0
      %v1992 = vsel %vm1960, %v1400, 0.0
      %v1993 = vsel %vm1961, %v1415, 0.0
      %v1994 = vsel %vm1962, %v1430, 0.0
      %v1995 = vsel %vm1963, %v1445, 0.0
      %v1996 = vsel %vm1964, %v1460, 0.0
      %v1997 = vsel %vm1965, %v1475, 0.0
      %v1998 = vsel %vm1966, %v1490, 0.0
      %v1999 = vld [vmem:[%s4] sm:$0xff]
      %v2000 = vld [vmem:[%s4 + $0x8] sm:$0xff]
      %v2001 = vld [vmem:[%s4 + $0x10] sm:$0xff]
      %v2002 = vld [vmem:[%s4 + $0x18] sm:$0xff]
      %v2003 = vld [vmem:[%s4 + $0x20] sm:$0xff]
      %v2004 = vld [vmem:[%s4 + $0x28] sm:$0xff]
      %v2005 = vld [vmem:[%s4 + $0x30] sm:$0xff]
      %v2006 = vld [vmem:[%s4 + $0x38] sm:$0xff]
      %v2007 = vld [vmem:[%s4 + $0x40] sm:$0xff]
      %v2008 = vld [vmem:[%s4 + $0x48] sm:$0xff]
      %v2009 = vld [vmem:[%s4 + $0x50] sm:$0xff]
      %v2010 = vld [vmem:[%s4 + $0x58] sm:$0xff]
      %v2011 = vld [vmem:[%s4 + $0x60] sm:$0xff]
      %v2012 = vld [vmem:[%s4 + $0x68] sm:$0xff]
      %v2013 = vld [vmem:[%s4 + $0x70] sm:$0xff]
      %v2014 = vld [vmem:[%s4 + $0x78] sm:$0xff]
      %v2015 = vld [vmem:[%s4 + $0x80] sm:$0xff]
      %v2016 = vld [vmem:[%s4 + $0x88] sm:$0xff]
      %v2017 = vld [vmem:[%s4 + $0x90] sm:$0xff]
      %v2018 = vld [vmem:[%s4 + $0x98] sm:$0xff]
      %v2019 = vld [vmem:[%s4 + $0xa0] sm:$0xff]
      %v2020 = vld [vmem:[%s4 + $0xa8] sm:$0xff]
      %v2021 = vld [vmem:[%s4 + $0xb0] sm:$0xff]
      %v2022 = vld [vmem:[%s4 + $0xb8] sm:$0xff]
      %v2023 = vld [vmem:[%s4 + $0xc0] sm:$0xff]
      %v2024 = vld [vmem:[%s4 + $0xc8] sm:$0xff]
      %v2025 = vld [vmem:[%s4 + $0xd0] sm:$0xff]
      %v2026 = vld [vmem:[%s4 + $0xd8] sm:$0xff]
      %v2027 = vld [vmem:[%s4 + $0xe0] sm:$0xff]
      %v2028 = vld [vmem:[%s4 + $0xe8] sm:$0xff]
      %v2029 = vld [vmem:[%s4 + $0xf0] sm:$0xff]
      %v2030 = vld [vmem:[%s4 + $0xf8] sm:$0xff]
      %v2031 = vld [vmem:[%s5] sm:$0x1]
      %v2033 = vperm.slane %v2031, 0
      %2035 = vmatpush.msra.mxu0 %v2014
      %2036 = vmatpush.msra.mxu0 %v2013
      %2037 = vmatpush.msra.mxu0 %v2012
      %2038 = vmatpush.msra.mxu0 %v2011
      %2039 = vmatpush.msra.mxu0 %v2010
      %2040 = vmatpush.msra.mxu0 %v2009
      %2041 = vmatpush.msra.mxu0 %v2008
      %2042 = vmatpush.msra.mxu0 %v2007
      %2043 = vmatpush.msra.mxu0 %v2006
      %2044 = vmatpush.msra.mxu0 %v2005
      %2045 = vmatpush.msra.mxu0 %v2004
      %2046 = vmatpush.msra.mxu0 %v2003
      %2047 = vmatpush.msra.mxu0 %v2002
      %2048 = vmatpush.msra.mxu0 %v2001
      %2049 = vmatpush.msra.mxu0 %v2000
      %2050 = vmatpush.msra.mxu0 %v1999
      %2051 = vmatmul.f32.gmra.mxu0 %v1967
      %v2052 = vpop.f32.mrf.mxu0
      %v2053 = vadd.f32 %v2033, %v2052
      %2054 = vmatmul.f32.gmra.mxu0 %v1969
      %v2055 = vpop.f32.mrf.mxu0
      %v2056 = vadd.f32 %v2033, %v2055
      %2057 = vmatmul.f32.gmra.mxu0 %v1971
      %v2058 = vpop.f32.mrf.mxu0
      %v2059 = vadd.f32 %v2033, %v2058
      %2060 = vmatmul.f32.gmra.mxu0 %v1973
      %v2061 = vpop.f32.mrf.mxu0
      %v2062 = vadd.f32 %v2033, %v2061
      %2063 = vmatmul.f32.gmra.mxu0 %v1975
      %v2064 = vpop.f32.mrf.mxu0
      %v2065 = vadd.f32 %v2033, %v2064
      %2066 = vmatmul.f32.gmra.mxu0 %v1977
      %v2067 = vpop.f32.mrf.mxu0
      %v2068 = vadd.f32 %v2033, %v2067
      %2069 = vmatmul.f32.gmra.mxu0 %v1979
      %v2070 = vpop.f32.mrf.mxu0
      %v2071 = vadd.f32 %v2033, %v2070
      %2072 = vmatmul.f32.gmra.mxu0 %v1981
      %v2073 = vpop.f32.mrf.mxu0
      %v2074 = vadd.f32 %v2033, %v2073
      %2075 = vmatmul.f32.gmra.mxu0 %v1983
      %v2076 = vpop.f32.mrf.mxu0
      %v2077 = vadd.f32 %v2033, %v2076
      %2078 = vmatmul.f32.gmra.mxu0 %v1985
      %v2079 = vpop.f32.mrf.mxu0
      %v2080 = vadd.f32 %v2033, %v2079
      %2081 = vmatmul.f32.gmra.mxu0 %v1987
      %v2082 = vpop.f32.mrf.mxu0
      %v2083 = vadd.f32 %v2033, %v2082
      %2084 = vmatmul.f32.gmra.mxu0 %v1989
      %v2085 = vpop.f32.mrf.mxu0
      %v2086 = vadd.f32 %v2033, %v2085
      %2087 = vmatmul.f32.gmra.mxu0 %v1991
      %v2088 = vpop.f32.mrf.mxu0
      %v2089 = vadd.f32 %v2033, %v2088
      %2090 = vmatmul.f32.gmra.mxu0 %v1993
      %v2091 = vpop.f32.mrf.mxu0
      %v2092 = vadd.f32 %v2033, %v2091
      %2093 = vmatmul.f32.gmra.mxu0 %v1995
      %v2094 = vpop.f32.mrf.mxu0
      %v2095 = vadd.f32 %v2033, %v2094
      %2096 = vmatmul.f32.gmra.mxu0 %v1997
      %v2097 = vpop.f32.mrf.mxu0
      %v2098 = vadd.f32 %v2033, %v2097
      %2099 = vdwg.mxu0
      %2100 = vmatpush.msra.mxu0 %v2030
      %2101 = vmatpush.msra.mxu0 %v2029
      %2102 = vmatpush.msra.mxu0 %v2028
      %2103 = vmatpush.msra.mxu0 %v2027
      %2104 = vmatpush.msra.mxu0 %v2026
      %2105 = vmatpush.msra.mxu0 %v2025
      %2106 = vmatpush.msra.mxu0 %v2024
      %2107 = vmatpush.msra.mxu0 %v2023
      %2108 = vmatpush.msra.mxu0 %v2022
      %2109 = vmatpush.msra.mxu0 %v2021
      %2110 = vmatpush.msra.mxu0 %v2020
      %2111 = vmatpush.msra.mxu0 %v2019
      %2112 = vmatpush.msra.mxu0 %v2018
      %2113 = vmatpush.msra.mxu0 %v2017
      %2114 = vmatpush.msra.mxu0 %v2016
      %2115 = vmatpush.msra.mxu0 %v2015
      %2116 = vmatmul.f32.gmra.mxu0 %v1968
      %v2117 = vpop.f32.mrf.mxu0
      %v2118 = vadd.f32 %v2053, %v2117
      %2119 = vmatmul.f32.gmra.mxu0 %v1970
      %v2120 = vpop.f32.mrf.mxu0
      %v2121 = vadd.f32 %v2056, %v2120
      %2122 = vmatmul.f32.gmra.mxu0 %v1972
      %v2123 = vpop.f32.mrf.mxu0
      %v2124 = vadd.f32 %v2059, %v2123
      %2125 = vmatmul.f32.gmra.mxu0 %v1974
      %v2126 = vpop.f32.mrf.mxu0
      %v2127 = vadd.f32 %v2062, %v2126
      %2128 = vmatmul.f32.gmra.mxu0 %v1976
      %v2129 = vpop.f32.mrf.mxu0
      %v2130 = vadd.f32 %v2065, %v2129
      %2131 = vmatmul.f32.gmra.mxu0 %v1978
      %v2132 = vpop.f32.mrf.mxu0
      %v2133 = vadd.f32 %v2068, %v2132
      %2134 = vmatmul.f32.gmra.mxu0 %v1980
      %v2135 = vpop.f32.mrf.mxu0
      %v2136 = vadd.f32 %v2071, %v2135
      %2137 = vmatmul.f32.gmra.mxu0 %v1982
      %v2138 = vpop.f32.mrf.mxu0
      %v2139 = vadd.f32 %v2074, %v2138
      %2140 = vmatmul.f32.gmra.mxu0 %v1984
      %v2141 = vpop.f32.mrf.mxu0
      %v2142 = vadd.f32 %v2077, %v2141
      %2143 = vmatmul.f32.gmra.mxu0 %v1986
      %v2144 = vpop.f32.mrf.mxu0
      %v2145 = vadd.f32 %v2080, %v2144
      %2146 = vmatmul.f32.gmra.mxu0 %v1988
      %v2147 = vpop.f32.mrf.mxu0
      %v2148 = vadd.f32 %v2083, %v2147
      %2149 = vmatmul.f32.gmra.mxu0 %v1990
      %v2150 = vpop.f32.mrf.mxu0
      %v2151 = vadd.f32 %v2086, %v2150
      %2152 = vmatmul.f32.gmra.mxu0 %v1992
      %v2153 = vpop.f32.mrf.mxu0
      %v2154 = vadd.f32 %v2089, %v2153
      %2155 = vmatmul.f32.gmra.mxu0 %v1994
      %v2156 = vpop.f32.mrf.mxu0
      %v2157 = vadd.f32 %v2092, %v2156
      %2158 = vmatmul.f32.gmra.mxu0 %v1996
      %v2159 = vpop.f32.mrf.mxu0
      %v2160 = vadd.f32 %v2095, %v2159
      %2161 = vmatmul.f32.gmra.mxu0 %v1998
      %v2162 = vpop.f32.mrf.mxu0
      %v2163 = vadd.f32 %v2098, %v2162
      %2164 = vdwg.mxu0
      %v2165 = vxor.u32 %v2118, 2147483648
      %v2166 = vxor.u32 %v2121, 2147483648
      %v2167 = vxor.u32 %v2124, 2147483648
      %v2168 = vxor.u32 %v2127, 2147483648
      %v2169 = vxor.u32 %v2130, 2147483648
      %v2170 = vxor.u32 %v2133, 2147483648
      %v2171 = vxor.u32 %v2136, 2147483648
      %v2172 = vxor.u32 %v2139, 2147483648
      %v2173 = vxor.u32 %v2142, 2147483648
      %v2174 = vxor.u32 %v2145, 2147483648
      %v2175 = vxor.u32 %v2148, 2147483648
      %v2176 = vxor.u32 %v2151, 2147483648
      %v2177 = vxor.u32 %v2154, 2147483648
      %v2178 = vxor.u32 %v2157, 2147483648
      %v2179 = vxor.u32 %v2160, 2147483648
      %v2180 = vxor.u32 %v2163, 2147483648
      %v2181 = vmul.f32 %v2165, 1.442695
      %v2182 = vpow.pop %v2181
      %v2183 = vmul.f32 %v2166, 1.442695
      %v2184 = vpow.pop %v2183
      %v2185 = vmul.f32 %v2167, 1.442695
      %v2186 = vpow.pop %v2185
      %v2187 = vmul.f32 %v2168, 1.442695
      %v2188 = vpow.pop %v2187
      %v2189 = vmul.f32 %v2169, 1.442695
      %v2190 = vpow.pop %v2189
      %v2191 = vmul.f32 %v2170, 1.442695
      %v2192 = vpow.pop %v2191
      %v2193 = vmul.f32 %v2171, 1.442695
      %v2194 = vpow.pop %v2193
      %v2195 = vmul.f32 %v2172, 1.442695
      %v2196 = vpow.pop %v2195
      %v2197 = vmul.f32 %v2173, 1.442695
      %v2198 = vpow.pop %v2197
      %v2199 = vmul.f32 %v2174, 1.442695
      %v2200 = vpow.pop %v2199
      %v2201 = vmul.f32 %v2175, 1.442695
      %v2202 = vpow.pop %v2201
      %v2203 = vmul.f32 %v2176, 1.442695
      %v2204 = vpow.pop %v2203
      %v2205 = vmul.f32 %v2177, 1.442695
      %v2206 = vpow.pop %v2205
      %v2207 = vmul.f32 %v2178, 1.442695
      %v2208 = vpow.pop %v2207
      %v2209 = vmul.f32 %v2179, 1.442695
      %v2210 = vpow.pop %v2209
      %v2211 = vmul.f32 %v2180, 1.442695
      %v2212 = vpow.pop %v2211
      %v2213 = vadd.f32 %v2182, 1.0
      %v2214 = vadd.f32 %v2184, 1.0
      %v2215 = vadd.f32 %v2186, 1.0
      %v2216 = vadd.f32 %v2188, 1.0
      %v2217 = vadd.f32 %v2190, 1.0
      %v2218 = vadd.f32 %v2192, 1.0
      %v2219 = vadd.f32 %v2194, 1.0
      %v2220 = vadd.f32 %v2196, 1.0
      %v2221 = vadd.f32 %v2198, 1.0
      %v2222 = vadd.f32 %v2200, 1.0
      %v2223 = vadd.f32 %v2202, 1.0
      %v2224 = vadd.f32 %v2204, 1.0
      %v2225 = vadd.f32 %v2206, 1.0
      %v2226 = vadd.f32 %v2208, 1.0
      %v2227 = vadd.f32 %v2210, 1.0
      %v2228 = vadd.f32 %v2212, 1.0
      %v2229 = vrcp.pop %v2213
      %v2230 = vmul.f32 %v2213, %v2229
      %v2231 = vsub.f32 1.0, %v2230
      %v2232 = vmul.f32 %v2229, %v2231
      %v2233 = vadd.f32 %v2229, %v2232
      %vm2234 = vweird.f32 %v2213
      %vm2235 = vweird.f32 %v2229
      %vm2236 = vmor %vm2234, %vm2235
      %v2237 = vsel %vm2236, %v2229, %v2233
      %v2238 = vand.u32 2147483647, %v2213
      %vm2239 = vcmp.eq.f32.partialorder %v2238, 8.507059e+37
      %v2240 = vand.u32 %v2213, 2147483648
      %v2241 = vor.u32 1.1754944e-38, %v2240
      %v2242 = vsel %vm2239, %v2241, %v2237
      %v2243 = vmul.f32 1.0, %v2242
      %v2244 = vrcp.pop %v2214
      %v2245 = vmul.f32 %v2214, %v2244
      %v2246 = vsub.f32 1.0, %v2245
      %v2247 = vmul.f32 %v2244, %v2246
      %v2248 = vadd.f32 %v2244, %v2247
      %vm2249 = vweird.f32 %v2214
      %vm2250 = vweird.f32 %v2244
      %vm2251 = vmor %vm2249, %vm2250
      %v2252 = vsel %vm2251, %v2244, %v2248
      %v2253 = vand.u32 2147483647, %v2214
      %vm2254 = vcmp.eq.f32.partialorder %v2253, 8.507059e+37
      %v2255 = vand.u32 %v2214, 2147483648
      %v2256 = vor.u32 1.1754944e-38, %v2255
      %v2257 = vsel %vm2254, %v2256, %v2252
      %v2258 = vmul.f32 1.0, %v2257
      %v2259 = vrcp.pop %v2215
      %v2260 = vmul.f32 %v2215, %v2259
      %v2261 = vsub.f32 1.0, %v2260
      %v2262 = vmul.f32 %v2259, %v2261
      %v2263 = vadd.f32 %v2259, %v2262
      %vm2264 = vweird.f32 %v2215
      %vm2265 = vweird.f32 %v2259
      %vm2266 = vmor %vm2264, %vm2265
      %v2267 = vsel %vm2266, %v2259, %v2263
      %v2268 = vand.u32 2147483647, %v2215
      %vm2269 = vcmp.eq.f32.partialorder %v2268, 8.507059e+37
      %v2270 = vand.u32 %v2215, 2147483648
      %v2271 = vor.u32 1.1754944e-38, %v2270
      %v2272 = vsel %vm2269, %v2271, %v2267
      %v2273 = vmul.f32 1.0, %v2272
      %v2274 = vrcp.pop %v2216
      %v2275 = vmul.f32 %v2216, %v2274
      %v2276 = vsub.f32 1.0, %v2275
      %v2277 = vmul.f32 %v2274, %v2276
      %v2278 = vadd.f32 %v2274, %v2277
      %vm2279 = vweird.f32 %v2216
      %vm2280 = vweird.f32 %v2274
      %vm2281 = vmor %vm2279, %vm2280
      %v2282 = vsel %vm2281, %v2274, %v2278
      %v2283 = vand.u32 2147483647, %v2216
      %vm2284 = vcmp.eq.f32.partialorder %v2283, 8.507059e+37
      %v2285 = vand.u32 %v2216, 2147483648
      %v2286 = vor.u32 1.1754944e-38, %v2285
      %v2287 = vsel %vm2284, %v2286, %v2282
      %v2288 = vmul.f32 1.0, %v2287
      %v2289 = vrcp.pop %v2217
      %v2290 = vmul.f32 %v2217, %v2289
      %v2291 = vsub.f32 1.0, %v2290
      %v2292 = vmul.f32 %v2289, %v2291
      %v2293 = vadd.f32 %v2289, %v2292
      %vm2294 = vweird.f32 %v2217
      %vm2295 = vweird.f32 %v2289
      %vm2296 = vmor %vm2294, %vm2295
      %v2297 = vsel %vm2296, %v2289, %v2293
      %v2298 = vand.u32 2147483647, %v2217
      %vm2299 = vcmp.eq.f32.partialorder %v2298, 8.507059e+37
      %v2300 = vand.u32 %v2217, 2147483648
      %v2301 = vor.u32 1.1754944e-38, %v2300
      %v2302 = vsel %vm2299, %v2301, %v2297
      %v2303 = vmul.f32 1.0, %v2302
      %v2304 = vrcp.pop %v2218
      %v2305 = vmul.f32 %v2218, %v2304
      %v2306 = vsub.f32 1.0, %v2305
      %v2307 = vmul.f32 %v2304, %v2306
      %v2308 = vadd.f32 %v2304, %v2307
      %vm2309 = vweird.f32 %v2218
      %vm2310 = vweird.f32 %v2304
      %vm2311 = vmor %vm2309, %vm2310
      %v2312 = vsel %vm2311, %v2304, %v2308
      %v2313 = vand.u32 2147483647, %v2218
      %vm2314 = vcmp.eq.f32.partialorder %v2313, 8.507059e+37
      %v2315 = vand.u32 %v2218, 2147483648
      %v2316 = vor.u32 1.1754944e-38, %v2315
      %v2317 = vsel %vm2314, %v2316, %v2312
      %v2318 = vmul.f32 1.0, %v2317
      %v2319 = vrcp.pop %v2219
      %v2320 = vmul.f32 %v2219, %v2319
      %v2321 = vsub.f32 1.0, %v2320
      %v2322 = vmul.f32 %v2319, %v2321
      %v2323 = vadd.f32 %v2319, %v2322
      %vm2324 = vweird.f32 %v2219
      %vm2325 = vweird.f32 %v2319
      %vm2326 = vmor %vm2324, %vm2325
      %v2327 = vsel %vm2326, %v2319, %v2323
      %v2328 = vand.u32 2147483647, %v2219
      %vm2329 = vcmp.eq.f32.partialorder %v2328, 8.507059e+37
      %v2330 = vand.u32 %v2219, 2147483648
      %v2331 = vor.u32 1.1754944e-38, %v2330
      %v2332 = vsel %vm2329, %v2331, %v2327
      %v2333 = vmul.f32 1.0, %v2332
      %v2334 = vrcp.pop %v2220
      %v2335 = vmul.f32 %v2220, %v2334
      %v2336 = vsub.f32 1.0, %v2335
      %v2337 = vmul.f32 %v2334, %v2336
      %v2338 = vadd.f32 %v2334, %v2337
      %vm2339 = vweird.f32 %v2220
      %vm2340 = vweird.f32 %v2334
      %vm2341 = vmor %vm2339, %vm2340
      %v2342 = vsel %vm2341, %v2334, %v2338
      %v2343 = vand.u32 2147483647, %v2220
      %vm2344 = vcmp.eq.f32.partialorder %v2343, 8.507059e+37
      %v2345 = vand.u32 %v2220, 2147483648
      %v2346 = vor.u32 1.1754944e-38, %v2345
      %v2347 = vsel %vm2344, %v2346, %v2342
      %v2348 = vmul.f32 1.0, %v2347
      %v2349 = vrcp.pop %v2221
      %v2350 = vmul.f32 %v2221, %v2349
      %v2351 = vsub.f32 1.0, %v2350
      %v2352 = vmul.f32 %v2349, %v2351
      %v2353 = vadd.f32 %v2349, %v2352
      %vm2354 = vweird.f32 %v2221
      %vm2355 = vweird.f32 %v2349
      %vm2356 = vmor %vm2354, %vm2355
      %v2357 = vsel %vm2356, %v2349, %v2353
      %v2358 = vand.u32 2147483647, %v2221
      %vm2359 = vcmp.eq.f32.partialorder %v2358, 8.507059e+37
      %v2360 = vand.u32 %v2221, 2147483648
      %v2361 = vor.u32 1.1754944e-38, %v2360
      %v2362 = vsel %vm2359, %v2361, %v2357
      %v2363 = vmul.f32 1.0, %v2362
      %v2364 = vrcp.pop %v2222
      %v2365 = vmul.f32 %v2222, %v2364
      %v2366 = vsub.f32 1.0, %v2365
      %v2367 = vmul.f32 %v2364, %v2366
      %v2368 = vadd.f32 %v2364, %v2367
      %vm2369 = vweird.f32 %v2222
      %vm2370 = vweird.f32 %v2364
      %vm2371 = vmor %vm2369, %vm2370
      %v2372 = vsel %vm2371, %v2364, %v2368
      %v2373 = vand.u32 2147483647, %v2222
      %vm2374 = vcmp.eq.f32.partialorder %v2373, 8.507059e+37
      %v2375 = vand.u32 %v2222, 2147483648
      %v2376 = vor.u32 1.1754944e-38, %v2375
      %v2377 = vsel %vm2374, %v2376, %v2372
      %v2378 = vmul.f32 1.0, %v2377
      %v2379 = vrcp.pop %v2223
      %v2380 = vmul.f32 %v2223, %v2379
      %v2381 = vsub.f32 1.0, %v2380
      %v2382 = vmul.f32 %v2379, %v2381
      %v2383 = vadd.f32 %v2379, %v2382
      %vm2384 = vweird.f32 %v2223
      %vm2385 = vweird.f32 %v2379
      %vm2386 = vmor %vm2384, %vm2385
      %v2387 = vsel %vm2386, %v2379, %v2383
      %v2388 = vand.u32 2147483647, %v2223
      %vm2389 = vcmp.eq.f32.partialorder %v2388, 8.507059e+37
      %v2390 = vand.u32 %v2223, 2147483648
      %v2391 = vor.u32 1.1754944e-38, %v2390
      %v2392 = vsel %vm2389, %v2391, %v2387
      %v2393 = vmul.f32 1.0, %v2392
      %v2394 = vrcp.pop %v2224
      %v2395 = vmul.f32 %v2224, %v2394
      %v2396 = vsub.f32 1.0, %v2395
      %v2397 = vmul.f32 %v2394, %v2396
      %v2398 = vadd.f32 %v2394, %v2397
      %vm2399 = vweird.f32 %v2224
      %vm2400 = vweird.f32 %v2394
      %vm2401 = vmor %vm2399, %vm2400
      %v2402 = vsel %vm2401, %v2394, %v2398
      %v2403 = vand.u32 2147483647, %v2224
      %vm2404 = vcmp.eq.f32.partialorder %v2403, 8.507059e+37
      %v2405 = vand.u32 %v2224, 2147483648
      %v2406 = vor.u32 1.1754944e-38, %v2405
      %v2407 = vsel %vm2404, %v2406, %v2402
      %v2408 = vmul.f32 1.0, %v2407
      %v2409 = vrcp.pop %v2225
      %v2410 = vmul.f32 %v2225, %v2409
      %v2411 = vsub.f32 1.0, %v2410
      %v2412 = vmul.f32 %v2409, %v2411
      %v2413 = vadd.f32 %v2409, %v2412
      %vm2414 = vweird.f32 %v2225
      %vm2415 = vweird.f32 %v2409
      %vm2416 = vmor %vm2414, %vm2415
      %v2417 = vsel %vm2416, %v2409, %v2413
      %v2418 = vand.u32 2147483647, %v2225
      %vm2419 = vcmp.eq.f32.partialorder %v2418, 8.507059e+37
      %v2420 = vand.u32 %v2225, 2147483648
      %v2421 = vor.u32 1.1754944e-38, %v2420
      %v2422 = vsel %vm2419, %v2421, %v2417
      %v2423 = vmul.f32 1.0, %v2422
      %v2424 = vrcp.pop %v2226
      %v2425 = vmul.f32 %v2226, %v2424
      %v2426 = vsub.f32 1.0, %v2425
      %v2427 = vmul.f32 %v2424, %v2426
      %v2428 = vadd.f32 %v2424, %v2427
      %vm2429 = vweird.f32 %v2226
      %vm2430 = vweird.f32 %v2424
      %vm2431 = vmor %vm2429, %vm2430
      %v2432 = vsel %vm2431, %v2424, %v2428
      %v2433 = vand.u32 2147483647, %v2226
      %vm2434 = vcmp.eq.f32.partialorder %v2433, 8.507059e+37
      %v2435 = vand.u32 %v2226, 2147483648
      %v2436 = vor.u32 1.1754944e-38, %v2435
      %v2437 = vsel %vm2434, %v2436, %v2432
      %v2438 = vmul.f32 1.0, %v2437
      %v2439 = vrcp.pop %v2227
      %v2440 = vmul.f32 %v2227, %v2439
      %v2441 = vsub.f32 1.0, %v2440
      %v2442 = vmul.f32 %v2439, %v2441
      %v2443 = vadd.f32 %v2439, %v2442
      %vm2444 = vweird.f32 %v2227
      %vm2445 = vweird.f32 %v2439
      %vm2446 = vmor %vm2444, %vm2445
      %v2447 = vsel %vm2446, %v2439, %v2443
      %v2448 = vand.u32 2147483647, %v2227
      %vm2449 = vcmp.eq.f32.partialorder %v2448, 8.507059e+37
      %v2450 = vand.u32 %v2227, 2147483648
      %v2451 = vor.u32 1.1754944e-38, %v2450
      %v2452 = vsel %vm2449, %v2451, %v2447
      %v2453 = vmul.f32 1.0, %v2452
      %v2454 = vrcp.pop %v2228
      %v2455 = vmul.f32 %v2228, %v2454
      %v2456 = vsub.f32 1.0, %v2455
      %v2457 = vmul.f32 %v2454, %v2456
      %v2458 = vadd.f32 %v2454, %v2457
      %vm2459 = vweird.f32 %v2228
      %vm2460 = vweird.f32 %v2454
      %vm2461 = vmor %vm2459, %vm2460
      %v2462 = vsel %vm2461, %v2454, %v2458
      %v2463 = vand.u32 2147483647, %v2228
      %vm2464 = vcmp.eq.f32.partialorder %v2463, 8.507059e+37
      %v2465 = vand.u32 %v2228, 2147483648
      %v2466 = vor.u32 1.1754944e-38, %v2465
      %v2467 = vsel %vm2464, %v2466, %v2462
      %v2468 = vmul.f32 1.0, %v2467
      %s2469 = sadd.s32 %s1528, 2
      %v2470 = vstv %s2469
      %v2471 = vadd.s32 %v1530, %v2470
      %v2472 = vadd.s32 %v1531, %v2470
      %v2473 = vadd.s32 %v1532, %v2470
      %v2474 = vadd.s32 %v1533, %v2470
      %v2475 = vadd.s32 %v1534, %v2470
      %v2476 = vadd.s32 %v1535, %v2470
      %v2477 = vadd.s32 %v1536, %v2470
      %v2478 = vadd.s32 %v1537, %v2470
      %v2479 = vadd.s32 %v1538, %v2470
      %v2480 = vadd.s32 %v1539, %v2470
      %v2481 = vadd.s32 %v1540, %v2470
      %v2482 = vadd.s32 %v1541, %v2470
      %v2483 = vadd.s32 %v1542, %v2470
      %v2484 = vadd.s32 %v1543, %v2470
      %v2485 = vadd.s32 %v1544, %v2470
      %v2486 = vadd.s32 %v1545, %v2470
      %v2487 = vshrl.u32 %v2471, 16
      %v2488 = vshrl.u32 %v2472, 16
      %v2489 = vshrl.u32 %v2473, 16
      %v2490 = vshrl.u32 %v2474, 16
      %v2491 = vshrl.u32 %v2475, 16
      %v2492 = vshrl.u32 %v2476, 16
      %v2493 = vshrl.u32 %v2477, 16
      %v2494 = vshrl.u32 %v2478, 16
      %v2495 = vshrl.u32 %v2479, 16
      %v2496 = vshrl.u32 %v2480, 16
      %v2497 = vshrl.u32 %v2481, 16
      %v2498 = vshrl.u32 %v2482, 16
      %v2499 = vshrl.u32 %v2483, 16
      %v2500 = vshrl.u32 %v2484, 16
      %v2501 = vshrl.u32 %v2485, 16
      %v2502 = vshrl.u32 %v2486, 16
      %v2503 = vxor.u32 %v2471, %v2487
      %v2504 = vxor.u32 %v2472, %v2488
      %v2505 = vxor.u32 %v2473, %v2489
      %v2506 = vxor.u32 %v2474, %v2490
      %v2507 = vxor.u32 %v2475, %v2491
      %v2508 = vxor.u32 %v2476, %v2492
      %v2509 = vxor.u32 %v2477, %v2493
      %v2510 = vxor.u32 %v2478, %v2494
      %v2511 = vxor.u32 %v2479, %v2495
      %v2512 = vxor.u32 %v2480, %v2496
      %v2513 = vxor.u32 %v2481, %v2497
      %v2514 = vxor.u32 %v2482, %v2498
      %v2515 = vxor.u32 %v2483, %v2499
      %v2516 = vxor.u32 %v2484, %v2500
      %v2517 = vxor.u32 %v2485, %v2501
      %v2518 = vxor.u32 %v2486, %v2502
      %v2519 = vmul.u32 %v2503, 2146121005
      %v2520 = vmul.u32 %v2504, 2146121005
      %v2521 = vmul.u32 %v2505, 2146121005
      %v2522 = vmul.u32 %v2506, 2146121005
      %v2523 = vmul.u32 %v2507, 2146121005
      %v2524 = vmul.u32 %v2508, 2146121005
      %v2525 = vmul.u32 %v2509, 2146121005
      %v2526 = vmul.u32 %v2510, 2146121005
      %v2527 = vmul.u32 %v2511, 2146121005
      %v2528 = vmul.u32 %v2512, 2146121005
      %v2529 = vmul.u32 %v2513, 2146121005
      %v2530 = vmul.u32 %v2514, 2146121005
      %v2531 = vmul.u32 %v2515, 2146121005
      %v2532 = vmul.u32 %v2516, 2146121005
      %v2533 = vmul.u32 %v2517, 2146121005
      %v2534 = vmul.u32 %v2518, 2146121005
      %v2535 = vshrl.u32 %v2519, 15
      %v2536 = vshrl.u32 %v2520, 15
      %v2537 = vshrl.u32 %v2521, 15
      %v2538 = vshrl.u32 %v2522, 15
      %v2539 = vshrl.u32 %v2523, 15
      %v2540 = vshrl.u32 %v2524, 15
      %v2541 = vshrl.u32 %v2525, 15
      %v2542 = vshrl.u32 %v2526, 15
      %v2543 = vshrl.u32 %v2527, 15
      %v2544 = vshrl.u32 %v2528, 15
      %v2545 = vshrl.u32 %v2529, 15
      %v2546 = vshrl.u32 %v2530, 15
      %v2547 = vshrl.u32 %v2531, 15
      %v2548 = vshrl.u32 %v2532, 15
      %v2549 = vshrl.u32 %v2533, 15
      %v2550 = vshrl.u32 %v2534, 15
      %v2551 = vxor.u32 %v2519, %v2535
      %v2552 = vxor.u32 %v2520, %v2536
      %v2553 = vxor.u32 %v2521, %v2537
      %v2554 = vxor.u32 %v2522, %v2538
      %v2555 = vxor.u32 %v2523, %v2539
      %v2556 = vxor.u32 %v2524, %v2540
      %v2557 = vxor.u32 %v2525, %v2541
      %v2558 = vxor.u32 %v2526, %v2542
      %v2559 = vxor.u32 %v2527, %v2543
      %v2560 = vxor.u32 %v2528, %v2544
      %v2561 = vxor.u32 %v2529, %v2545
      %v2562 = vxor.u32 %v2530, %v2546
      %v2563 = vxor.u32 %v2531, %v2547
      %v2564 = vxor.u32 %v2532, %v2548
      %v2565 = vxor.u32 %v2533, %v2549
      %v2566 = vxor.u32 %v2534, %v2550
      %v2567 = vmul.u32 %v2551, 2221713035
      %v2568 = vmul.u32 %v2552, 2221713035
      %v2569 = vmul.u32 %v2553, 2221713035
      %v2570 = vmul.u32 %v2554, 2221713035
      %v2571 = vmul.u32 %v2555, 2221713035
      %v2572 = vmul.u32 %v2556, 2221713035
      %v2573 = vmul.u32 %v2557, 2221713035
      %v2574 = vmul.u32 %v2558, 2221713035
      %v2575 = vmul.u32 %v2559, 2221713035
      %v2576 = vmul.u32 %v2560, 2221713035
      %v2577 = vmul.u32 %v2561, 2221713035
      %v2578 = vmul.u32 %v2562, 2221713035
      %v2579 = vmul.u32 %v2563, 2221713035
      %v2580 = vmul.u32 %v2564, 2221713035
      %v2581 = vmul.u32 %v2565, 2221713035
      %v2582 = vmul.u32 %v2566, 2221713035
      %v2583 = vshrl.u32 %v2567, 16
      %v2584 = vshrl.u32 %v2568, 16
      %v2585 = vshrl.u32 %v2569, 16
      %v2586 = vshrl.u32 %v2570, 16
      %v2587 = vshrl.u32 %v2571, 16
      %v2588 = vshrl.u32 %v2572, 16
      %v2589 = vshrl.u32 %v2573, 16
      %v2590 = vshrl.u32 %v2574, 16
      %v2591 = vshrl.u32 %v2575, 16
      %v2592 = vshrl.u32 %v2576, 16
      %v2593 = vshrl.u32 %v2577, 16
      %v2594 = vshrl.u32 %v2578, 16
      %v2595 = vshrl.u32 %v2579, 16
      %v2596 = vshrl.u32 %v2580, 16
      %v2597 = vshrl.u32 %v2581, 16
      %v2598 = vshrl.u32 %v2582, 16
      %v2599 = vxor.u32 %v2567, %v2583
      %v2600 = vxor.u32 %v2568, %v2584
      %v2601 = vxor.u32 %v2569, %v2585
      %v2602 = vxor.u32 %v2570, %v2586
      %v2603 = vxor.u32 %v2571, %v2587
      %v2604 = vxor.u32 %v2572, %v2588
      %v2605 = vxor.u32 %v2573, %v2589
      %v2606 = vxor.u32 %v2574, %v2590
      %v2607 = vxor.u32 %v2575, %v2591
      %v2608 = vxor.u32 %v2576, %v2592
      %v2609 = vxor.u32 %v2577, %v2593
      %v2610 = vxor.u32 %v2578, %v2594
      %v2611 = vxor.u32 %v2579, %v2595
      %v2612 = vxor.u32 %v2580, %v2596
      %v2613 = vxor.u32 %v2581, %v2597
      %v2614 = vxor.u32 %v2582, %v2598
      %v2615 = vxor.u32 %v1691, %v2470
      %v2616 = vshrl.u32 %v2615, 16
      %v2617 = vxor.u32 %v2615, %v2616
      %v2618 = vmul.u32 %v2617, 2146121005
      %v2619 = vshrl.u32 %v2618, 15
      %v2620 = vxor.u32 %v2618, %v2619
      %v2621 = vmul.u32 %v2620, 2221713035
      %v2622 = vshrl.u32 %v2621, 16
      %v2623 = vxor.u32 %v2621, %v2622
      %v2624 = vxor.u32 %v2599, %v2623
      %v2625 = vxor.u32 %v2600, %v2623
      %v2626 = vxor.u32 %v2601, %v2623
      %v2627 = vxor.u32 %v2602, %v2623
      %v2628 = vxor.u32 %v2603, %v2623
      %v2629 = vxor.u32 %v2604, %v2623
      %v2630 = vxor.u32 %v2605, %v2623
      %v2631 = vxor.u32 %v2606, %v2623
      %v2632 = vxor.u32 %v2607, %v2623
      %v2633 = vxor.u32 %v2608, %v2623
      %v2634 = vxor.u32 %v2609, %v2623
      %v2635 = vxor.u32 %v2610, %v2623
      %v2636 = vxor.u32 %v2611, %v2623
      %v2637 = vxor.u32 %v2612, %v2623
      %v2638 = vxor.u32 %v2613, %v2623
      %v2639 = vxor.u32 %v2614, %v2623
      %v2640 = vshrl.u32 %v2624, 16
      %v2641 = vshrl.u32 %v2625, 16
      %v2642 = vshrl.u32 %v2626, 16
      %v2643 = vshrl.u32 %v2627, 16
      %v2644 = vshrl.u32 %v2628, 16
      %v2645 = vshrl.u32 %v2629, 16
      %v2646 = vshrl.u32 %v2630, 16
      %v2647 = vshrl.u32 %v2631, 16
      %v2648 = vshrl.u32 %v2632, 16
      %v2649 = vshrl.u32 %v2633, 16
      %v2650 = vshrl.u32 %v2634, 16
      %v2651 = vshrl.u32 %v2635, 16
      %v2652 = vshrl.u32 %v2636, 16
      %v2653 = vshrl.u32 %v2637, 16
      %v2654 = vshrl.u32 %v2638, 16
      %v2655 = vshrl.u32 %v2639, 16
      %v2656 = vxor.u32 %v2624, %v2640
      %v2657 = vxor.u32 %v2625, %v2641
      %v2658 = vxor.u32 %v2626, %v2642
      %v2659 = vxor.u32 %v2627, %v2643
      %v2660 = vxor.u32 %v2628, %v2644
      %v2661 = vxor.u32 %v2629, %v2645
      %v2662 = vxor.u32 %v2630, %v2646
      %v2663 = vxor.u32 %v2631, %v2647
      %v2664 = vxor.u32 %v2632, %v2648
      %v2665 = vxor.u32 %v2633, %v2649
      %v2666 = vxor.u32 %v2634, %v2650
      %v2667 = vxor.u32 %v2635, %v2651
      %v2668 = vxor.u32 %v2636, %v2652
      %v2669 = vxor.u32 %v2637, %v2653
      %v2670 = vxor.u32 %v2638, %v2654
      %v2671 = vxor.u32 %v2639, %v2655
      %v2672 = vmul.u32 %v2656, 2146121005
      %v2673 = vmul.u32 %v2657, 2146121005
      %v2674 = vmul.u32 %v2658, 2146121005
      %v2675 = vmul.u32 %v2659, 2146121005
      %v2676 = vmul.u32 %v2660, 2146121005
      %v2677 = vmul.u32 %v2661, 2146121005
      %v2678 = vmul.u32 %v2662, 2146121005
      %v2679 = vmul.u32 %v2663, 2146121005
      %v2680 = vmul.u32 %v2664, 2146121005
      %v2681 = vmul.u32 %v2665, 2146121005
      %v2682 = vmul.u32 %v2666, 2146121005
      %v2683 = vmul.u32 %v2667, 2146121005
      %v2684 = vmul.u32 %v2668, 2146121005
      %v2685 = vmul.u32 %v2669, 2146121005
      %v2686 = vmul.u32 %v2670, 2146121005
      %v2687 = vmul.u32 %v2671, 2146121005
      %v2688 = vshrl.u32 %v2672, 15
      %v2689 = vshrl.u32 %v2673, 15
      %v2690 = vshrl.u32 %v2674, 15
      %v2691 = vshrl.u32 %v2675, 15
      %v2692 = vshrl.u32 %v2676, 15
      %v2693 = vshrl.u32 %v2677, 15
      %v2694 = vshrl.u32 %v2678, 15
      %v2695 = vshrl.u32 %v2679, 15
      %v2696 = vshrl.u32 %v2680, 15
      %v2697 = vshrl.u32 %v2681, 15
      %v2698 = vshrl.u32 %v2682, 15
      %v2699 = vshrl.u32 %v2683, 15
      %v2700 = vshrl.u32 %v2684, 15
      %v2701 = vshrl.u32 %v2685, 15
      %v2702 = vshrl.u32 %v2686, 15
      %v2703 = vshrl.u32 %v2687, 15
      %v2704 = vxor.u32 %v2672, %v2688
      %v2705 = vxor.u32 %v2673, %v2689
      %v2706 = vxor.u32 %v2674, %v2690
      %v2707 = vxor.u32 %v2675, %v2691
      %v2708 = vxor.u32 %v2676, %v2692
      %v2709 = vxor.u32 %v2677, %v2693
      %v2710 = vxor.u32 %v2678, %v2694
      %v2711 = vxor.u32 %v2679, %v2695
      %v2712 = vxor.u32 %v2680, %v2696
      %v2713 = vxor.u32 %v2681, %v2697
      %v2714 = vxor.u32 %v2682, %v2698
      %v2715 = vxor.u32 %v2683, %v2699
      %v2716 = vxor.u32 %v2684, %v2700
      %v2717 = vxor.u32 %v2685, %v2701
      %v2718 = vxor.u32 %v2686, %v2702
      %v2719 = vxor.u32 %v2687, %v2703
      %v2720 = vshrl.u32 %v2704, 1
      %v2721 = vshrl.u32 %v2705, 1
      %v2722 = vshrl.u32 %v2706, 1
      %v2723 = vshrl.u32 %v2707, 1
      %v2724 = vshrl.u32 %v2708, 1
      %v2725 = vshrl.u32 %v2709, 1
      %v2726 = vshrl.u32 %v2710, 1
      %v2727 = vshrl.u32 %v2711, 1
      %v2728 = vshrl.u32 %v2712, 1
      %v2729 = vshrl.u32 %v2713, 1
      %v2730 = vshrl.u32 %v2714, 1
      %v2731 = vshrl.u32 %v2715, 1
      %v2732 = vshrl.u32 %v2716, 1
      %v2733 = vshrl.u32 %v2717, 1
      %v2734 = vshrl.u32 %v2718, 1
      %v2735 = vshrl.u32 %v2719, 1
      %vm2736 = vcmp.ge.s32.totalorder %v2720, 858993459
      %vm2737 = vcmp.ge.s32.totalorder %v2721, 858993459
      %vm2738 = vcmp.ge.s32.totalorder %v2722, 858993459
      %vm2739 = vcmp.ge.s32.totalorder %v2723, 858993459
      %vm2740 = vcmp.ge.s32.totalorder %v2724, 858993459
      %vm2741 = vcmp.ge.s32.totalorder %v2725, 858993459
      %vm2742 = vcmp.ge.s32.totalorder %v2726, 858993459
      %vm2743 = vcmp.ge.s32.totalorder %v2727, 858993459
      %vm2744 = vcmp.ge.s32.totalorder %v2728, 858993459
      %vm2745 = vcmp.ge.s32.totalorder %v2729, 858993459
      %vm2746 = vcmp.ge.s32.totalorder %v2730, 858993459
      %vm2747 = vcmp.ge.s32.totalorder %v2731, 858993459
      %vm2748 = vcmp.ge.s32.totalorder %v2732, 858993459
      %vm2749 = vcmp.ge.s32.totalorder %v2733, 858993459
      %vm2750 = vcmp.ge.s32.totalorder %v2734, 858993459
      %vm2751 = vcmp.ge.s32.totalorder %v2735, 858993459
      %v2752 = vsel %vm2736, %v2243, 0.0
      %v2753 = vsel %vm2737, %v2258, 0.0
      %v2754 = vsel %vm2738, %v2273, 0.0
      %v2755 = vsel %vm2739, %v2288, 0.0
      %v2756 = vsel %vm2740, %v2303, 0.0
      %v2757 = vsel %vm2741, %v2318, 0.0
      %v2758 = vsel %vm2742, %v2333, 0.0
      %v2759 = vsel %vm2743, %v2348, 0.0
      %v2760 = vsel %vm2744, %v2363, 0.0
      %v2761 = vsel %vm2745, %v2378, 0.0
      %v2762 = vsel %vm2746, %v2393, 0.0
      %v2763 = vsel %vm2747, %v2408, 0.0
      %v2764 = vsel %vm2748, %v2423, 0.0
      %v2765 = vsel %vm2749, %v2438, 0.0
      %v2766 = vsel %vm2750, %v2453, 0.0
      %v2767 = vsel %vm2751, %v2468, 0.0
      %v2768 = vld [vmem:[%s6] sm:$0xff]
      %v2769 = vld [vmem:[%s6 + $0x8] sm:$0xff]
      %v2770 = vld [vmem:[%s6 + $0x10] sm:$0xff]
      %v2771 = vld [vmem:[%s6 + $0x18] sm:$0xff]
      %v2772 = vld [vmem:[%s6 + $0x20] sm:$0xff]
      %v2773 = vld [vmem:[%s6 + $0x28] sm:$0xff]
      %v2774 = vld [vmem:[%s6 + $0x30] sm:$0xff]
      %v2775 = vld [vmem:[%s6 + $0x38] sm:$0xff]
      %v2776 = vld [vmem:[%s6 + $0x40] sm:$0xff]
      %v2777 = vld [vmem:[%s6 + $0x48] sm:$0xff]
      %v2778 = vld [vmem:[%s6 + $0x50] sm:$0xff]
      %v2779 = vld [vmem:[%s6 + $0x58] sm:$0xff]
      %v2780 = vld [vmem:[%s6 + $0x60] sm:$0xff]
      %v2781 = vld [vmem:[%s6 + $0x68] sm:$0xff]
      %v2782 = vld [vmem:[%s6 + $0x70] sm:$0xff]
      %v2783 = vld [vmem:[%s6 + $0x78] sm:$0xff]
      %v2784 = vld [vmem:[#allocation4] sm:$0x1]
      %v2786 = vperm.slane %v2784, 0
      %2788 = vmatpush.msra.mxu0 %v2783
      %2789 = vmatpush.msra.mxu0 %v2782
      %2790 = vmatpush.msra.mxu0 %v2781
      %2791 = vmatpush.msra.mxu0 %v2780
      %2792 = vmatpush.msra.mxu0 %v2779
      %2793 = vmatpush.msra.mxu0 %v2778
      %2794 = vmatpush.msra.mxu0 %v2777
      %2795 = vmatpush.msra.mxu0 %v2776
      %2796 = vmatpush.msra.mxu0 %v2775
      %2797 = vmatpush.msra.mxu0 %v2774
      %2798 = vmatpush.msra.mxu0 %v2773
      %2799 = vmatpush.msra.mxu0 %v2772
      %2800 = vmatpush.msra.mxu0 %v2771
      %2801 = vmatpush.msra.mxu0 %v2770
      %2802 = vmatpush.msra.mxu0 %v2769
      %2803 = vmatpush.msra.mxu0 %v2768
      %2804 = vmatmul.f32.gmra.mxu0 %v2752
      %v2805 = vpop.f32.mrf.mxu0
      %v2806 = vadd.f32 %v2786, %v2805
      %2807 = vmatmul.f32.gmra.mxu0 %v2753
      %v2808 = vpop.f32.mrf.mxu0
      %v2809 = vadd.f32 %v2786, %v2808
      %2810 = vmatmul.f32.gmra.mxu0 %v2754
      %v2811 = vpop.f32.mrf.mxu0
      %v2812 = vadd.f32 %v2786, %v2811
      %2813 = vmatmul.f32.gmra.mxu0 %v2755
      %v2814 = vpop.f32.mrf.mxu0
      %v2815 = vadd.f32 %v2786, %v2814
      %2816 = vmatmul.f32.gmra.mxu0 %v2756
      %v2817 = vpop.f32.mrf.mxu0
      %v2818 = vadd.f32 %v2786, %v2817
      %2819 = vmatmul.f32.gmra.mxu0 %v2757
      %v2820 = vpop.f32.mrf.mxu0
      %v2821 = vadd.f32 %v2786, %v2820
      %2822 = vmatmul.f32.gmra.mxu0 %v2758
      %v2823 = vpop.f32.mrf.mxu0
      %v2824 = vadd.f32 %v2786, %v2823
      %2825 = vmatmul.f32.gmra.mxu0 %v2759
      %v2826 = vpop.f32.mrf.mxu0
      %v2827 = vadd.f32 %v2786, %v2826
      %2828 = vmatmul.f32.gmra.mxu0 %v2760
      %v2829 = vpop.f32.mrf.mxu0
      %v2830 = vadd.f32 %v2786, %v2829
      %2831 = vmatmul.f32.gmra.mxu0 %v2761
      %v2832 = vpop.f32.mrf.mxu0
      %v2833 = vadd.f32 %v2786, %v2832
      %2834 = vmatmul.f32.gmra.mxu0 %v2762
      %v2835 = vpop.f32.mrf.mxu0
      %v2836 = vadd.f32 %v2786, %v2835
      %2837 = vmatmul.f32.gmra.mxu0 %v2763
      %v2838 = vpop.f32.mrf.mxu0
      %v2839 = vadd.f32 %v2786, %v2838
      %2840 = vmatmul.f32.gmra.mxu0 %v2764
      %v2841 = vpop.f32.mrf.mxu0
      %v2842 = vadd.f32 %v2786, %v2841
      %2843 = vmatmul.f32.gmra.mxu0 %v2765
      %v2844 = vpop.f32.mrf.mxu0
      %v2845 = vadd.f32 %v2786, %v2844
      %2846 = vmatmul.f32.gmra.mxu0 %v2766
      %v2847 = vpop.f32.mrf.mxu0
      %v2848 = vadd.f32 %v2786, %v2847
      %2849 = vmatmul.f32.gmra.mxu0 %v2767
      %v2850 = vpop.f32.mrf.mxu0
      %v2851 = vadd.f32 %v2786, %v2850
      %2852 = vdwg.mxu0
      %v2853 = vxor.u32 %v2806, 2147483648
      %v2854 = vxor.u32 %v2809, 2147483648
      %v2855 = vxor.u32 %v2812, 2147483648
      %v2856 = vxor.u32 %v2815, 2147483648
      %v2857 = vxor.u32 %v2818, 2147483648
      %v2858 = vxor.u32 %v2821, 2147483648
      %v2859 = vxor.u32 %v2824, 2147483648
      %v2860 = vxor.u32 %v2827, 2147483648
      %v2861 = vxor.u32 %v2830, 2147483648
      %v2862 = vxor.u32 %v2833, 2147483648
      %v2863 = vxor.u32 %v2836, 2147483648
      %v2864 = vxor.u32 %v2839, 2147483648
      %v2865 = vxor.u32 %v2842, 2147483648
      %v2866 = vxor.u32 %v2845, 2147483648
      %v2867 = vxor.u32 %v2848, 2147483648
      %v2868 = vxor.u32 %v2851, 2147483648
      %v2869 = vmul.f32 %v2853, 1.442695
      %v2870 = vpow.pop %v2869
      %v2871 = vmul.f32 %v2854, 1.442695
      %v2872 = vpow.pop %v2871
      %v2873 = vmul.f32 %v2855, 1.442695
      %v2874 = vpow.pop %v2873
      %v2875 = vmul.f32 %v2856, 1.442695
      %v2876 = vpow.pop %v2875
      %v2877 = vmul.f32 %v2857, 1.442695
      %v2878 = vpow.pop %v2877
      %v2879 = vmul.f32 %v2858, 1.442695
      %v2880 = vpow.pop %v2879
      %v2881 = vmul.f32 %v2859, 1.442695
      %v2882 = vpow.pop %v2881
      %v2883 = vmul.f32 %v2860, 1.442695
      %v2884 = vpow.pop %v2883
      %v2885 = vmul.f32 %v2861, 1.442695
      %v2886 = vpow.pop %v2885
      %v2887 = vmul.f32 %v2862, 1.442695
      %v2888 = vpow.pop %v2887
      %v2889 = vmul.f32 %v2863, 1.442695
      %v2890 = vpow.pop %v2889
      %v2891 = vmul.f32 %v2864, 1.442695
      %v2892 = vpow.pop %v2891
      %v2893 = vmul.f32 %v2865, 1.442695
      %v2894 = vpow.pop %v2893
      %v2895 = vmul.f32 %v2866, 1.442695
      %v2896 = vpow.pop %v2895
      %v2897 = vmul.f32 %v2867, 1.442695
      %v2898 = vpow.pop %v2897
      %v2899 = vmul.f32 %v2868, 1.442695
      %v2900 = vpow.pop %v2899
      %v2901 = vadd.f32 %v2870, 1.0
      %v2902 = vadd.f32 %v2872, 1.0
      %v2903 = vadd.f32 %v2874, 1.0
      %v2904 = vadd.f32 %v2876, 1.0
      %v2905 = vadd.f32 %v2878, 1.0
      %v2906 = vadd.f32 %v2880, 1.0
      %v2907 = vadd.f32 %v2882, 1.0
      %v2908 = vadd.f32 %v2884, 1.0
      %v2909 = vadd.f32 %v2886, 1.0
      %v2910 = vadd.f32 %v2888, 1.0
      %v2911 = vadd.f32 %v2890, 1.0
      %v2912 = vadd.f32 %v2892, 1.0
      %v2913 = vadd.f32 %v2894, 1.0
      %v2914 = vadd.f32 %v2896, 1.0
      %v2915 = vadd.f32 %v2898, 1.0
      %v2916 = vadd.f32 %v2900, 1.0
      %v2917 = vrcp.pop %v2901
      %v2918 = vmul.f32 %v2901, %v2917
      %v2919 = vsub.f32 1.0, %v2918
      %v2920 = vmul.f32 %v2917, %v2919
      %v2921 = vadd.f32 %v2917, %v2920
      %vm2922 = vweird.f32 %v2901
      %vm2923 = vweird.f32 %v2917
      %vm2924 = vmor %vm2922, %vm2923
      %v2925 = vsel %vm2924, %v2917, %v2921
      %v2926 = vand.u32 2147483647, %v2901
      %vm2927 = vcmp.eq.f32.partialorder %v2926, 8.507059e+37
      %v2928 = vand.u32 %v2901, 2147483648
      %v2929 = vor.u32 1.1754944e-38, %v2928
      %v2930 = vsel %vm2927, %v2929, %v2925
      %v2931 = vmul.f32 1.0, %v2930
      %v2932 = vrcp.pop %v2902
      %v2933 = vmul.f32 %v2902, %v2932
      %v2934 = vsub.f32 1.0, %v2933
      %v2935 = vmul.f32 %v2932, %v2934
      %v2936 = vadd.f32 %v2932, %v2935
      %vm2937 = vweird.f32 %v2902
      %vm2938 = vweird.f32 %v2932
      %vm2939 = vmor %vm2937, %vm2938
      %v2940 = vsel %vm2939, %v2932, %v2936
      %v2941 = vand.u32 2147483647, %v2902
      %vm2942 = vcmp.eq.f32.partialorder %v2941, 8.507059e+37
      %v2943 = vand.u32 %v2902, 2147483648
      %v2944 = vor.u32 1.1754944e-38, %v2943
      %v2945 = vsel %vm2942, %v2944, %v2940
      %v2946 = vmul.f32 1.0, %v2945
      %v2947 = vrcp.pop %v2903
      %v2948 = vmul.f32 %v2903, %v2947
      %v2949 = vsub.f32 1.0, %v2948
      %v2950 = vmul.f32 %v2947, %v2949
      %v2951 = vadd.f32 %v2947, %v2950
      %vm2952 = vweird.f32 %v2903
      %vm2953 = vweird.f32 %v2947
      %vm2954 = vmor %vm2952, %vm2953
      %v2955 = vsel %vm2954, %v2947, %v2951
      %v2956 = vand.u32 2147483647, %v2903
      %vm2957 = vcmp.eq.f32.partialorder %v2956, 8.507059e+37
      %v2958 = vand.u32 %v2903, 2147483648
      %v2959 = vor.u32 1.1754944e-38, %v2958
      %v2960 = vsel %vm2957, %v2959, %v2955
      %v2961 = vmul.f32 1.0, %v2960
      %v2962 = vrcp.pop %v2904
      %v2963 = vmul.f32 %v2904, %v2962
      %v2964 = vsub.f32 1.0, %v2963
      %v2965 = vmul.f32 %v2962, %v2964
      %v2966 = vadd.f32 %v2962, %v2965
      %vm2967 = vweird.f32 %v2904
      %vm2968 = vweird.f32 %v2962
      %vm2969 = vmor %vm2967, %vm2968
      %v2970 = vsel %vm2969, %v2962, %v2966
      %v2971 = vand.u32 2147483647, %v2904
      %vm2972 = vcmp.eq.f32.partialorder %v2971, 8.507059e+37
      %v2973 = vand.u32 %v2904, 2147483648
      %v2974 = vor.u32 1.1754944e-38, %v2973
      %v2975 = vsel %vm2972, %v2974, %v2970
      %v2976 = vmul.f32 1.0, %v2975
      %v2977 = vrcp.pop %v2905
      %v2978 = vmul.f32 %v2905, %v2977
      %v2979 = vsub.f32 1.0, %v2978
      %v2980 = vmul.f32 %v2977, %v2979
      %v2981 = vadd.f32 %v2977, %v2980
      %vm2982 = vweird.f32 %v2905
      %vm2983 = vweird.f32 %v2977
      %vm2984 = vmor %vm2982, %vm2983
      %v2985 = vsel %vm2984, %v2977, %v2981
      %v2986 = vand.u32 2147483647, %v2905
      %vm2987 = vcmp.eq.f32.partialorder %v2986, 8.507059e+37
      %v2988 = vand.u32 %v2905, 2147483648
      %v2989 = vor.u32 1.1754944e-38, %v2988
      %v2990 = vsel %vm2987, %v2989, %v2985
      %v2991 = vmul.f32 1.0, %v2990
      %v2992 = vrcp.pop %v2906
      %v2993 = vmul.f32 %v2906, %v2992
      %v2994 = vsub.f32 1.0, %v2993
      %v2995 = vmul.f32 %v2992, %v2994
      %v2996 = vadd.f32 %v2992, %v2995
      %vm2997 = vweird.f32 %v2906
      %vm2998 = vweird.f32 %v2992
      %vm2999 = vmor %vm2997, %vm2998
      %v3000 = vsel %vm2999, %v2992, %v2996
      %v3001 = vand.u32 2147483647, %v2906
      %vm3002 = vcmp.eq.f32.partialorder %v3001, 8.507059e+37
      %v3003 = vand.u32 %v2906, 2147483648
      %v3004 = vor.u32 1.1754944e-38, %v3003
      %v3005 = vsel %vm3002, %v3004, %v3000
      %v3006 = vmul.f32 1.0, %v3005
      %v3007 = vrcp.pop %v2907
      %v3008 = vmul.f32 %v2907, %v3007
      %v3009 = vsub.f32 1.0, %v3008
      %v3010 = vmul.f32 %v3007, %v3009
      %v3011 = vadd.f32 %v3007, %v3010
      %vm3012 = vweird.f32 %v2907
      %vm3013 = vweird.f32 %v3007
      %vm3014 = vmor %vm3012, %vm3013
      %v3015 = vsel %vm3014, %v3007, %v3011
      %v3016 = vand.u32 2147483647, %v2907
      %vm3017 = vcmp.eq.f32.partialorder %v3016, 8.507059e+37
      %v3018 = vand.u32 %v2907, 2147483648
      %v3019 = vor.u32 1.1754944e-38, %v3018
      %v3020 = vsel %vm3017, %v3019, %v3015
      %v3021 = vmul.f32 1.0, %v3020
      %v3022 = vrcp.pop %v2908
      %v3023 = vmul.f32 %v2908, %v3022
      %v3024 = vsub.f32 1.0, %v3023
      %v3025 = vmul.f32 %v3022, %v3024
      %v3026 = vadd.f32 %v3022, %v3025
      %vm3027 = vweird.f32 %v2908
      %vm3028 = vweird.f32 %v3022
      %vm3029 = vmor %vm3027, %vm3028
      %v3030 = vsel %vm3029, %v3022, %v3026
      %v3031 = vand.u32 2147483647, %v2908
      %vm3032 = vcmp.eq.f32.partialorder %v3031, 8.507059e+37
      %v3033 = vand.u32 %v2908, 2147483648
      %v3034 = vor.u32 1.1754944e-38, %v3033
      %v3035 = vsel %vm3032, %v3034, %v3030
      %v3036 = vmul.f32 1.0, %v3035
      %v3037 = vrcp.pop %v2909
      %v3038 = vmul.f32 %v2909, %v3037
      %v3039 = vsub.f32 1.0, %v3038
      %v3040 = vmul.f32 %v3037, %v3039
      %v3041 = vadd.f32 %v3037, %v3040
      %vm3042 = vweird.f32 %v2909
      %vm3043 = vweird.f32 %v3037
      %vm3044 = vmor %vm3042, %vm3043
      %v3045 = vsel %vm3044, %v3037, %v3041
      %v3046 = vand.u32 2147483647, %v2909
      %vm3047 = vcmp.eq.f32.partialorder %v3046, 8.507059e+37
      %v3048 = vand.u32 %v2909, 2147483648
      %v3049 = vor.u32 1.1754944e-38, %v3048
      %v3050 = vsel %vm3047, %v3049, %v3045
      %v3051 = vmul.f32 1.0, %v3050
      %v3052 = vrcp.pop %v2910
      %v3053 = vmul.f32 %v2910, %v3052
      %v3054 = vsub.f32 1.0, %v3053
      %v3055 = vmul.f32 %v3052, %v3054
      %v3056 = vadd.f32 %v3052, %v3055
      %vm3057 = vweird.f32 %v2910
      %vm3058 = vweird.f32 %v3052
      %vm3059 = vmor %vm3057, %vm3058
      %v3060 = vsel %vm3059, %v3052, %v3056
      %v3061 = vand.u32 2147483647, %v2910
      %vm3062 = vcmp.eq.f32.partialorder %v3061, 8.507059e+37
      %v3063 = vand.u32 %v2910, 2147483648
      %v3064 = vor.u32 1.1754944e-38, %v3063
      %v3065 = vsel %vm3062, %v3064, %v3060
      %v3066 = vmul.f32 1.0, %v3065
      %v3067 = vrcp.pop %v2911
      %v3068 = vmul.f32 %v2911, %v3067
      %v3069 = vsub.f32 1.0, %v3068
      %v3070 = vmul.f32 %v3067, %v3069
      %v3071 = vadd.f32 %v3067, %v3070
      %vm3072 = vweird.f32 %v2911
      %vm3073 = vweird.f32 %v3067
      %vm3074 = vmor %vm3072, %vm3073
      %v3075 = vsel %vm3074, %v3067, %v3071
      %v3076 = vand.u32 2147483647, %v2911
      %vm3077 = vcmp.eq.f32.partialorder %v3076, 8.507059e+37
      %v3078 = vand.u32 %v2911, 2147483648
      %v3079 = vor.u32 1.1754944e-38, %v3078
      %v3080 = vsel %vm3077, %v3079, %v3075
      %v3081 = vmul.f32 1.0, %v3080
      %v3082 = vrcp.pop %v2912
      %v3083 = vmul.f32 %v2912, %v3082
      %v3084 = vsub.f32 1.0, %v3083
      %v3085 = vmul.f32 %v3082, %v3084
      %v3086 = vadd.f32 %v3082, %v3085
      %vm3087 = vweird.f32 %v2912
      %vm3088 = vweird.f32 %v3082
      %vm3089 = vmor %vm3087, %vm3088
      %v3090 = vsel %vm3089, %v3082, %v3086
      %v3091 = vand.u32 2147483647, %v2912
      %vm3092 = vcmp.eq.f32.partialorder %v3091, 8.507059e+37
      %v3093 = vand.u32 %v2912, 2147483648
      %v3094 = vor.u32 1.1754944e-38, %v3093
      %v3095 = vsel %vm3092, %v3094, %v3090
      %v3096 = vmul.f32 1.0, %v3095
      %v3097 = vrcp.pop %v2913
      %v3098 = vmul.f32 %v2913, %v3097
      %v3099 = vsub.f32 1.0, %v3098
      %v3100 = vmul.f32 %v3097, %v3099
      %v3101 = vadd.f32 %v3097, %v3100
      %vm3102 = vweird.f32 %v2913
      %vm3103 = vweird.f32 %v3097
      %vm3104 = vmor %vm3102, %vm3103
      %v3105 = vsel %vm3104, %v3097, %v3101
      %v3106 = vand.u32 2147483647, %v2913
      %vm3107 = vcmp.eq.f32.partialorder %v3106, 8.507059e+37
      %v3108 = vand.u32 %v2913, 2147483648
      %v3109 = vor.u32 1.1754944e-38, %v3108
      %v3110 = vsel %vm3107, %v3109, %v3105
      %v3111 = vmul.f32 1.0, %v3110
      %v3112 = vrcp.pop %v2914
      %v3113 = vmul.f32 %v2914, %v3112
      %v3114 = vsub.f32 1.0, %v3113
      %v3115 = vmul.f32 %v3112, %v3114
      %v3116 = vadd.f32 %v3112, %v3115
      %vm3117 = vweird.f32 %v2914
      %vm3118 = vweird.f32 %v3112
      %vm3119 = vmor %vm3117, %vm3118
      %v3120 = vsel %vm3119, %v3112, %v3116
      %v3121 = vand.u32 2147483647, %v2914
      %vm3122 = vcmp.eq.f32.partialorder %v3121, 8.507059e+37
      %v3123 = vand.u32 %v2914, 2147483648
      %v3124 = vor.u32 1.1754944e-38, %v3123
      %v3125 = vsel %vm3122, %v3124, %v3120
      %v3126 = vmul.f32 1.0, %v3125
      %v3127 = vrcp.pop %v2915
      %v3128 = vmul.f32 %v2915, %v3127
      %v3129 = vsub.f32 1.0, %v3128
      %v3130 = vmul.f32 %v3127, %v3129
      %v3131 = vadd.f32 %v3127, %v3130
      %vm3132 = vweird.f32 %v2915
      %vm3133 = vweird.f32 %v3127
      %vm3134 = vmor %vm3132, %vm3133
      %v3135 = vsel %vm3134, %v3127, %v3131
      %v3136 = vand.u32 2147483647, %v2915
      %vm3137 = vcmp.eq.f32.partialorder %v3136, 8.507059e+37
      %v3138 = vand.u32 %v2915, 2147483648
      %v3139 = vor.u32 1.1754944e-38, %v3138
      %v3140 = vsel %vm3137, %v3139, %v3135
      %v3141 = vmul.f32 1.0, %v3140
      %v3142 = vrcp.pop %v2916
      %v3143 = vmul.f32 %v2916, %v3142
      %v3144 = vsub.f32 1.0, %v3143
      %v3145 = vmul.f32 %v3142, %v3144
      %v3146 = vadd.f32 %v3142, %v3145
      %vm3147 = vweird.f32 %v2916
      %vm3148 = vweird.f32 %v3142
      %vm3149 = vmor %vm3147, %vm3148
      %v3150 = vsel %vm3149, %v3142, %v3146
      %v3151 = vand.u32 2147483647, %v2916
      %vm3152 = vcmp.eq.f32.partialorder %v3151, 8.507059e+37
      %v3153 = vand.u32 %v2916, 2147483648
      %v3154 = vor.u32 1.1754944e-38, %v3153
      %v3155 = vsel %vm3152, %v3154, %v3150
      %v3156 = vmul.f32 1.0, %v3155
      %vm3157 = vcmask 7168
      %3158 = vst.msk [vmem:[%s287] sm:$0xff] %vm3157, %v2931
      %3159 = vst.msk [vmem:[%s287 + $0x8] sm:$0xff] %vm3157, %v2946
      %3160 = vst.msk [vmem:[%s287 + $0x10] sm:$0xff] %vm3157, %v2961
      %3161 = vst.msk [vmem:[%s287 + $0x18] sm:$0xff] %vm3157, %v2976
      %3162 = vst.msk [vmem:[%s287 + $0x20] sm:$0xff] %vm3157, %v2991
      %3163 = vst.msk [vmem:[%s287 + $0x28] sm:$0xff] %vm3157, %v3006
      %3164 = vst.msk [vmem:[%s287 + $0x30] sm:$0xff] %vm3157, %v3021
      %3165 = vst.msk [vmem:[%s287 + $0x38] sm:$0xff] %vm3157, %v3036
      %3166 = vst.msk [vmem:[%s287 + $0x40] sm:$0xff] %vm3157, %v3051
      %3167 = vst.msk [vmem:[%s287 + $0x48] sm:$0xff] %vm3157, %v3066
      %3168 = vst.msk [vmem:[%s287 + $0x50] sm:$0xff] %vm3157, %v3081
      %3169 = vst.msk [vmem:[%s287 + $0x58] sm:$0xff] %vm3157, %v3096
      %3170 = vst.msk [vmem:[%s287 + $0x60] sm:$0xff] %vm3157, %v3111
      %3171 = vst.msk [vmem:[%s287 + $0x68] sm:$0xff] %vm3157, %v3126
      %3172 = vst.msk [vmem:[%s287 + $0x70] sm:$0xff] %vm3157, %v3141
      %3173 = vst.msk [vmem:[%s287 + $0x78] sm:$0xff] %vm3157, %v3156
      %s3174 = smul.u32 16, %s22
      %p3175 = scmp.lt.s32.totalorder %s3174, 31
      %s3176 = scalar_select %p3175, %s3174, 31
      %s3177 = smul.addr %s3176, 8
      %s3178 = scalar_lea.vmem %s8, %s3177
      // Predicated region
      $region49: #{tpu_custom_call.1} parent=47 // pred_check
        %p3179 = pneg %p192
      $region50: #{tpu_custom_call.1} parent=47 // pred_check_branch
        %3181 = sbr.rel (%p3179) target = $region52
      $region51: #{tpu_custom_call.1} parent=47 // pred_region
        %s3182 = smul.u32 16, %s22
      $region52: #{tpu_custom_call.1} parent=47 // pred_fallthru
        _
    $region48: #{tpu_custom_call.1} parent=5 // pred_fallthru
      _
    %p3183 = scmp.le.s32.totalorder 2, %s17
    // Predicated region
    $region53: #{tpu_custom_call.1} parent=5 // pred_check
      %p3184 = pneg %p3183
    $region54: #{tpu_custom_call.1} parent=5 // pred_check_branch
      %3186 = sbr.rel (%p3184) target = $region56
    $region55: #{tpu_custom_call.1} parent=5 // pred_region
      %s3187 = ssub.s32 %s17, 2
      // Predicated region
      $region57: #{tpu_custom_call.1} parent=55 // pred_check
        %p3188 = pneg %p198
      $region58: #{tpu_custom_call.1} parent=55 // pred_check_branch
        %3190 = sbr.rel (%p3188) target = $region60
      $region59: #{tpu_custom_call.1} parent=55 // pred_region
        %s3191 = smul.u32 16, %s23
        %p3192 = scmp.lt.s32.totalorder %s3191, 31
        %s3193 = scalar_select %p3192, %s3191, 31
        %s3194 = smul.addr %s3193, 8
        %s3195 = scalar_lea.vmem %s8, %s3194
      $region60: #{tpu_custom_call.1} parent=55 // pred_fallthru
        _
    $region56: #{tpu_custom_call.1} parent=5 // pred_fallthru
      _
  $region6: #{tpu_custom_call.1} parent=0 // loop_footer
    %s21 = sadd.s32 1, %s17
  $region7: #{tpu_custom_call.1} parent=0 // loop_footer_branch
    %16 = sbr.rel target = $region3
  $region8: #{tpu_custom_call.1} parent=0 // loop_exit
    _

</llo_original>
